<compile_context>
chip_gen: v6e
topology: v6e:2x2x1
jax: 0.10.0
libtpu: 0.0.40
codegen_flags: <defaults>
</compile_context>

<pallas_src>
import math
import jax
import jax.numpy as jnp
from jax.experimental import pallas as pl
from jax.experimental.pallas import tpu as pltpu

# ---------------- model hyper-parameters (module-level globals in the original) ----
D_MODEL = 32
NUM_HEADS = 4
D_K = D_MODEL // NUM_HEADS
D_FF = 64
NUM_LAYERS = 2
EPS_LN = 1e-5        # LayerNormEx1 default epsilon
NEG_INF = 1e29       # MultiheadAttentionEx.inf

# Packed-buffer layout constants.
_W32_BLOCKS_PER_LAYER = 5        # [Wqkv1, Wq2, W01, W02, Wff1]
_BIAS_ROWS_PER_LAYER = 6         # [bqkv1, bq2, b01, b02, bff1, bff2]
_PACK_COLS = 128                 # every block padded to a full lane row


# ---------------- fused decoder kernel ----------------------------------------------
def _decoder_kernel(x_ref, e_ref, sb_ref, cb_ref, w32_ref, w64_ref, b_ref, o_ref):
    # x_ref:   (B*L,  D)     decoder input rows (flattened batch)
    # e_ref:   (B*Le, D)     encoder output rows (flattened batch)
    # sb_ref:  (B*L, B*L)    additive self-attn bias: 0 keep / -1e29 masked (incl. cross-batch)
    # cb_ref:  (B*L, B*Le)   additive cross-attn bias
    # w32_ref: (11*32, 128)  all weights with input dim 32, 32-row blocks, col-padded
    # w64_ref: (NL*64, 128)  FFN second-layer weights (input dim 64), col-padded
    # b_ref:   (13, 128)     all bias vectors, one per row, col-padded
    x = x_ref[...]
    e = e_ref[...]
    self_bias = sb_ref[...]
    cross_bias = cb_ref[...]
    scale = 1.0 / math.sqrt(D_K)

    def W32(idx, ncols):
        return w32_ref[idx * D_MODEL:(idx + 1) * D_MODEL, :ncols]

    def W64(idx, ncols):
        return w64_ref[idx * D_FF:(idx + 1) * D_FF, :ncols]

    def BIAS(idx, ncols):
        return b_ref[idx:idx + 1, :ncols]              # (1, ncols) -> broadcasts over rows

    def layer_norm(h):  # LayerNormEx1 with gamma=None, beta=None
        mean = jnp.mean(h, axis=-1, keepdims=True)
        xmu = h - mean
        var = jnp.mean(xmu * xmu, axis=-1, keepdims=True)
        return xmu * jax.lax.rsqrt(var + EPS_LN)       # rsqrt -> EUP slot

    def softmax_rows(s):
        m = jnp.max(s, axis=-1, keepdims=True)
        p = jnp.exp(s - m)
        denom = jnp.sum(p, axis=-1, keepdims=True)
        return p * pl.reciprocal(denom, approx=True)   # EUP recip instead of VALU divide

    def attention(q_all, k_all, v_all, bias_mat, w0, b0):
        # q_all: (BLq, D) head-concat Q; k_all/v_all: (BLk, D); bias_mat: (BLq, BLk)
        heads = []
        for h in range(NUM_HEADS):
            sl = slice(h * D_K, (h + 1) * D_K)
            qh = q_all[:, sl]
            kh = k_all[:, sl]
            vh = v_all[:, sl]
            # q @ k^T via dot_general (no explicit transpose), flat over batch.
            s = jax.lax.dot_general(qh, kh, (((1,), (1,)), ((), ())),
                                    preferred_element_type=jnp.float32)
            s = s * scale + bias_mat
            p = softmax_rows(s)
            heads.append(jnp.dot(p, vh, preferred_element_type=jnp.float32))
        concat = jnp.concatenate(heads, axis=-1)       # (BLq, D) head-order == PyTorch concat
        return jnp.dot(concat, w0, preferred_element_type=jnp.float32) + b0

    # Hoisted cross-attention K/V for all layers & heads: one (BLe,32)@(32,128) matmul.
    ekv = (jnp.dot(e, W32(NUM_LAYERS * _W32_BLOCKS_PER_LAYER, NUM_LAYERS * 2 * D_MODEL),
                   preferred_element_type=jnp.float32)
           + BIAS(NUM_LAYERS * _BIAS_ROWS_PER_LAYER, NUM_LAYERS * 2 * D_MODEL))

    h = x
    for l in range(NUM_LAYERS):
        wb = l * _W32_BLOCKS_PER_LAYER
        bb = l * _BIAS_ROWS_PER_LAYER

        # --- masked self-attention (pre-LN) ---
        x1 = layer_norm(h)
        qkv = (jnp.dot(x1, W32(wb + 0, 3 * D_MODEL), preferred_element_type=jnp.float32)
               + BIAS(bb + 0, 3 * D_MODEL))            # (BL, 96)
        h = h + attention(qkv[:, 0:D_MODEL],
                          qkv[:, D_MODEL:2 * D_MODEL],
                          qkv[:, 2 * D_MODEL:3 * D_MODEL],
                          self_bias,
                          W32(wb + 2, D_MODEL), BIAS(bb + 2, D_MODEL))

        # --- cross-attention over encoder output ---
        x2 = layer_norm(h)
        q2 = (jnp.dot(x2, W32(wb + 1, D_MODEL), preferred_element_type=jnp.float32)
              + BIAS(bb + 1, D_MODEL))
        k2 = ekv[:, l * 2 * D_MODEL:l * 2 * D_MODEL + D_MODEL]
        v2 = ekv[:, l * 2 * D_MODEL + D_MODEL:(l + 1) * 2 * D_MODEL]
        h = h + attention(q2, k2, v2, cross_bias,
                          W32(wb + 3, D_MODEL), BIAS(bb + 3, D_MODEL))

        # --- feed-forward ---
        x3 = layer_norm(h)
        h1 = jnp.maximum(
            jnp.dot(x3, W32(wb + 4, D_FF), preferred_element_type=jnp.float32)
            + BIAS(bb + 4, D_FF), 0.0)
        h = h + (jnp.dot(h1, W64(l, D_MODEL), preferred_element_type=jnp.float32)
                 + BIAS(bb + 5, D_MODEL))

    o_ref[...] = layer_norm(h)


# ---------------- wrapper ------------------------------------------------------------
def _make_attn_bias(mask, Bsz, Lq, Lk):
    """(B, 1|Lq, Lk) keep/mask -> (B*Lq, B*Lk) additive bias (0 / -1e29, block-diag)."""
    m = jnp.broadcast_to(jnp.asarray(mask, jnp.float32), (Bsz, Lq, Lk))
    eye = jnp.eye(Bsz, dtype=jnp.float32)
    big = jnp.einsum("bc,bqk->bqck", eye, m).reshape(Bsz * Lq, Bsz * Lk)
    return jnp.where(big != 0.0, 0.0, -NEG_INF).astype(jnp.float32)


def decoder_forward(x, e_output, e_mask, d_mask, packed):
    B, L, D = x.shape
    Le = e_output.shape[1]
    w32_buf, w64_buf, bias_buf = packed

    self_bias = _make_attn_bias(d_mask, B, L, L)       # (B*L, B*L)
    cross_bias = _make_attn_bias(e_mask, B, L, Le)     # (B*L, B*Le)

    args = (x.reshape(B * L, D).astype(jnp.float32),
            e_output.reshape(B * Le, D).astype(jnp.float32),
            self_bias, cross_bias, w32_buf, w64_buf, bias_buf)

    out2d = pl.pallas_call(
        _decoder_kernel,
        out_shape=jax.ShapeDtypeStruct((B * L, D), jnp.float32),
        in_specs=[pl.BlockSpec(memory_space=pltpu.MemorySpace.VMEM)] * len(args),
        out_specs=pl.BlockSpec(memory_space=pltpu.MemorySpace.VMEM),
    )(*args)
    return out2d.reshape(B, L, D)


decoder_forward_jit = jax.jit(decoder_forward)


# ---------------- parameter packing (done once, at init) ----------------------------
def pack_decoder_params(params):
    """PyTorch-layout params -> 3 flat, pre-transposed, lane-padded VMEM buffers."""
    def pad_cols(a):
        return jnp.pad(a, ((0, 0), (0, _PACK_COLS - a.shape[1])))

    def pad_row(v):
        return jnp.pad(v, (0, _PACK_COLS - v.shape[0]))

    w32_blocks, w64_blocks, bias_rows = [], [], []
    ekv_w, ekv_b = [], []

    for layer in params["layers"]:
        mh1, mh2, ff = layer["mh1"], layer["mh2"], layer["ff"]
        # fused self-attn QKV: (D, 3D), head h of q/k/v at cols h*dk within each D block
        wqkv = jnp.concatenate([mh1["w_q"].T, mh1["w_k"].T, mh1["w_v"].T], axis=1)
        bqkv = jnp.concatenate([mh1["b_q"], mh1["b_k"], mh1["b_v"]], axis=0)

        w32_blocks += [pad_cols(wqkv),             # idx l*5 + 0 : Wqkv (self)
                       pad_cols(mh2["w_q"].T),     # idx l*5 + 1 : Wq   (cross)
                       pad_cols(mh1["w_0"].T),     # idx l*5 + 2 : W0   (self)
                       pad_cols(mh2["w_0"].T),     # idx l*5 + 3 : W0   (cross)
                       pad_cols(ff["w_1"].T)]      # idx l*5 + 4 : Wff1
        bias_rows += [pad_row(bqkv),               # row l*6 + 0
                      pad_row(mh2["b_q"]),         # row l*6 + 1
                      pad_row(mh1["b_0"]),         # row l*6 + 2
                      pad_row(mh2["b_0"]),         # row l*6 + 3
                      pad_row(ff["b_1"]),          # row l*6 + 4
                      pad_row(ff["b_2"])]          # row l*6 + 5
        w64_blocks.append(pad_cols(ff["w_2"].T))   # FFN second layer (64, 32)

        # hoisted cross-attn K/V: per layer (D, 2D) = [K | V]
        ekv_w.append(jnp.concatenate([mh2["w_k"].T, mh2["w_v"].T], axis=1))
        ekv_b.append(jnp.concatenate([mh2["b_k"], mh2["b_v"]], axis=0))

    w32_blocks.append(pad_cols(jnp.concatenate(ekv_w, axis=1)))   # idx NL*5 : (32, 128)
    bias_rows.append(pad_row(jnp.concatenate(ekv_b, axis=0)))     # row NL*6 : (128,)

    w32_buf = jnp.concatenate(w32_blocks, axis=0).astype(jnp.float32)   # (11*32, 128)
    w64_buf = jnp.concatenate(w64_blocks, axis=0).astype(jnp.float32)   # (NL*64, 128)
    bias_buf = jnp.stack(bias_rows, axis=0).astype(jnp.float32)         # (13, 128)
    return w32_buf, w64_buf, bias_buf


# ---------------- deterministic parameter init --------------------------------------
def _init_linear(key, in_f, out_f):
    kw, kb = jax.random.split(key)
    bound = 1.0 / math.sqrt(in_f)
    w = jax.random.uniform(kw, (out_f, in_f), minval=-bound, maxval=bound,
                           dtype=jnp.float32)
    b = jax.random.uniform(kb, (out_f,), minval=-bound, maxval=bound,
                           dtype=jnp.float32)
    return w, b


def _init_mha(key):
    ks = jax.random.split(key, 4)
    p = {}
    for name, kk in zip(["q", "k", "v", "0"], ks):
        w, b = _init_linear(kk, D_MODEL, D_MODEL)
        p["w_" + name] = w
        p["b_" + name] = b
    return p


def _init_ff(key):
    k1, k2 = jax.random.split(key)
    w1, b1 = _init_linear(k1, D_MODEL, D_FF)
    w2, b2 = _init_linear(k2, D_FF, D_MODEL)
    return {"w_1": w1, "b_1": b1, "w_2": w2, "b_2": b2}


def init_decoder_params(key):
    layers = []
    for _ in range(NUM_LAYERS):
        k_mh1, k_mh2, k_ff, key = jax.random.split(key, 4)
        layers.append(
            {"mh1": _init_mha(k_mh1), "mh2": _init_mha(k_mh2), "ff": _init_ff(k_ff)}
        )
    return {"layers": layers}


# ---------------- pure-JAX reference (for self-check only) --------------------------
def _reference_decoder(x, e_output, e_mask, d_mask, params):
    def ln(h):
        mean = h.mean(-1, keepdims=True)
        xmu = h - mean
        var = (xmu * xmu).mean(-1, keepdims=True)
        return xmu / jnp.sqrt(var + EPS_LN)

    def lin(h, w, b):
        return h @ w.T + b

    def mha(q, k, v, mask, p):
        Bq, Lq, _ = q.shape
        Lk = k.shape[1]
        q1 = lin(q, p["w_q"], p["b_q"]).reshape(Bq, Lq, NUM_HEADS, D_K).transpose(0, 2, 1, 3)
        k1 = lin(k, p["w_k"], p["b_k"]).reshape(Bq, Lk, NUM_HEADS, D_K).transpose(0, 2, 1, 3)
        v1 = lin(v, p["w_v"], p["b_v"]).reshape(Bq, Lk, NUM_HEADS, D_K).transpose(0, 2, 1, 3)
        sc = (q1 @ k1.transpose(0, 1, 3, 2)) / math.sqrt(D_K)
        sc = jnp.where(mask[:, None, :, :] == 0, -NEG_INF, sc)
        pa = jax.nn.softmax(sc, axis=-1)
        av = (pa @ v1).transpose(0, 2, 1, 3).reshape(Bq, Lq, D_MODEL)
        return lin(av, p["w_0"], p["b_0"])

    h = x
    for lp in params["layers"]:
        x1 = ln(h)
        h = h + mha(x1, x1, x1, d_mask, lp["mh1"])
        x2 = ln(h)
        h = h + mha(x2, e_output, e_output, e_mask, lp["mh2"])
        x3 = ln(h)
        ff = lin(jax.nn.relu(lin(x3, lp["ff"]["w_1"], lp["ff"]["b_1"])),
                 lp["ff"]["w_2"], lp["ff"]["b_2"])
        h = h + ff
    return ln(h)


# ---------------- main --------------------------------------------------------------
if __name__ == "__main__":
    B, L = 2, 8

    key = jax.random.PRNGKey(0)
    k_params, k_x, k_e = jax.random.split(key, 3)

    params = init_decoder_params(k_params)
    packed = pack_decoder_params(params)

    x = jax.random.normal(k_x, (B, L, D_MODEL), dtype=jnp.float32)
    e_output = jax.random.normal(k_e, (B, L, D_MODEL), dtype=jnp.float32)

    # encoder mask: all valid (B, 1, L_enc); decoder mask: causal (B, L, L)
    e_mask = jnp.ones((B, 1, L), dtype=jnp.float32)
    d_mask = jnp.tile(jnp.tril(jnp.ones((L, L), dtype=jnp.float32))[None, :, :], (B, 1, 1))

    out = decoder_forward_jit(x, e_output, e_mask, d_mask, packed)
    out = jax.block_until_ready(out)
    assert out.shape == (B, L, D_MODEL)

    ref = _reference_decoder(x, e_output, e_mask, d_mask, params)
    max_err = float(jnp.max(jnp.abs(out - ref)))
    assert max_err < 5e-2, f"mismatch vs reference: {max_err}"

    print("KERNEL_OK")
</pallas_src>

<mosaic_0001>
module attributes {stable_mosaic.version = 11 : i64} {
  func.func @_decoder_kernel(%arg0: memref<16x32xf32, #tpu.memory_space<vmem>>, %arg1: memref<16x32xf32, #tpu.memory_space<vmem>>, %arg2: memref<16x16xf32, #tpu.memory_space<vmem>>, %arg3: memref<16x16xf32, #tpu.memory_space<vmem>>, %arg4: memref<352x128xf32, #tpu.memory_space<vmem>>, %arg5: memref<128x128xf32, #tpu.memory_space<vmem>>, %arg6: memref<13x128xf32, #tpu.memory_space<vmem>>, %arg7: memref<16x32xf32, #tpu.memory_space<vmem>>) attributes {dimension_semantics = [], scalar_prefetch = 0 : i64, scratch_operands = 0 : i64, tpu.core_type = #tpu.core_type<tc>} {
    %c0 = arith.constant 0 : index
    %c0_0 = arith.constant 0 : index
    %0 = vector.load %arg0[%c0, %c0_0] : memref<16x32xf32, #tpu.memory_space<vmem>>, vector<16x32xf32>
    %c0_1 = arith.constant 0 : index
    %c0_2 = arith.constant 0 : index
    %1 = vector.load %arg1[%c0_1, %c0_2] : memref<16x32xf32, #tpu.memory_space<vmem>>, vector<16x32xf32>
    %c0_3 = arith.constant 0 : index
    %c0_4 = arith.constant 0 : index
    %2 = vector.load %arg2[%c0_3, %c0_4] : memref<16x16xf32, #tpu.memory_space<vmem>>, vector<16x16xf32>
    %c0_5 = arith.constant 0 : index
    %c0_6 = arith.constant 0 : index
    %3 = vector.load %arg3[%c0_5, %c0_6] : memref<16x16xf32, #tpu.memory_space<vmem>>, vector<16x16xf32>
    %c320 = arith.constant 320 : index
    %c0_7 = arith.constant 0 : index
    %4 = vector.load %arg4[%c320, %c0_7] : memref<352x128xf32, #tpu.memory_space<vmem>>, vector<32x128xf32>
    %cst = arith.constant dense<0.000000e+00> : vector<16x128xf32>
    %5 = tpu.matmul %1, %4, %cst {dimension_numbers = #tpu.dot_dimension_numbers<[1], [0], [0], [1], [0, 0, 1, 1], [], []>} : vector<16x32xf32>, vector<32x128xf32>, vector<16x128xf32> -> vector<16x128xf32>
    %c12 = arith.constant 12 : index
    %c0_8 = arith.constant 0 : index
    %6 = vector.load %arg6[%c12, %c0_8] : memref<13x128xf32, #tpu.memory_space<vmem>>, vector<1x128xf32>
    %7 = vector.broadcast %6 : vector<1x128xf32> to vector<16x128xf32>
    %8 = arith.addf %5, %7 : vector<16x128xf32>
    %cst_9 = arith.constant dense<0.000000e+00> : vector<16xf32>
    %9 = vector.multi_reduction <add>, %0, %cst_9 [1] : vector<16x32xf32> to vector<16xf32>
    %10 = vector.shape_cast %9 : vector<16xf32> to vector<16x1xf32>
    %cst_10 = arith.constant 3.200000e+01 : f32
    %11 = vector.broadcast %cst_10 : f32 to vector<16x1xf32>
    %12 = arith.divf %10, %11 : vector<16x1xf32>
    %13 = vector.broadcast %12 : vector<16x1xf32> to vector<16x32xf32>
    %14 = arith.subf %0, %13 : vector<16x32xf32>
    %15 = arith.mulf %14, %14 : vector<16x32xf32>
    %cst_11 = arith.constant dense<0.000000e+00> : vector<16xf32>
    %16 = vector.multi_reduction <add>, %15, %cst_11 [1] : vector<16x32xf32> to vector<16xf32>
    %17 = vector.shape_cast %16 : vector<16xf32> to vector<16x1xf32>
    %cst_12 = arith.constant 3.200000e+01 : f32
    %18 = vector.broadcast %cst_12 : f32 to vector<16x1xf32>
    %19 = arith.divf %17, %18 : vector<16x1xf32>
    %cst_13 = arith.constant 9.99999974E-6 : f32
    %20 = vector.broadcast %cst_13 : f32 to vector<16x1xf32>
    %21 = arith.addf %19, %20 : vector<16x1xf32>
    %22 = math.rsqrt %21 : vector<16x1xf32>
    %23 = vector.broadcast %22 : vector<16x1xf32> to vector<16x32xf32>
    %24 = arith.mulf %14, %23 : vector<16x32xf32>
    %c0_14 = arith.constant 0 : index
    %c0_15 = arith.constant 0 : index
    %25 = vector.load %arg4[%c0_14, %c0_15] : memref<352x128xf32, #tpu.memory_space<vmem>>, vector<32x96xf32>
    %cst_16 = arith.constant dense<0.000000e+00> : vector<16x96xf32>
    %26 = tpu.matmul %24, %25, %cst_16 {dimension_numbers = #tpu.dot_dimension_numbers<[1], [0], [0], [1], [0, 0, 1, 1], [], []>} : vector<16x32xf32>, vector<32x96xf32>, vector<16x96xf32> -> vector<16x96xf32>
    %c0_17 = arith.constant 0 : index
    %c0_18 = arith.constant 0 : index
    %27 = vector.load %arg6[%c0_17, %c0_18] : memref<13x128xf32, #tpu.memory_space<vmem>>, vector<1x96xf32>
    %28 = vector.broadcast %27 : vector<1x96xf32> to vector<16x96xf32>
    %29 = arith.addf %26, %28 : vector<16x96xf32>
    %30 = vector.extract_strided_slice %29 {offsets = [0, 0], sizes = [16, 32], strides = [1, 1]} : vector<16x96xf32> to vector<16x32xf32>
    %31 = vector.extract_strided_slice %29 {offsets = [0, 32], sizes = [16, 32], strides = [1, 1]} : vector<16x96xf32> to vector<16x32xf32>
    %32 = vector.extract_strided_slice %29 {offsets = [0, 64], sizes = [16, 32], strides = [1, 1]} : vector<16x96xf32> to vector<16x32xf32>
    %c64 = arith.constant 64 : index
    %c0_19 = arith.constant 0 : index
    %33 = vector.load %arg4[%c64, %c0_19] : memref<352x128xf32, #tpu.memory_space<vmem>>, vector<32x32xf32>
    %c2 = arith.constant 2 : index
    %c0_20 = arith.constant 0 : index
    %34 = vector.load %arg6[%c2, %c0_20] : memref<13x128xf32, #tpu.memory_space<vmem>>, vector<1x32xf32>
    %35 = vector.extract_strided_slice %30 {offsets = [0, 0], sizes = [16, 8], strides = [1, 1]} : vector<16x32xf32> to vector<16x8xf32>
    %36 = vector.extract_strided_slice %31 {offsets = [0, 0], sizes = [16, 8], strides = [1, 1]} : vector<16x32xf32> to vector<16x8xf32>
    %37 = vector.extract_strided_slice %32 {offsets = [0, 0], sizes = [16, 8], strides = [1, 1]} : vector<16x32xf32> to vector<16x8xf32>
    %cst_21 = arith.constant dense<0.000000e+00> : vector<16x16xf32>
    %38 = tpu.matmul %35, %36, %cst_21 {dimension_numbers = #tpu.dot_dimension_numbers<[1], [1], [0], [0], [0, 0, 1, 0], [], []>} : vector<16x8xf32>, vector<16x8xf32>, vector<16x16xf32> -> vector<16x16xf32>
    %cst_22 = arith.constant 0.353553385 : f32
    %39 = vector.broadcast %cst_22 : f32 to vector<16x16xf32>
    %40 = arith.mulf %38, %39 : vector<16x16xf32>
    %41 = arith.addf %40, %2 : vector<16x16xf32>
    %cst_23 = arith.constant dense<0xFF800000> : vector<16xf32>
    %42 = vector.multi_reduction <maximumf>, %41, %cst_23 [1] : vector<16x16xf32> to vector<16xf32>
    %43 = vector.shape_cast %42 : vector<16xf32> to vector<16x1xf32>
    %44 = vector.broadcast %43 : vector<16x1xf32> to vector<16x16xf32>
    %45 = arith.subf %41, %44 : vector<16x16xf32>
    %46 = math.exp %45 : vector<16x16xf32>
    %cst_24 = arith.constant dense<0.000000e+00> : vector<16xf32>
    %47 = vector.multi_reduction <add>, %46, %cst_24 [1] : vector<16x16xf32> to vector<16xf32>
    %48 = vector.shape_cast %47 : vector<16xf32> to vector<16x1xf32>
    %49 = tpu.reciprocal %48 {approx = true} : vector<16x1xf32> -> vector<16x1xf32>
    %50 = vector.broadcast %49 : vector<16x1xf32> to vector<16x16xf32>
    %51 = arith.mulf %46, %50 : vector<16x16xf32>
    %cst_25 = arith.constant dense<0.000000e+00> : vector<16x8xf32>
    %52 = tpu.matmul %51, %37, %cst_25 {dimension_numbers = #tpu.dot_dimension_numbers<[1], [0], [0], [1], [0, 0, 1, 1], [], []>} : vector<16x16xf32>, vector<16x8xf32>, vector<16x8xf32> -> vector<16x8xf32>
    %53 = vector.extract_strided_slice %30 {offsets = [0, 8], sizes = [16, 8], strides = [1, 1]} : vector<16x32xf32> to vector<16x8xf32>
    %54 = vector.extract_strided_slice %31 {offsets = [0, 8], sizes = [16, 8], strides = [1, 1]} : vector<16x32xf32> to vector<16x8xf32>
    %55 = vector.extract_strided_slice %32 {offsets = [0, 8], sizes = [16, 8], strides = [1, 1]} : vector<16x32xf32> to vector<16x8xf32>
    %cst_26 = arith.constant dense<0.000000e+00> : vector<16x16xf32>
    %56 = tpu.matmul %53, %54, %cst_26 {dimension_numbers = #tpu.dot_dimension_numbers<[1], [1], [0], [0], [0, 0, 1, 0], [], []>} : vector<16x8xf32>, vector<16x8xf32>, vector<16x16xf32> -> vector<16x16xf32>
    %cst_27 = arith.constant 0.353553385 : f32
    %57 = vector.broadcast %cst_27 : f32 to vector<16x16xf32>
    %58 = arith.mulf %56, %57 : vector<16x16xf32>
    %59 = arith.addf %58, %2 : vector<16x16xf32>
    %cst_28 = arith.constant dense<0xFF800000> : vector<16xf32>
    %60 = vector.multi_reduction <maximumf>, %59, %cst_28 [1] : vector<16x16xf32> to vector<16xf32>
    %61 = vector.shape_cast %60 : vector<16xf32> to vector<16x1xf32>
    %62 = vector.broadcast %61 : vector<16x1xf32> to vector<16x16xf32>
    %63 = arith.subf %59, %62 : vector<16x16xf32>
    %64 = math.exp %63 : vector<16x16xf32>
    %cst_29 = arith.constant dense<0.000000e+00> : vector<16xf32>
    %65 = vector.multi_reduction <add>, %64, %cst_29 [1] : vector<16x16xf32> to vector<16xf32>
    %66 = vector.shape_cast %65 : vector<16xf32> to vector<16x1xf32>
    %67 = tpu.reciprocal %66 {approx = true} : vector<16x1xf32> -> vector<16x1xf32>
    %68 = vector.broadcast %67 : vector<16x1xf32> to vector<16x16xf32>
    %69 = arith.mulf %64, %68 : vector<16x16xf32>
    %cst_30 = arith.constant dense<0.000000e+00> : vector<16x8xf32>
    %70 = tpu.matmul %69, %55, %cst_30 {dimension_numbers = #tpu.dot_dimension_numbers<[1], [0], [0], [1], [0, 0, 1, 1], [], []>} : vector<16x16xf32>, vector<16x8xf32>, vector<16x8xf32> -> vector<16x8xf32>
    %71 = vector.extract_strided_slice %30 {offsets = [0, 16], sizes = [16, 8], strides = [1, 1]} : vector<16x32xf32> to vector<16x8xf32>
    %72 = vector.extract_strided_slice %31 {offsets = [0, 16], sizes = [16, 8], strides = [1, 1]} : vector<16x32xf32> to vector<16x8xf32>
    %73 = vector.extract_strided_slice %32 {offsets = [0, 16], sizes = [16, 8], strides = [1, 1]} : vector<16x32xf32> to vector<16x8xf32>
    %cst_31 = arith.constant dense<0.000000e+00> : vector<16x16xf32>
    %74 = tpu.matmul %71, %72, %cst_31 {dimension_numbers = #tpu.dot_dimension_numbers<[1], [1], [0], [0], [0, 0, 1, 0], [], []>} : vector<16x8xf32>, vector<16x8xf32>, vector<16x16xf32> -> vector<16x16xf32>
    %cst_32 = arith.constant 0.353553385 : f32
    %75 = vector.broadcast %cst_32 : f32 to vector<16x16xf32>
    %76 = arith.mulf %74, %75 : vector<16x16xf32>
    %77 = arith.addf %76, %2 : vector<16x16xf32>
    %cst_33 = arith.constant dense<0xFF800000> : vector<16xf32>
    %78 = vector.multi_reduction <maximumf>, %77, %cst_33 [1] : vector<16x16xf32> to vector<16xf32>
    %79 = vector.shape_cast %78 : vector<16xf32> to vector<16x1xf32>
    %80 = vector.broadcast %79 : vector<16x1xf32> to vector<16x16xf32>
    %81 = arith.subf %77, %80 : vector<16x16xf32>
    %82 = math.exp %81 : vector<16x16xf32>
    %cst_34 = arith.constant dense<0.000000e+00> : vector<16xf32>
    %83 = vector.multi_reduction <add>, %82, %cst_34 [1] : vector<16x16xf32> to vector<16xf32>
    %84 = vector.shape_cast %83 : vector<16xf32> to vector<16x1xf32>
    %85 = tpu.reciprocal %84 {approx = true} : vector<16x1xf32> -> vector<16x1xf32>
    %86 = vector.broadcast %85 : vector<16x1xf32> to vector<16x16xf32>
    %87 = arith.mulf %82, %86 : vector<16x16xf32>
    %cst_35 = arith.constant dense<0.000000e+00> : vector<16x8xf32>
    %88 = tpu.matmul %87, %73, %cst_35 {dimension_numbers = #tpu.dot_dimension_numbers<[1], [0], [0], [1], [0, 0, 1, 1], [], []>} : vector<16x16xf32>, vector<16x8xf32>, vector<16x8xf32> -> vector<16x8xf32>
    %89 = vector.extract_strided_slice %30 {offsets = [0, 24], sizes = [16, 8], strides = [1, 1]} : vector<16x32xf32> to vector<16x8xf32>
    %90 = vector.extract_strided_slice %31 {offsets = [0, 24], sizes = [16, 8], strides = [1, 1]} : vector<16x32xf32> to vector<16x8xf32>
    %91 = vector.extract_strided_slice %32 {offsets = [0, 24], sizes = [16, 8], strides = [1, 1]} : vector<16x32xf32> to vector<16x8xf32>
    %cst_36 = arith.constant dense<0.000000e+00> : vector<16x16xf32>
    %92 = tpu.matmul %89, %90, %cst_36 {dimension_numbers = #tpu.dot_dimension_numbers<[1], [1], [0], [0], [0, 0, 1, 0], [], []>} : vector<16x8xf32>, vector<16x8xf32>, vector<16x16xf32> -> vector<16x16xf32>
    %cst_37 = arith.constant 0.353553385 : f32
    %93 = vector.broadcast %cst_37 : f32 to vector<16x16xf32>
    %94 = arith.mulf %92, %93 : vector<16x16xf32>
    %95 = arith.addf %94, %2 : vector<16x16xf32>
    %cst_38 = arith.constant dense<0xFF800000> : vector<16xf32>
    %96 = vector.multi_reduction <maximumf>, %95, %cst_38 [1] : vector<16x16xf32> to vector<16xf32>
    %97 = vector.shape_cast %96 : vector<16xf32> to vector<16x1xf32>
    %98 = vector.broadcast %97 : vector<16x1xf32> to vector<16x16xf32>
    %99 = arith.subf %95, %98 : vector<16x16xf32>
    %100 = math.exp %99 : vector<16x16xf32>
    %cst_39 = arith.constant dense<0.000000e+00> : vector<16xf32>
    %101 = vector.multi_reduction <add>, %100, %cst_39 [1] : vector<16x16xf32> to vector<16xf32>
    %102 = vector.shape_cast %101 : vector<16xf32> to vector<16x1xf32>
    %103 = tpu.reciprocal %102 {approx = true} : vector<16x1xf32> -> vector<16x1xf32>
    %104 = vector.broadcast %103 : vector<16x1xf32> to vector<16x16xf32>
    %105 = arith.mulf %100, %104 : vector<16x16xf32>
    %cst_40 = arith.constant dense<0.000000e+00> : vector<16x8xf32>
    %106 = tpu.matmul %105, %91, %cst_40 {dimension_numbers = #tpu.dot_dimension_numbers<[1], [0], [0], [1], [0, 0, 1, 1], [], []>} : vector<16x16xf32>, vector<16x8xf32>, vector<16x8xf32> -> vector<16x8xf32>
    %107 = tpu.concatenate %52, %70, %88, %106 in 1 : vector<16x8xf32>, vector<16x8xf32>, vector<16x8xf32>, vector<16x8xf32> -> vector<16x32xf32>
    %cst_41 = arith.constant dense<0.000000e+00> : vector<16x32xf32>
    %108 = tpu.matmul %107, %33, %cst_41 {dimension_numbers = #tpu.dot_dimension_numbers<[1], [0], [0], [1], [0, 0, 1, 1], [], []>} : vector<16x32xf32>, vector<32x32xf32>, vector<16x32xf32> -> vector<16x32xf32>
    %109 = vector.broadcast %34 : vector<1x32xf32> to vector<16x32xf32>
    %110 = arith.addf %108, %109 : vector<16x32xf32>
    %111 = arith.addf %0, %110 : vector<16x32xf32>
    %cst_42 = arith.constant dense<0.000000e+00> : vector<16xf32>
    %112 = vector.multi_reduction <add>, %111, %cst_42 [1] : vector<16x32xf32> to vector<16xf32>
    %113 = vector.shape_cast %112 : vector<16xf32> to vector<16x1xf32>
    %cst_43 = arith.constant 3.200000e+01 : f32
    %114 = vector.broadcast %cst_43 : f32 to vector<16x1xf32>
    %115 = arith.divf %113, %114 : vector<16x1xf32>
    %116 = vector.broadcast %115 : vector<16x1xf32> to vector<16x32xf32>
    %117 = arith.subf %111, %116 : vector<16x32xf32>
    %118 = arith.mulf %117, %117 : vector<16x32xf32>
    %cst_44 = arith.constant dense<0.000000e+00> : vector<16xf32>
    %119 = vector.multi_reduction <add>, %118, %cst_44 [1] : vector<16x32xf32> to vector<16xf32>
    %120 = vector.shape_cast %119 : vector<16xf32> to vector<16x1xf32>
    %cst_45 = arith.constant 3.200000e+01 : f32
    %121 = vector.broadcast %cst_45 : f32 to vector<16x1xf32>
    %122 = arith.divf %120, %121 : vector<16x1xf32>
    %cst_46 = arith.constant 9.99999974E-6 : f32
    %123 = vector.broadcast %cst_46 : f32 to vector<16x1xf32>
    %124 = arith.addf %122, %123 : vector<16x1xf32>
    %125 = math.rsqrt %124 : vector<16x1xf32>
    %126 = vector.broadcast %125 : vector<16x1xf32> to vector<16x32xf32>
    %127 = arith.mulf %117, %126 : vector<16x32xf32>
    %c32 = arith.constant 32 : index
    %c0_47 = arith.constant 0 : index
    %128 = vector.load %arg4[%c32, %c0_47] : memref<352x128xf32, #tpu.memory_space<vmem>>, vector<32x32xf32>
    %cst_48 = arith.constant dense<0.000000e+00> : vector<16x32xf32>
    %129 = tpu.matmul %127, %128, %cst_48 {dimension_numbers = #tpu.dot_dimension_numbers<[1], [0], [0], [1], [0, 0, 1, 1], [], []>} : vector<16x32xf32>, vector<32x32xf32>, vector<16x32xf32> -> vector<16x32xf32>
    %c1 = arith.constant 1 : index
    %c0_49 = arith.constant 0 : index
    %130 = vector.load %arg6[%c1, %c0_49] : memref<13x128xf32, #tpu.memory_space<vmem>>, vector<1x32xf32>
    %131 = vector.broadcast %130 : vector<1x32xf32> to vector<16x32xf32>
    %132 = arith.addf %129, %131 : vector<16x32xf32>
    %133 = vector.extract_strided_slice %8 {offsets = [0, 0], sizes = [16, 32], strides = [1, 1]} : vector<16x128xf32> to vector<16x32xf32>
    %134 = vector.extract_strided_slice %8 {offsets = [0, 32], sizes = [16, 32], strides = [1, 1]} : vector<16x128xf32> to vector<16x32xf32>
    %c96 = arith.constant 96 : index
    %c0_50 = arith.constant 0 : index
    %135 = vector.load %arg4[%c96, %c0_50] : memref<352x128xf32, #tpu.memory_space<vmem>>, vector<32x32xf32>
    %c3 = arith.constant 3 : index
    %c0_51 = arith.constant 0 : index
    %136 = vector.load %arg6[%c3, %c0_51] : memref<13x128xf32, #tpu.memory_space<vmem>>, vector<1x32xf32>
    %137 = vector.extract_strided_slice %132 {offsets = [0, 0], sizes = [16, 8], strides = [1, 1]} : vector<16x32xf32> to vector<16x8xf32>
    %138 = vector.extract_strided_slice %133 {offsets = [0, 0], sizes = [16, 8], strides = [1, 1]} : vector<16x32xf32> to vector<16x8xf32>
    %139 = vector.extract_strided_slice %134 {offsets = [0, 0], sizes = [16, 8], strides = [1, 1]} : vector<16x32xf32> to vector<16x8xf32>
    %cst_52 = arith.constant dense<0.000000e+00> : vector<16x16xf32>
    %140 = tpu.matmul %137, %138, %cst_52 {dimension_numbers = #tpu.dot_dimension_numbers<[1], [1], [0], [0], [0, 0, 1, 0], [], []>} : vector<16x8xf32>, vector<16x8xf32>, vector<16x16xf32> -> vector<16x16xf32>
    %cst_53 = arith.constant 0.353553385 : f32
    %141 = vector.broadcast %cst_53 : f32 to vector<16x16xf32>
    %142 = arith.mulf %140, %141 : vector<16x16xf32>
    %143 = arith.addf %142, %3 : vector<16x16xf32>
    %cst_54 = arith.constant dense<0xFF800000> : vector<16xf32>
    %144 = vector.multi_reduction <maximumf>, %143, %cst_54 [1] : vector<16x16xf32> to vector<16xf32>
    %145 = vector.shape_cast %144 : vector<16xf32> to vector<16x1xf32>
    %146 = vector.broadcast %145 : vector<16x1xf32> to vector<16x16xf32>
    %147 = arith.subf %143, %146 : vector<16x16xf32>
    %148 = math.exp %147 : vector<16x16xf32>
    %cst_55 = arith.constant dense<0.000000e+00> : vector<16xf32>
    %149 = vector.multi_reduction <add>, %148, %cst_55 [1] : vector<16x16xf32> to vector<16xf32>
    %150 = vector.shape_cast %149 : vector<16xf32> to vector<16x1xf32>
    %151 = tpu.reciprocal %150 {approx = true} : vector<16x1xf32> -> vector<16x1xf32>
    %152 = vector.broadcast %151 : vector<16x1xf32> to vector<16x16xf32>
    %153 = arith.mulf %148, %152 : vector<16x16xf32>
    %cst_56 = arith.constant dense<0.000000e+00> : vector<16x8xf32>
    %154 = tpu.matmul %153, %139, %cst_56 {dimension_numbers = #tpu.dot_dimension_numbers<[1], [0], [0], [1], [0, 0, 1, 1], [], []>} : vector<16x16xf32>, vector<16x8xf32>, vector<16x8xf32> -> vector<16x8xf32>
    %155 = vector.extract_strided_slice %132 {offsets = [0, 8], sizes = [16, 8], strides = [1, 1]} : vector<16x32xf32> to vector<16x8xf32>
    %156 = vector.extract_strided_slice %133 {offsets = [0, 8], sizes = [16, 8], strides = [1, 1]} : vector<16x32xf32> to vector<16x8xf32>
    %157 = vector.extract_strided_slice %134 {offsets = [0, 8], sizes = [16, 8], strides = [1, 1]} : vector<16x32xf32> to vector<16x8xf32>
    %cst_57 = arith.constant dense<0.000000e+00> : vector<16x16xf32>
    %158 = tpu.matmul %155, %156, %cst_57 {dimension_numbers = #tpu.dot_dimension_numbers<[1], [1], [0], [0], [0, 0, 1, 0], [], []>} : vector<16x8xf32>, vector<16x8xf32>, vector<16x16xf32> -> vector<16x16xf32>
    %cst_58 = arith.constant 0.353553385 : f32
    %159 = vector.broadcast %cst_58 : f32 to vector<16x16xf32>
    %160 = arith.mulf %158, %159 : vector<16x16xf32>
    %161 = arith.addf %160, %3 : vector<16x16xf32>
    %cst_59 = arith.constant dense<0xFF800000> : vector<16xf32>
    %162 = vector.multi_reduction <maximumf>, %161, %cst_59 [1] : vector<16x16xf32> to vector<16xf32>
    %163 = vector.shape_cast %162 : vector<16xf32> to vector<16x1xf32>
    %164 = vector.broadcast %163 : vector<16x1xf32> to vector<16x16xf32>
    %165 = arith.subf %161, %164 : vector<16x16xf32>
    %166 = math.exp %165 : vector<16x16xf32>
    %cst_60 = arith.constant dense<0.000000e+00> : vector<16xf32>
    %167 = vector.multi_reduction <add>, %166, %cst_60 [1] : vector<16x16xf32> to vector<16xf32>
    %168 = vector.shape_cast %167 : vector<16xf32> to vector<16x1xf32>
    %169 = tpu.reciprocal %168 {approx = true} : vector<16x1xf32> -> vector<16x1xf32>
    %170 = vector.broadcast %169 : vector<16x1xf32> to vector<16x16xf32>
    %171 = arith.mulf %166, %170 : vector<16x16xf32>
    %cst_61 = arith.constant dense<0.000000e+00> : vector<16x8xf32>
    %172 = tpu.matmul %171, %157, %cst_61 {dimension_numbers = #tpu.dot_dimension_numbers<[1], [0], [0], [1], [0, 0, 1, 1], [], []>} : vector<16x16xf32>, vector<16x8xf32>, vector<16x8xf32> -> vector<16x8xf32>
    %173 = vector.extract_strided_slice %132 {offsets = [0, 16], sizes = [16, 8], strides = [1, 1]} : vector<16x32xf32> to vector<16x8xf32>
    %174 = vector.extract_strided_slice %133 {offsets = [0, 16], sizes = [16, 8], strides = [1, 1]} : vector<16x32xf32> to vector<16x8xf32>
    %175 = vector.extract_strided_slice %134 {offsets = [0, 16], sizes = [16, 8], strides = [1, 1]} : vector<16x32xf32> to vector<16x8xf32>
    %cst_62 = arith.constant dense<0.000000e+00> : vector<16x16xf32>
    %176 = tpu.matmul %173, %174, %cst_62 {dimension_numbers = #tpu.dot_dimension_numbers<[1], [1], [0], [0], [0, 0, 1, 0], [], []>} : vector<16x8xf32>, vector<16x8xf32>, vector<16x16xf32> -> vector<16x16xf32>
    %cst_63 = arith.constant 0.353553385 : f32
    %177 = vector.broadcast %cst_63 : f32 to vector<16x16xf32>
    %178 = arith.mulf %176, %177 : vector<16x16xf32>
    %179 = arith.addf %178, %3 : vector<16x16xf32>
    %cst_64 = arith.constant dense<0xFF800000> : vector<16xf32>
    %180 = vector.multi_reduction <maximumf>, %179, %cst_64 [1] : vector<16x16xf32> to vector<16xf32>
    %181 = vector.shape_cast %180 : vector<16xf32> to vector<16x1xf32>
    %182 = vector.broadcast %181 : vector<16x1xf32> to vector<16x16xf32>
    %183 = arith.subf %179, %182 : vector<16x16xf32>
    %184 = math.exp %183 : vector<16x16xf32>
    %cst_65 = arith.constant dense<0.000000e+00> : vector<16xf32>
    %185 = vector.multi_reduction <add>, %184, %cst_65 [1] : vector<16x16xf32> to vector<16xf32>
    %186 = vector.shape_cast %185 : vector<16xf32> to vector<16x1xf32>
    %187 = tpu.reciprocal %186 {approx = true} : vector<16x1xf32> -> vector<16x1xf32>
    %188 = vector.broadcast %187 : vector<16x1xf32> to vector<16x16xf32>
    %189 = arith.mulf %184, %188 : vector<16x16xf32>
    %cst_66 = arith.constant dense<0.000000e+00> : vector<16x8xf32>
    %190 = tpu.matmul %189, %175, %cst_66 {dimension_numbers = #tpu.dot_dimension_numbers<[1], [0], [0], [1], [0, 0, 1, 1], [], []>} : vector<16x16xf32>, vector<16x8xf32>, vector<16x8xf32> -> vector<16x8xf32>
    %191 = vector.extract_strided_slice %132 {offsets = [0, 24], sizes = [16, 8], strides = [1, 1]} : vector<16x32xf32> to vector<16x8xf32>
    %192 = vector.extract_strided_slice %133 {offsets = [0, 24], sizes = [16, 8], strides = [1, 1]} : vector<16x32xf32> to vector<16x8xf32>
    %193 = vector.extract_strided_slice %134 {offsets = [0, 24], sizes = [16, 8], strides = [1, 1]} : vector<16x32xf32> to vector<16x8xf32>
    %cst_67 = arith.constant dense<0.000000e+00> : vector<16x16xf32>
    %194 = tpu.matmul %191, %192, %cst_67 {dimension_numbers = #tpu.dot_dimension_numbers<[1], [1], [0], [0], [0, 0, 1, 0], [], []>} : vector<16x8xf32>, vector<16x8xf32>, vector<16x16xf32> -> vector<16x16xf32>
    %cst_68 = arith.constant 0.353553385 : f32
    %195 = vector.broadcast %cst_68 : f32 to vector<16x16xf32>
    %196 = arith.mulf %194, %195 : vector<16x16xf32>
    %197 = arith.addf %196, %3 : vector<16x16xf32>
    %cst_69 = arith.constant dense<0xFF800000> : vector<16xf32>
    %198 = vector.multi_reduction <maximumf>, %197, %cst_69 [1] : vector<16x16xf32> to vector<16xf32>
    %199 = vector.shape_cast %198 : vector<16xf32> to vector<16x1xf32>
    %200 = vector.broadcast %199 : vector<16x1xf32> to vector<16x16xf32>
    %201 = arith.subf %197, %200 : vector<16x16xf32>
    %202 = math.exp %201 : vector<16x16xf32>
    %cst_70 = arith.constant dense<0.000000e+00> : vector<16xf32>
    %203 = vector.multi_reduction <add>, %202, %cst_70 [1] : vector<16x16xf32> to vector<16xf32>
    %204 = vector.shape_cast %203 : vector<16xf32> to vector<16x1xf32>
    %205 = tpu.reciprocal %204 {approx = true} : vector<16x1xf32> -> vector<16x1xf32>
    %206 = vector.broadcast %205 : vector<16x1xf32> to vector<16x16xf32>
    %207 = arith.mulf %202, %206 : vector<16x16xf32>
    %cst_71 = arith.constant dense<0.000000e+00> : vector<16x8xf32>
    %208 = tpu.matmul %207, %193, %cst_71 {dimension_numbers = #tpu.dot_dimension_numbers<[1], [0], [0], [1], [0, 0, 1, 1], [], []>} : vector<16x16xf32>, vector<16x8xf32>, vector<16x8xf32> -> vector<16x8xf32>
    %209 = tpu.concatenate %154, %172, %190, %208 in 1 : vector<16x8xf32>, vector<16x8xf32>, vector<16x8xf32>, vector<16x8xf32> -> vector<16x32xf32>
    %cst_72 = arith.constant dense<0.000000e+00> : vector<16x32xf32>
    %210 = tpu.matmul %209, %135, %cst_72 {dimension_numbers = #tpu.dot_dimension_numbers<[1], [0], [0], [1], [0, 0, 1, 1], [], []>} : vector<16x32xf32>, vector<32x32xf32>, vector<16x32xf32> -> vector<16x32xf32>
    %211 = vector.broadcast %136 : vector<1x32xf32> to vector<16x32xf32>
    %212 = arith.addf %210, %211 : vector<16x32xf32>
    %213 = arith.addf %111, %212 : vector<16x32xf32>
    %cst_73 = arith.constant dense<0.000000e+00> : vector<16xf32>
    %214 = vector.multi_reduction <add>, %213, %cst_73 [1] : vector<16x32xf32> to vector<16xf32>
    %215 = vector.shape_cast %214 : vector<16xf32> to vector<16x1xf32>
    %cst_74 = arith.constant 3.200000e+01 : f32
    %216 = vector.broadcast %cst_74 : f32 to vector<16x1xf32>
    %217 = arith.divf %215, %216 : vector<16x1xf32>
    %218 = vector.broadcast %217 : vector<16x1xf32> to vector<16x32xf32>
    %219 = arith.subf %213, %218 : vector<16x32xf32>
    %220 = arith.mulf %219, %219 : vector<16x32xf32>
    %cst_75 = arith.constant dense<0.000000e+00> : vector<16xf32>
    %221 = vector.multi_reduction <add>, %220, %cst_75 [1] : vector<16x32xf32> to vector<16xf32>
    %222 = vector.shape_cast %221 : vector<16xf32> to vector<16x1xf32>
    %cst_76 = arith.constant 3.200000e+01 : f32
    %223 = vector.broadcast %cst_76 : f32 to vector<16x1xf32>
    %224 = arith.divf %222, %223 : vector<16x1xf32>
    %cst_77 = arith.constant 9.99999974E-6 : f32
    %225 = vector.broadcast %cst_77 : f32 to vector<16x1xf32>
    %226 = arith.addf %224, %225 : vector<16x1xf32>
    %227 = math.rsqrt %226 : vector<16x1xf32>
    %228 = vector.broadcast %227 : vector<16x1xf32> to vector<16x32xf32>
    %229 = arith.mulf %219, %228 : vector<16x32xf32>
    %c128 = arith.constant 128 : index
    %c0_78 = arith.constant 0 : index
    %230 = vector.load %arg4[%c128, %c0_78] : memref<352x128xf32, #tpu.memory_space<vmem>>, vector<32x64xf32>
    %cst_79 = arith.constant dense<0.000000e+00> : vector<16x64xf32>
    %231 = tpu.matmul %229, %230, %cst_79 {dimension_numbers = #tpu.dot_dimension_numbers<[1], [0], [0], [1], [0, 0, 1, 1], [], []>} : vector<16x32xf32>, vector<32x64xf32>, vector<16x64xf32> -> vector<16x64xf32>
    %c4 = arith.constant 4 : index
    %c0_80 = arith.constant 0 : index
    %232 = vector.load %arg6[%c4, %c0_80] : memref<13x128xf32, #tpu.memory_space<vmem>>, vector<1x64xf32>
    %233 = vector.broadcast %232 : vector<1x64xf32> to vector<16x64xf32>
    %234 = arith.addf %231, %233 : vector<16x64xf32>
    %cst_81 = arith.constant 0.000000e+00 : f32
    %235 = vector.broadcast %cst_81 : f32 to vector<16x64xf32>
    %236 = arith.maximumf %234, %235 : vector<16x64xf32>
    %c0_82 = arith.constant 0 : index
    %c0_83 = arith.constant 0 : index
    %237 = vector.load %arg5[%c0_82, %c0_83] : memref<128x128xf32, #tpu.memory_space<vmem>>, vector<64x32xf32>
    %cst_84 = arith.constant dense<0.000000e+00> : vector<16x32xf32>
    %238 = tpu.matmul %236, %237, %cst_84 {dimension_numbers = #tpu.dot_dimension_numbers<[1], [0], [0], [1], [0, 0, 1, 1], [], []>} : vector<16x64xf32>, vector<64x32xf32>, vector<16x32xf32> -> vector<16x32xf32>
    %c5 = arith.constant 5 : index
    %c0_85 = arith.constant 0 : index
    %239 = vector.load %arg6[%c5, %c0_85] : memref<13x128xf32, #tpu.memory_space<vmem>>, vector<1x32xf32>
    %240 = vector.broadcast %239 : vector<1x32xf32> to vector<16x32xf32>
    %241 = arith.addf %238, %240 : vector<16x32xf32>
    %242 = arith.addf %213, %241 : vector<16x32xf32>
    %cst_86 = arith.constant dense<0.000000e+00> : vector<16xf32>
    %243 = vector.multi_reduction <add>, %242, %cst_86 [1] : vector<16x32xf32> to vector<16xf32>
    %244 = vector.shape_cast %243 : vector<16xf32> to vector<16x1xf32>
    %cst_87 = arith.constant 3.200000e+01 : f32
    %245 = vector.broadcast %cst_87 : f32 to vector<16x1xf32>
    %246 = arith.divf %244, %245 : vector<16x1xf32>
    %247 = vector.broadcast %246 : vector<16x1xf32> to vector<16x32xf32>
    %248 = arith.subf %242, %247 : vector<16x32xf32>
    %249 = arith.mulf %248, %248 : vector<16x32xf32>
    %cst_88 = arith.constant dense<0.000000e+00> : vector<16xf32>
    %250 = vector.multi_reduction <add>, %249, %cst_88 [1] : vector<16x32xf32> to vector<16xf32>
    %251 = vector.shape_cast %250 : vector<16xf32> to vector<16x1xf32>
    %cst_89 = arith.constant 3.200000e+01 : f32
    %252 = vector.broadcast %cst_89 : f32 to vector<16x1xf32>
    %253 = arith.divf %251, %252 : vector<16x1xf32>
    %cst_90 = arith.constant 9.99999974E-6 : f32
    %254 = vector.broadcast %cst_90 : f32 to vector<16x1xf32>
    %255 = arith.addf %253, %254 : vector<16x1xf32>
    %256 = math.rsqrt %255 : vector<16x1xf32>
    %257 = vector.broadcast %256 : vector<16x1xf32> to vector<16x32xf32>
    %258 = arith.mulf %248, %257 : vector<16x32xf32>
    %c160 = arith.constant 160 : index
    %c0_91 = arith.constant 0 : index
    %259 = vector.load %arg4[%c160, %c0_91] : memref<352x128xf32, #tpu.memory_space<vmem>>, vector<32x96xf32>
    %cst_92 = arith.constant dense<0.000000e+00> : vector<16x96xf32>
    %260 = tpu.matmul %258, %259, %cst_92 {dimension_numbers = #tpu.dot_dimension_numbers<[1], [0], [0], [1], [0, 0, 1, 1], [], []>} : vector<16x32xf32>, vector<32x96xf32>, vector<16x96xf32> -> vector<16x96xf32>
    %c6 = arith.constant 6 : index
    %c0_93 = arith.constant 0 : index
    %261 = vector.load %arg6[%c6, %c0_93] : memref<13x128xf32, #tpu.memory_space<vmem>>, vector<1x96xf32>
    %262 = vector.broadcast %261 : vector<1x96xf32> to vector<16x96xf32>
    %263 = arith.addf %260, %262 : vector<16x96xf32>
    %264 = vector.extract_strided_slice %263 {offsets = [0, 0], sizes = [16, 32], strides = [1, 1]} : vector<16x96xf32> to vector<16x32xf32>
    %265 = vector.extract_strided_slice %263 {offsets = [0, 32], sizes = [16, 32], strides = [1, 1]} : vector<16x96xf32> to vector<16x32xf32>
    %266 = vector.extract_strided_slice %263 {offsets = [0, 64], sizes = [16, 32], strides = [1, 1]} : vector<16x96xf32> to vector<16x32xf32>
    %c224 = arith.constant 224 : index
    %c0_94 = arith.constant 0 : index
    %267 = vector.load %arg4[%c224, %c0_94] : memref<352x128xf32, #tpu.memory_space<vmem>>, vector<32x32xf32>
    %c8 = arith.constant 8 : index
    %c0_95 = arith.constant 0 : index
    %268 = vector.load %arg6[%c8, %c0_95] : memref<13x128xf32, #tpu.memory_space<vmem>>, vector<1x32xf32>
    %269 = vector.extract_strided_slice %264 {offsets = [0, 0], sizes = [16, 8], strides = [1, 1]} : vector<16x32xf32> to vector<16x8xf32>
    %270 = vector.extract_strided_slice %265 {offsets = [0, 0], sizes = [16, 8], strides = [1, 1]} : vector<16x32xf32> to vector<16x8xf32>
    %271 = vector.extract_strided_slice %266 {offsets = [0, 0], sizes = [16, 8], strides = [1, 1]} : vector<16x32xf32> to vector<16x8xf32>
    %cst_96 = arith.constant dense<0.000000e+00> : vector<16x16xf32>
    %272 = tpu.matmul %269, %270, %cst_96 {dimension_numbers = #tpu.dot_dimension_numbers<[1], [1], [0], [0], [0, 0, 1, 0], [], []>} : vector<16x8xf32>, vector<16x8xf32>, vector<16x16xf32> -> vector<16x16xf32>
    %cst_97 = arith.constant 0.353553385 : f32
    %273 = vector.broadcast %cst_97 : f32 to vector<16x16xf32>
    %274 = arith.mulf %272, %273 : vector<16x16xf32>
    %275 = arith.addf %274, %2 : vector<16x16xf32>
    %cst_98 = arith.constant dense<0xFF800000> : vector<16xf32>
    %276 = vector.multi_reduction <maximumf>, %275, %cst_98 [1] : vector<16x16xf32> to vector<16xf32>
    %277 = vector.shape_cast %276 : vector<16xf32> to vector<16x1xf32>
    %278 = vector.broadcast %277 : vector<16x1xf32> to vector<16x16xf32>
    %279 = arith.subf %275, %278 : vector<16x16xf32>
    %280 = math.exp %279 : vector<16x16xf32>
    %cst_99 = arith.constant dense<0.000000e+00> : vector<16xf32>
    %281 = vector.multi_reduction <add>, %280, %cst_99 [1] : vector<16x16xf32> to vector<16xf32>
    %282 = vector.shape_cast %281 : vector<16xf32> to vector<16x1xf32>
    %283 = tpu.reciprocal %282 {approx = true} : vector<16x1xf32> -> vector<16x1xf32>
    %284 = vector.broadcast %283 : vector<16x1xf32> to vector<16x16xf32>
    %285 = arith.mulf %280, %284 : vector<16x16xf32>
    %cst_100 = arith.constant dense<0.000000e+00> : vector<16x8xf32>
    %286 = tpu.matmul %285, %271, %cst_100 {dimension_numbers = #tpu.dot_dimension_numbers<[1], [0], [0], [1], [0, 0, 1, 1], [], []>} : vector<16x16xf32>, vector<16x8xf32>, vector<16x8xf32> -> vector<16x8xf32>
    %287 = vector.extract_strided_slice %264 {offsets = [0, 8], sizes = [16, 8], strides = [1, 1]} : vector<16x32xf32> to vector<16x8xf32>
    %288 = vector.extract_strided_slice %265 {offsets = [0, 8], sizes = [16, 8], strides = [1, 1]} : vector<16x32xf32> to vector<16x8xf32>
    %289 = vector.extract_strided_slice %266 {offsets = [0, 8], sizes = [16, 8], strides = [1, 1]} : vector<16x32xf32> to vector<16x8xf32>
    %cst_101 = arith.constant dense<0.000000e+00> : vector<16x16xf32>
    %290 = tpu.matmul %287, %288, %cst_101 {dimension_numbers = #tpu.dot_dimension_numbers<[1], [1], [0], [0], [0, 0, 1, 0], [], []>} : vector<16x8xf32>, vector<16x8xf32>, vector<16x16xf32> -> vector<16x16xf32>
    %cst_102 = arith.constant 0.353553385 : f32
    %291 = vector.broadcast %cst_102 : f32 to vector<16x16xf32>
    %292 = arith.mulf %290, %291 : vector<16x16xf32>
    %293 = arith.addf %292, %2 : vector<16x16xf32>
    %cst_103 = arith.constant dense<0xFF800000> : vector<16xf32>
    %294 = vector.multi_reduction <maximumf>, %293, %cst_103 [1] : vector<16x16xf32> to vector<16xf32>
    %295 = vector.shape_cast %294 : vector<16xf32> to vector<16x1xf32>
    %296 = vector.broadcast %295 : vector<16x1xf32> to vector<16x16xf32>
    %297 = arith.subf %293, %296 : vector<16x16xf32>
    %298 = math.exp %297 : vector<16x16xf32>
    %cst_104 = arith.constant dense<0.000000e+00> : vector<16xf32>
    %299 = vector.multi_reduction <add>, %298, %cst_104 [1] : vector<16x16xf32> to vector<16xf32>
    %300 = vector.shape_cast %299 : vector<16xf32> to vector<16x1xf32>
    %301 = tpu.reciprocal %300 {approx = true} : vector<16x1xf32> -> vector<16x1xf32>
    %302 = vector.broadcast %301 : vector<16x1xf32> to vector<16x16xf32>
    %303 = arith.mulf %298, %302 : vector<16x16xf32>
    %cst_105 = arith.constant dense<0.000000e+00> : vector<16x8xf32>
    %304 = tpu.matmul %303, %289, %cst_105 {dimension_numbers = #tpu.dot_dimension_numbers<[1], [0], [0], [1], [0, 0, 1, 1], [], []>} : vector<16x16xf32>, vector<16x8xf32>, vector<16x8xf32> -> vector<16x8xf32>
    %305 = vector.extract_strided_slice %264 {offsets = [0, 16], sizes = [16, 8], strides = [1, 1]} : vector<16x32xf32> to vector<16x8xf32>
    %306 = vector.extract_strided_slice %265 {offsets = [0, 16], sizes = [16, 8], strides = [1, 1]} : vector<16x32xf32> to vector<16x8xf32>
    %307 = vector.extract_strided_slice %266 {offsets = [0, 16], sizes = [16, 8], strides = [1, 1]} : vector<16x32xf32> to vector<16x8xf32>
    %cst_106 = arith.constant dense<0.000000e+00> : vector<16x16xf32>
    %308 = tpu.matmul %305, %306, %cst_106 {dimension_numbers = #tpu.dot_dimension_numbers<[1], [1], [0], [0], [0, 0, 1, 0], [], []>} : vector<16x8xf32>, vector<16x8xf32>, vector<16x16xf32> -> vector<16x16xf32>
    %cst_107 = arith.constant 0.353553385 : f32
    %309 = vector.broadcast %cst_107 : f32 to vector<16x16xf32>
    %310 = arith.mulf %308, %309 : vector<16x16xf32>
    %311 = arith.addf %310, %2 : vector<16x16xf32>
    %cst_108 = arith.constant dense<0xFF800000> : vector<16xf32>
    %312 = vector.multi_reduction <maximumf>, %311, %cst_108 [1] : vector<16x16xf32> to vector<16xf32>
    %313 = vector.shape_cast %312 : vector<16xf32> to vector<16x1xf32>
    %314 = vector.broadcast %313 : vector<16x1xf32> to vector<16x16xf32>
    %315 = arith.subf %311, %314 : vector<16x16xf32>
    %316 = math.exp %315 : vector<16x16xf32>
    %cst_109 = arith.constant dense<0.000000e+00> : vector<16xf32>
    %317 = vector.multi_reduction <add>, %316, %cst_109 [1] : vector<16x16xf32> to vector<16xf32>
    %318 = vector.shape_cast %317 : vector<16xf32> to vector<16x1xf32>
    %319 = tpu.reciprocal %318 {approx = true} : vector<16x1xf32> -> vector<16x1xf32>
    %320 = vector.broadcast %319 : vector<16x1xf32> to vector<16x16xf32>
    %321 = arith.mulf %316, %320 : vector<16x16xf32>
    %cst_110 = arith.constant dense<0.000000e+00> : vector<16x8xf32>
    %322 = tpu.matmul %321, %307, %cst_110 {dimension_numbers = #tpu.dot_dimension_numbers<[1], [0], [0], [1], [0, 0, 1, 1], [], []>} : vector<16x16xf32>, vector<16x8xf32>, vector<16x8xf32> -> vector<16x8xf32>
    %323 = vector.extract_strided_slice %264 {offsets = [0, 24], sizes = [16, 8], strides = [1, 1]} : vector<16x32xf32> to vector<16x8xf32>
    %324 = vector.extract_strided_slice %265 {offsets = [0, 24], sizes = [16, 8], strides = [1, 1]} : vector<16x32xf32> to vector<16x8xf32>
    %325 = vector.extract_strided_slice %266 {offsets = [0, 24], sizes = [16, 8], strides = [1, 1]} : vector<16x32xf32> to vector<16x8xf32>
    %cst_111 = arith.constant dense<0.000000e+00> : vector<16x16xf32>
    %326 = tpu.matmul %323, %324, %cst_111 {dimension_numbers = #tpu.dot_dimension_numbers<[1], [1], [0], [0], [0, 0, 1, 0], [], []>} : vector<16x8xf32>, vector<16x8xf32>, vector<16x16xf32> -> vector<16x16xf32>
    %cst_112 = arith.constant 0.353553385 : f32
    %327 = vector.broadcast %cst_112 : f32 to vector<16x16xf32>
    %328 = arith.mulf %326, %327 : vector<16x16xf32>
    %329 = arith.addf %328, %2 : vector<16x16xf32>
    %cst_113 = arith.constant dense<0xFF800000> : vector<16xf32>
    %330 = vector.multi_reduction <maximumf>, %329, %cst_113 [1] : vector<16x16xf32> to vector<16xf32>
    %331 = vector.shape_cast %330 : vector<16xf32> to vector<16x1xf32>
    %332 = vector.broadcast %331 : vector<16x1xf32> to vector<16x16xf32>
    %333 = arith.subf %329, %332 : vector<16x16xf32>
    %334 = math.exp %333 : vector<16x16xf32>
    %cst_114 = arith.constant dense<0.000000e+00> : vector<16xf32>
    %335 = vector.multi_reduction <add>, %334, %cst_114 [1] : vector<16x16xf32> to vector<16xf32>
    %336 = vector.shape_cast %335 : vector<16xf32> to vector<16x1xf32>
    %337 = tpu.reciprocal %336 {approx = true} : vector<16x1xf32> -> vector<16x1xf32>
    %338 = vector.broadcast %337 : vector<16x1xf32> to vector<16x16xf32>
    %339 = arith.mulf %334, %338 : vector<16x16xf32>
    %cst_115 = arith.constant dense<0.000000e+00> : vector<16x8xf32>
    %340 = tpu.matmul %339, %325, %cst_115 {dimension_numbers = #tpu.dot_dimension_numbers<[1], [0], [0], [1], [0, 0, 1, 1], [], []>} : vector<16x16xf32>, vector<16x8xf32>, vector<16x8xf32> -> vector<16x8xf32>
    %341 = tpu.concatenate %286, %304, %322, %340 in 1 : vector<16x8xf32>, vector<16x8xf32>, vector<16x8xf32>, vector<16x8xf32> -> vector<16x32xf32>
    %cst_116 = arith.constant dense<0.000000e+00> : vector<16x32xf32>
    %342 = tpu.matmul %341, %267, %cst_116 {dimension_numbers = #tpu.dot_dimension_numbers<[1], [0], [0], [1], [0, 0, 1, 1], [], []>} : vector<16x32xf32>, vector<32x32xf32>, vector<16x32xf32> -> vector<16x32xf32>
    %343 = vector.broadcast %268 : vector<1x32xf32> to vector<16x32xf32>
    %344 = arith.addf %342, %343 : vector<16x32xf32>
    %345 = arith.addf %242, %344 : vector<16x32xf32>
    %cst_117 = arith.constant dense<0.000000e+00> : vector<16xf32>
    %346 = vector.multi_reduction <add>, %345, %cst_117 [1] : vector<16x32xf32> to vector<16xf32>
    %347 = vector.shape_cast %346 : vector<16xf32> to vector<16x1xf32>
    %cst_118 = arith.constant 3.200000e+01 : f32
    %348 = vector.broadcast %cst_118 : f32 to vector<16x1xf32>
    %349 = arith.divf %347, %348 : vector<16x1xf32>
    %350 = vector.broadcast %349 : vector<16x1xf32> to vector<16x32xf32>
    %351 = arith.subf %345, %350 : vector<16x32xf32>
    %352 = arith.mulf %351, %351 : vector<16x32xf32>
    %cst_119 = arith.constant dense<0.000000e+00> : vector<16xf32>
    %353 = vector.multi_reduction <add>, %352, %cst_119 [1] : vector<16x32xf32> to vector<16xf32>
    %354 = vector.shape_cast %353 : vector<16xf32> to vector<16x1xf32>
    %cst_120 = arith.constant 3.200000e+01 : f32
    %355 = vector.broadcast %cst_120 : f32 to vector<16x1xf32>
    %356 = arith.divf %354, %355 : vector<16x1xf32>
    %cst_121 = arith.constant 9.99999974E-6 : f32
    %357 = vector.broadcast %cst_121 : f32 to vector<16x1xf32>
    %358 = arith.addf %356, %357 : vector<16x1xf32>
    %359 = math.rsqrt %358 : vector<16x1xf32>
    %360 = vector.broadcast %359 : vector<16x1xf32> to vector<16x32xf32>
    %361 = arith.mulf %351, %360 : vector<16x32xf32>
    %c192 = arith.constant 192 : index
    %c0_122 = arith.constant 0 : index
    %362 = vector.load %arg4[%c192, %c0_122] : memref<352x128xf32, #tpu.memory_space<vmem>>, vector<32x32xf32>
    %cst_123 = arith.constant dense<0.000000e+00> : vector<16x32xf32>
    %363 = tpu.matmul %361, %362, %cst_123 {dimension_numbers = #tpu.dot_dimension_numbers<[1], [0], [0], [1], [0, 0, 1, 1], [], []>} : vector<16x32xf32>, vector<32x32xf32>, vector<16x32xf32> -> vector<16x32xf32>
    %c7 = arith.constant 7 : index
    %c0_124 = arith.constant 0 : index
    %364 = vector.load %arg6[%c7, %c0_124] : memref<13x128xf32, #tpu.memory_space<vmem>>, vector<1x32xf32>
    %365 = vector.broadcast %364 : vector<1x32xf32> to vector<16x32xf32>
    %366 = arith.addf %363, %365 : vector<16x32xf32>
    %367 = vector.extract_strided_slice %8 {offsets = [0, 64], sizes = [16, 32], strides = [1, 1]} : vector<16x128xf32> to vector<16x32xf32>
    %368 = vector.extract_strided_slice %8 {offsets = [0, 96], sizes = [16, 32], strides = [1, 1]} : vector<16x128xf32> to vector<16x32xf32>
    %c256 = arith.constant 256 : index
    %c0_125 = arith.constant 0 : index
    %369 = vector.load %arg4[%c256, %c0_125] : memref<352x128xf32, #tpu.memory_space<vmem>>, vector<32x32xf32>
    %c9 = arith.constant 9 : index
    %c0_126 = arith.constant 0 : index
    %370 = vector.load %arg6[%c9, %c0_126] : memref<13x128xf32, #tpu.memory_space<vmem>>, vector<1x32xf32>
    %371 = vector.extract_strided_slice %366 {offsets = [0, 0], sizes = [16, 8], strides = [1, 1]} : vector<16x32xf32> to vector<16x8xf32>
    %372 = vector.extract_strided_slice %367 {offsets = [0, 0], sizes = [16, 8], strides = [1, 1]} : vector<16x32xf32> to vector<16x8xf32>
    %373 = vector.extract_strided_slice %368 {offsets = [0, 0], sizes = [16, 8], strides = [1, 1]} : vector<16x32xf32> to vector<16x8xf32>
    %cst_127 = arith.constant dense<0.000000e+00> : vector<16x16xf32>
    %374 = tpu.matmul %371, %372, %cst_127 {dimension_numbers = #tpu.dot_dimension_numbers<[1], [1], [0], [0], [0, 0, 1, 0], [], []>} : vector<16x8xf32>, vector<16x8xf32>, vector<16x16xf32> -> vector<16x16xf32>
    %cst_128 = arith.constant 0.353553385 : f32
    %375 = vector.broadcast %cst_128 : f32 to vector<16x16xf32>
    %376 = arith.mulf %374, %375 : vector<16x16xf32>
    %377 = arith.addf %376, %3 : vector<16x16xf32>
    %cst_129 = arith.constant dense<0xFF800000> : vector<16xf32>
    %378 = vector.multi_reduction <maximumf>, %377, %cst_129 [1] : vector<16x16xf32> to vector<16xf32>
    %379 = vector.shape_cast %378 : vector<16xf32> to vector<16x1xf32>
    %380 = vector.broadcast %379 : vector<16x1xf32> to vector<16x16xf32>
    %381 = arith.subf %377, %380 : vector<16x16xf32>
    %382 = math.exp %381 : vector<16x16xf32>
    %cst_130 = arith.constant dense<0.000000e+00> : vector<16xf32>
    %383 = vector.multi_reduction <add>, %382, %cst_130 [1] : vector<16x16xf32> to vector<16xf32>
    %384 = vector.shape_cast %383 : vector<16xf32> to vector<16x1xf32>
    %385 = tpu.reciprocal %384 {approx = true} : vector<16x1xf32> -> vector<16x1xf32>
    %386 = vector.broadcast %385 : vector<16x1xf32> to vector<16x16xf32>
    %387 = arith.mulf %382, %386 : vector<16x16xf32>
    %cst_131 = arith.constant dense<0.000000e+00> : vector<16x8xf32>
    %388 = tpu.matmul %387, %373, %cst_131 {dimension_numbers = #tpu.dot_dimension_numbers<[1], [0], [0], [1], [0, 0, 1, 1], [], []>} : vector<16x16xf32>, vector<16x8xf32>, vector<16x8xf32> -> vector<16x8xf32>
    %389 = vector.extract_strided_slice %366 {offsets = [0, 8], sizes = [16, 8], strides = [1, 1]} : vector<16x32xf32> to vector<16x8xf32>
    %390 = vector.extract_strided_slice %367 {offsets = [0, 8], sizes = [16, 8], strides = [1, 1]} : vector<16x32xf32> to vector<16x8xf32>
    %391 = vector.extract_strided_slice %368 {offsets = [0, 8], sizes = [16, 8], strides = [1, 1]} : vector<16x32xf32> to vector<16x8xf32>
    %cst_132 = arith.constant dense<0.000000e+00> : vector<16x16xf32>
    %392 = tpu.matmul %389, %390, %cst_132 {dimension_numbers = #tpu.dot_dimension_numbers<[1], [1], [0], [0], [0, 0, 1, 0], [], []>} : vector<16x8xf32>, vector<16x8xf32>, vector<16x16xf32> -> vector<16x16xf32>
    %cst_133 = arith.constant 0.353553385 : f32
    %393 = vector.broadcast %cst_133 : f32 to vector<16x16xf32>
    %394 = arith.mulf %392, %393 : vector<16x16xf32>
    %395 = arith.addf %394, %3 : vector<16x16xf32>
    %cst_134 = arith.constant dense<0xFF800000> : vector<16xf32>
    %396 = vector.multi_reduction <maximumf>, %395, %cst_134 [1] : vector<16x16xf32> to vector<16xf32>
    %397 = vector.shape_cast %396 : vector<16xf32> to vector<16x1xf32>
    %398 = vector.broadcast %397 : vector<16x1xf32> to vector<16x16xf32>
    %399 = arith.subf %395, %398 : vector<16x16xf32>
    %400 = math.exp %399 : vector<16x16xf32>
    %cst_135 = arith.constant dense<0.000000e+00> : vector<16xf32>
    %401 = vector.multi_reduction <add>, %400, %cst_135 [1] : vector<16x16xf32> to vector<16xf32>
    %402 = vector.shape_cast %401 : vector<16xf32> to vector<16x1xf32>
    %403 = tpu.reciprocal %402 {approx = true} : vector<16x1xf32> -> vector<16x1xf32>
    %404 = vector.broadcast %403 : vector<16x1xf32> to vector<16x16xf32>
    %405 = arith.mulf %400, %404 : vector<16x16xf32>
    %cst_136 = arith.constant dense<0.000000e+00> : vector<16x8xf32>
    %406 = tpu.matmul %405, %391, %cst_136 {dimension_numbers = #tpu.dot_dimension_numbers<[1], [0], [0], [1], [0, 0, 1, 1], [], []>} : vector<16x16xf32>, vector<16x8xf32>, vector<16x8xf32> -> vector<16x8xf32>
    %407 = vector.extract_strided_slice %366 {offsets = [0, 16], sizes = [16, 8], strides = [1, 1]} : vector<16x32xf32> to vector<16x8xf32>
    %408 = vector.extract_strided_slice %367 {offsets = [0, 16], sizes = [16, 8], strides = [1, 1]} : vector<16x32xf32> to vector<16x8xf32>
    %409 = vector.extract_strided_slice %368 {offsets = [0, 16], sizes = [16, 8], strides = [1, 1]} : vector<16x32xf32> to vector<16x8xf32>
    %cst_137 = arith.constant dense<0.000000e+00> : vector<16x16xf32>
    %410 = tpu.matmul %407, %408, %cst_137 {dimension_numbers = #tpu.dot_dimension_numbers<[1], [1], [0], [0], [0, 0, 1, 0], [], []>} : vector<16x8xf32>, vector<16x8xf32>, vector<16x16xf32> -> vector<16x16xf32>
    %cst_138 = arith.constant 0.353553385 : f32
    %411 = vector.broadcast %cst_138 : f32 to vector<16x16xf32>
    %412 = arith.mulf %410, %411 : vector<16x16xf32>
    %413 = arith.addf %412, %3 : vector<16x16xf32>
    %cst_139 = arith.constant dense<0xFF800000> : vector<16xf32>
    %414 = vector.multi_reduction <maximumf>, %413, %cst_139 [1] : vector<16x16xf32> to vector<16xf32>
    %415 = vector.shape_cast %414 : vector<16xf32> to vector<16x1xf32>
    %416 = vector.broadcast %415 : vector<16x1xf32> to vector<16x16xf32>
    %417 = arith.subf %413, %416 : vector<16x16xf32>
    %418 = math.exp %417 : vector<16x16xf32>
    %cst_140 = arith.constant dense<0.000000e+00> : vector<16xf32>
    %419 = vector.multi_reduction <add>, %418, %cst_140 [1] : vector<16x16xf32> to vector<16xf32>
    %420 = vector.shape_cast %419 : vector<16xf32> to vector<16x1xf32>
    %421 = tpu.reciprocal %420 {approx = true} : vector<16x1xf32> -> vector<16x1xf32>
    %422 = vector.broadcast %421 : vector<16x1xf32> to vector<16x16xf32>
    %423 = arith.mulf %418, %422 : vector<16x16xf32>
    %cst_141 = arith.constant dense<0.000000e+00> : vector<16x8xf32>
    %424 = tpu.matmul %423, %409, %cst_141 {dimension_numbers = #tpu.dot_dimension_numbers<[1], [0], [0], [1], [0, 0, 1, 1], [], []>} : vector<16x16xf32>, vector<16x8xf32>, vector<16x8xf32> -> vector<16x8xf32>
    %425 = vector.extract_strided_slice %366 {offsets = [0, 24], sizes = [16, 8], strides = [1, 1]} : vector<16x32xf32> to vector<16x8xf32>
    %426 = vector.extract_strided_slice %367 {offsets = [0, 24], sizes = [16, 8], strides = [1, 1]} : vector<16x32xf32> to vector<16x8xf32>
    %427 = vector.extract_strided_slice %368 {offsets = [0, 24], sizes = [16, 8], strides = [1, 1]} : vector<16x32xf32> to vector<16x8xf32>
    %cst_142 = arith.constant dense<0.000000e+00> : vector<16x16xf32>
    %428 = tpu.matmul %425, %426, %cst_142 {dimension_numbers = #tpu.dot_dimension_numbers<[1], [1], [0], [0], [0, 0, 1, 0], [], []>} : vector<16x8xf32>, vector<16x8xf32>, vector<16x16xf32> -> vector<16x16xf32>
    %cst_143 = arith.constant 0.353553385 : f32
    %429 = vector.broadcast %cst_143 : f32 to vector<16x16xf32>
    %430 = arith.mulf %428, %429 : vector<16x16xf32>
    %431 = arith.addf %430, %3 : vector<16x16xf32>
    %cst_144 = arith.constant dense<0xFF800000> : vector<16xf32>
    %432 = vector.multi_reduction <maximumf>, %431, %cst_144 [1] : vector<16x16xf32> to vector<16xf32>
    %433 = vector.shape_cast %432 : vector<16xf32> to vector<16x1xf32>
    %434 = vector.broadcast %433 : vector<16x1xf32> to vector<16x16xf32>
    %435 = arith.subf %431, %434 : vector<16x16xf32>
    %436 = math.exp %435 : vector<16x16xf32>
    %cst_145 = arith.constant dense<0.000000e+00> : vector<16xf32>
    %437 = vector.multi_reduction <add>, %436, %cst_145 [1] : vector<16x16xf32> to vector<16xf32>
    %438 = vector.shape_cast %437 : vector<16xf32> to vector<16x1xf32>
    %439 = tpu.reciprocal %438 {approx = true} : vector<16x1xf32> -> vector<16x1xf32>
    %440 = vector.broadcast %439 : vector<16x1xf32> to vector<16x16xf32>
    %441 = arith.mulf %436, %440 : vector<16x16xf32>
    %cst_146 = arith.constant dense<0.000000e+00> : vector<16x8xf32>
    %442 = tpu.matmul %441, %427, %cst_146 {dimension_numbers = #tpu.dot_dimension_numbers<[1], [0], [0], [1], [0, 0, 1, 1], [], []>} : vector<16x16xf32>, vector<16x8xf32>, vector<16x8xf32> -> vector<16x8xf32>
    %443 = tpu.concatenate %388, %406, %424, %442 in 1 : vector<16x8xf32>, vector<16x8xf32>, vector<16x8xf32>, vector<16x8xf32> -> vector<16x32xf32>
    %cst_147 = arith.constant dense<0.000000e+00> : vector<16x32xf32>
    %444 = tpu.matmul %443, %369, %cst_147 {dimension_numbers = #tpu.dot_dimension_numbers<[1], [0], [0], [1], [0, 0, 1, 1], [], []>} : vector<16x32xf32>, vector<32x32xf32>, vector<16x32xf32> -> vector<16x32xf32>
    %445 = vector.broadcast %370 : vector<1x32xf32> to vector<16x32xf32>
    %446 = arith.addf %444, %445 : vector<16x32xf32>
    %447 = arith.addf %345, %446 : vector<16x32xf32>
    %cst_148 = arith.constant dense<0.000000e+00> : vector<16xf32>
    %448 = vector.multi_reduction <add>, %447, %cst_148 [1] : vector<16x32xf32> to vector<16xf32>
    %449 = vector.shape_cast %448 : vector<16xf32> to vector<16x1xf32>
    %cst_149 = arith.constant 3.200000e+01 : f32
    %450 = vector.broadcast %cst_149 : f32 to vector<16x1xf32>
    %451 = arith.divf %449, %450 : vector<16x1xf32>
    %452 = vector.broadcast %451 : vector<16x1xf32> to vector<16x32xf32>
    %453 = arith.subf %447, %452 : vector<16x32xf32>
    %454 = arith.mulf %453, %453 : vector<16x32xf32>
    %cst_150 = arith.constant dense<0.000000e+00> : vector<16xf32>
    %455 = vector.multi_reduction <add>, %454, %cst_150 [1] : vector<16x32xf32> to vector<16xf32>
    %456 = vector.shape_cast %455 : vector<16xf32> to vector<16x1xf32>
    %cst_151 = arith.constant 3.200000e+01 : f32
    %457 = vector.broadcast %cst_151 : f32 to vector<16x1xf32>
    %458 = arith.divf %456, %457 : vector<16x1xf32>
    %cst_152 = arith.constant 9.99999974E-6 : f32
    %459 = vector.broadcast %cst_152 : f32 to vector<16x1xf32>
    %460 = arith.addf %458, %459 : vector<16x1xf32>
    %461 = math.rsqrt %460 : vector<16x1xf32>
    %462 = vector.broadcast %461 : vector<16x1xf32> to vector<16x32xf32>
    %463 = arith.mulf %453, %462 : vector<16x32xf32>
    %c288 = arith.constant 288 : index
    %c0_153 = arith.constant 0 : index
    %464 = vector.load %arg4[%c288, %c0_153] : memref<352x128xf32, #tpu.memory_space<vmem>>, vector<32x64xf32>
    %cst_154 = arith.constant dense<0.000000e+00> : vector<16x64xf32>
    %465 = tpu.matmul %463, %464, %cst_154 {dimension_numbers = #tpu.dot_dimension_numbers<[1], [0], [0], [1], [0, 0, 1, 1], [], []>} : vector<16x32xf32>, vector<32x64xf32>, vector<16x64xf32> -> vector<16x64xf32>
    %c10 = arith.constant 10 : index
    %c0_155 = arith.constant 0 : index
    %466 = vector.load %arg6[%c10, %c0_155] : memref<13x128xf32, #tpu.memory_space<vmem>>, vector<1x64xf32>
    %467 = vector.broadcast %466 : vector<1x64xf32> to vector<16x64xf32>
    %468 = arith.addf %465, %467 : vector<16x64xf32>
    %cst_156 = arith.constant 0.000000e+00 : f32
    %469 = vector.broadcast %cst_156 : f32 to vector<16x64xf32>
    %470 = arith.maximumf %468, %469 : vector<16x64xf32>
    %c64_157 = arith.constant 64 : index
    %c0_158 = arith.constant 0 : index
    %471 = vector.load %arg5[%c64_157, %c0_158] : memref<128x128xf32, #tpu.memory_space<vmem>>, vector<64x32xf32>
    %cst_159 = arith.constant dense<0.000000e+00> : vector<16x32xf32>
    %472 = tpu.matmul %470, %471, %cst_159 {dimension_numbers = #tpu.dot_dimension_numbers<[1], [0], [0], [1], [0, 0, 1, 1], [], []>} : vector<16x64xf32>, vector<64x32xf32>, vector<16x32xf32> -> vector<16x32xf32>
    %c11 = arith.constant 11 : index
    %c0_160 = arith.constant 0 : index
    %473 = vector.load %arg6[%c11, %c0_160] : memref<13x128xf32, #tpu.memory_space<vmem>>, vector<1x32xf32>
    %474 = vector.broadcast %473 : vector<1x32xf32> to vector<16x32xf32>
    %475 = arith.addf %472, %474 : vector<16x32xf32>
    %476 = arith.addf %447, %475 : vector<16x32xf32>
    %cst_161 = arith.constant dense<0.000000e+00> : vector<16xf32>
    %477 = vector.multi_reduction <add>, %476, %cst_161 [1] : vector<16x32xf32> to vector<16xf32>
    %478 = vector.shape_cast %477 : vector<16xf32> to vector<16x1xf32>
    %cst_162 = arith.constant 3.200000e+01 : f32
    %479 = vector.broadcast %cst_162 : f32 to vector<16x1xf32>
    %480 = arith.divf %478, %479 : vector<16x1xf32>
    %481 = vector.broadcast %480 : vector<16x1xf32> to vector<16x32xf32>
    %482 = arith.subf %476, %481 : vector<16x32xf32>
    %483 = arith.mulf %482, %482 : vector<16x32xf32>
    %cst_163 = arith.constant dense<0.000000e+00> : vector<16xf32>
    %484 = vector.multi_reduction <add>, %483, %cst_163 [1] : vector<16x32xf32> to vector<16xf32>
    %485 = vector.shape_cast %484 : vector<16xf32> to vector<16x1xf32>
    %cst_164 = arith.constant 3.200000e+01 : f32
    %486 = vector.broadcast %cst_164 : f32 to vector<16x1xf32>
    %487 = arith.divf %485, %486 : vector<16x1xf32>
    %cst_165 = arith.constant 9.99999974E-6 : f32
    %488 = vector.broadcast %cst_165 : f32 to vector<16x1xf32>
    %489 = arith.addf %487, %488 : vector<16x1xf32>
    %490 = math.rsqrt %489 : vector<16x1xf32>
    %491 = vector.broadcast %490 : vector<16x1xf32> to vector<16x32xf32>
    %492 = arith.mulf %482, %491 : vector<16x32xf32>
    %c0_166 = arith.constant 0 : index
    %c0_167 = arith.constant 0 : index
    %493 = vector.load %arg7[%c0_166, %c0_167] : memref<16x32xf32, #tpu.memory_space<vmem>>, vector<16x32xf32>
    tpu.vector_store %arg7[%c0_166, %c0_167], %492 {strides = array<i32>} : memref<16x32xf32, #tpu.memory_space<vmem>>, vector<16x32xf32>,
    return
  }
}

</mosaic_0001>

<llo_original>
// kernel: decoder_forward.1
$region0: #{decoder_forward.1}
  #allocation0 [shape = 'u32[]', space=smem, size = 0x4, offset = 0x4, fixed_abs, tag = 'smem constant byte address 0x4 - core index']
  #allocation1 [shape = 'u32[144,128]{1,0:T(1,128)}', space=vmem, size = 0x12000, scoped, tag = 'internal scratch']
  %s0 = inlined_call_operand.vmem [shape: f32[16,32], index: 0, kind: input, shape index: {}]
  %s1 = inlined_call_operand.vmem [shape: f32[16,32], index: 1, kind: input, shape index: {}]
  %s2 = inlined_call_operand.vmem [shape: f32[16,16], index: 2, kind: input, shape index: {}]
  %s3 = inlined_call_operand.vmem [shape: f32[16,16], index: 3, kind: input, shape index: {}]
  %s4 = inlined_call_operand.hbm [shape: f32[352,128], index: 4, kind: input, shape index: {}]
  %s5 = inlined_call_operand.vmem [shape: f32[128,128], index: 5, kind: input, shape index: {}]
  %s6 = inlined_call_operand.vmem [shape: f32[13,128], index: 6, kind: input, shape index: {}]
  %s7 = inlined_call_operand.hbm [shape: f32[16,32], index: 7, kind: output, shape index: {}]
  %s8 = sld [smem:[#allocation0]]
  $region42: #{decoder_forward.1} parent=0
    _
  %s10 = ssub.s32 1, %s8
  %s11 = scalar_select 0, %s10, %s8
  $region1: #{decoder_forward.1} parent=0
    #allocation2 [shape = 'u8[180224]{0}', space=vmem, size = 0x2c000, scoped, tag = 'input window, operand 4, single buffered']
    #allocation3 [shape = 's32[1]{0}', space=sflag, size = 0x4, scoped, tag = 'scoped memory for decoder_forward.1']
    #allocation4 [shape = 's32[1]{0}', space=sflag, size = 0x4, scoped, tag = 'scoped memory for decoder_forward.1']
    #allocation5 [shape = 'u8[8192]{0}', space=vmem, size = 0x2000, scoped, tag = 'output window, operand 0, single buffered']
    %12 = vsyncpa [#allocation3], 0
    %13 = vsyncpa [#allocation4], 0
    // Predicated region
    $region2: #{decoder_forward.1} parent=1 // pred_check
      _
    $region3: #{decoder_forward.1} parent=1 // pred_check_branch
      %15 = sbr.rel (0) target = $region5
    $region4: #{decoder_forward.1} parent=1 // pred_region
      _
    $region5: #{decoder_forward.1} parent=1 // pred_fallthru
      _
    // Predicated region
    $region6: #{decoder_forward.1} parent=1 // pred_check
      _
    $region7: #{decoder_forward.1} parent=1 // pred_check_branch
      %17 = sbr.rel (0) target = $region9
    $region8: #{decoder_forward.1} parent=1 // pred_region
      _
    $region9: #{decoder_forward.1} parent=1 // pred_fallthru
      _
    // Predicated region
    $region10: #{decoder_forward.1} parent=1 // pred_check
      _
    $region11: #{decoder_forward.1} parent=1 // pred_check_branch
      %19 = sbr.rel (0) target = $region13
    $region12: #{decoder_forward.1} parent=1 // pred_region
      _
    $region13: #{decoder_forward.1} parent=1 // pred_fallthru
      _
    // Predicated region
    $region14: #{decoder_forward.1} parent=1 // pred_check
      _
    $region15: #{decoder_forward.1} parent=1 // pred_check_branch
      %21 = sbr.rel (0) target = $region17
    $region16: #{decoder_forward.1} parent=1 // pred_region
      _
    $region17: #{decoder_forward.1} parent=1 // pred_fallthru
      _
    // Predicated region
    $region18: #{decoder_forward.1} parent=1 // pred_check
      _
    $region19: #{decoder_forward.1} parent=1 // pred_check_branch
      %23 = sbr.rel (0) target = $region21
    $region20: #{decoder_forward.1} parent=1 // pred_region
      %s25 = ssub.s32 5632, 5632
      %26 = vsyncadd [#allocation3], %s25
      %s27 = sshll.u32 [#allocation2], 4
      %s28 = int_to_ptr.vmem [resolvable:$true] %s27
      %33 = dma.hbm_to_vmem [thread:$0]  %s4, 5632, %s28, [#allocation3], 128, 128, 8
    $region21: #{decoder_forward.1} parent=1 // pred_fallthru
      _
    // Predicated region
    $region22: #{decoder_forward.1} parent=1 // pred_check
      _
    $region23: #{decoder_forward.1} parent=1 // pred_check_branch
      %35 = sbr.rel (0) target = $region25
    $region24: #{decoder_forward.1} parent=1 // pred_region
      _
    $region25: #{decoder_forward.1} parent=1 // pred_fallthru
      _
    // Predicated region
    $region26: #{decoder_forward.1} parent=1 // pred_check
      _
    $region27: #{decoder_forward.1} parent=1 // pred_check_branch
      %37 = sbr.rel (0) target = $region29
    $region28: #{decoder_forward.1} parent=1 // pred_region
      _
    $region29: #{decoder_forward.1} parent=1 // pred_fallthru
      _
    // Predicated region
    $region30: #{decoder_forward.1} parent=1 // pred_check
      _
    $region31: #{decoder_forward.1} parent=1 // pred_check_branch
      %39 = sbr.rel (0) target = $region33
    $region32: #{decoder_forward.1} parent=1 // pred_region
      %40 = dma.done [#allocation3], 5632
    $region33: #{decoder_forward.1} parent=1 // pred_fallthru
      _
    %v41 = vld [vmem:[%s0] sm:$0xff]
    %v42 = vld [vmem:[%s0 + $0x8] sm:$0xff]
    %v43 = vld [vmem:[%s1] sm:$0xff]
    %v44 = vld [vmem:[%s1 + $0x8] sm:$0xff]
    %v45 = vld [vmem:[%s2] sm:$0xff]
    %v46 = vld [vmem:[%s2 + $0x8] sm:$0xff]
    %v47 = vld [vmem:[%s3] sm:$0xff]
    %v48 = vld [vmem:[%s3 + $0x8] sm:$0xff]
    %v49 = vld [vmem:[#allocation2 + $0x140] sm:$0xff]
    %v50 = vld [vmem:[#allocation2 + $0x148] sm:$0xff]
    %v51 = vld [vmem:[#allocation2 + $0x150] sm:$0xff]
    %v52 = vld [vmem:[#allocation2 + $0x158] sm:$0xff]
    %v53 = vld [vmem:[%s6 + $0xc] sm:$0x1]
    %v54 = vlaneseq
    %v55 = vshrl.u32 %v54, 7
    %v56 = vsub.s32 0, %v55
    %v57 = vrot.slane %v53, %v56
    %vm58 = vcmask 261120
    %v60 = vsel %vm58, %v43, 0
    %v63 = vsel %vm58, %v44, 0
    %65 = vmatprep.subr.mxu0 0.0
    %66 = vmatpush1.msra.mxu0 0.0
    %67 = vmatprep.subr.mxu0 0.0
    %68 = vmatpush1.msra.mxu0 0.0
    %69 = vmatprep.subr.mxu0 0.0
    %70 = vmatpush1.msra.mxu0 0.0
    %71 = vmatprep.subr.mxu0 0.0
    %72 = vmatpush1.msra.mxu0 0.0
    %73 = vmatprep.subr.mxu0 0.0
    %74 = vmatpush1.msra.mxu0 0.0
    %75 = vmatprep.subr.mxu0 0.0
    %76 = vmatpush1.msra.mxu0 0.0
    %77 = vmatprep.subr.mxu0 0.0
    %78 = vmatpush1.msra.mxu0 0.0
    %79 = vmatprep.subr.mxu0 0.0
    %80 = vmatpush1.msra.mxu0 0.0
    %81 = vmatprep.subr.mxu0 0.0
    %82 = vmatpush1.msra.mxu0 0.0
    %83 = vmatprep.subr.mxu0 0.0
    %84 = vmatpush1.msra.mxu0 0.0
    %85 = vmatprep.subr.mxu0 0.0
    %86 = vmatpush1.msra.mxu0 0.0
    %87 = vmatprep.subr.mxu0 0.0
    %88 = vmatpush1.msra.mxu0 0.0
    %89 = vmatprep.subr.mxu0 0.0
    %90 = vmatpush1.msra.mxu0 %v52
    %91 = vmatprep.subr.mxu0 0.0
    %92 = vmatpush1.msra.mxu0 %v51
    %93 = vmatprep.subr.mxu0 0.0
    %94 = vmatpush1.msra.mxu0 %v50
    %95 = vmatprep.subr.mxu0 0.0
    %96 = vmatpush1.msra.mxu0 %v49
    %97 = vmatprep.subr.mxu0 0.0
    %98 = vmatpush2.msra.mxu0 0.0
    %99 = vmatprep.subr.mxu0 0.0
    %100 = vmatpush2.msra.mxu0 0.0
    %101 = vmatprep.subr.mxu0 0.0
    %102 = vmatpush2.msra.mxu0 0.0
    %103 = vmatprep.subr.mxu0 0.0
    %104 = vmatpush2.msra.mxu0 0.0
    %105 = vmatprep.subr.mxu0 0.0
    %106 = vmatpush2.msra.mxu0 0.0
    %107 = vmatprep.subr.mxu0 0.0
    %108 = vmatpush2.msra.mxu0 0.0
    %109 = vmatprep.subr.mxu0 0.0
    %110 = vmatpush2.msra.mxu0 0.0
    %111 = vmatprep.subr.mxu0 0.0
    %112 = vmatpush2.msra.mxu0 0.0
    %113 = vmatprep.subr.mxu0 0.0
    %114 = vmatpush2.msra.mxu0 0.0
    %115 = vmatprep.subr.mxu0 0.0
    %116 = vmatpush2.msra.mxu0 0.0
    %117 = vmatprep.subr.mxu0 0.0
    %118 = vmatpush2.msra.mxu0 0.0
    %119 = vmatprep.subr.mxu0 0.0
    %120 = vmatpush2.msra.mxu0 0.0
    %121 = vmatprep.subr.mxu0 0.0
    %122 = vmatpush2.msra.mxu0 0.0
    %123 = vmatprep.subr.mxu0 0.0
    %124 = vmatpush2.msra.mxu0 0.0
    %125 = vmatprep.subr.mxu0 0.0
    %126 = vmatpush2.msra.mxu0 0.0
    %127 = vmatprep.subr.mxu0 0.0
    %128 = vmatpush2.msra.mxu0 0.0
    %129 = vmatprep.mubr.f32.mxu0 0.0
    %130 = vmatmul.mubr.f32.gmra.mxu0 %v60
    %v131 = vpop.f32.mrf.mxu0
    %v132 = vadd.f32 %v57, %v131
    %v133 = vpop.f32.mrf.mxu0
    %134 = vmatprep.mubr.f32.mxu0 0.0
    %135 = vmatmul.mubr.f32.gmra.mxu0 %v63
    %v136 = vpop.f32.mrf.mxu0
    %v137 = vadd.f32 %v57, %v136
    %v138 = vpop.f32.mrf.mxu0
    %139 = vdwg.mxu0
    %v140 = vsel %vm58, %v41, 0.0
    %141 = vadd.xlane.f32.xlu0 %v140
    %v142 = vpop.xlane.xlu0 %141
    %v143 = vsel %vm58, %v42, 0.0
    %144 = vadd.xlane.f32.xlu0 %v143
    %v145 = vpop.xlane.xlu0 %144
    %v146 = vrcp.pop 32.0
    %v147 = vmul.f32 %v142, %v146
    %v148 = vmul.f32 %v145, %v146
    %v149 = vsub.f32 %v41, %v147
    %v150 = vsub.f32 %v42, %v148
    %v151 = vmul.f32 %v149, %v149
    %v152 = vmul.f32 %v150, %v150
    %v153 = vsel %vm58, %v151, 0.0
    %154 = vadd.xlane.f32.xlu0 %v153
    %v155 = vpop.xlane.xlu0 %154
    %v156 = vsel %vm58, %v152, 0.0
    %157 = vadd.xlane.f32.xlu0 %v156
    %v158 = vpop.xlane.xlu0 %157
    %v159 = vmul.f32 %v155, %v146
    %v160 = vmul.f32 %v158, %v146
    %v161 = vadd.f32 %v159, 1e-05
    %v162 = vadd.f32 %v160, 1e-05
    %v163 = vrsqrt.pop %v161
    %v164 = vrsqrt.pop %v162
    %v165 = vmul.f32 %v149, %v163
    %v166 = vmul.f32 %v150, %v164
    %v167 = vld [vmem:[#allocation2] sm:$0xff]
    %v168 = vld [vmem:[#allocation2 + $0x8] sm:$0xff]
    %v169 = vld [vmem:[#allocation2 + $0x10] sm:$0xff]
    %v170 = vld [vmem:[#allocation2 + $0x18] sm:$0xff]
    %v171 = vld [vmem:[%s6] sm:$0x1]
    %v172 = vlaneseq
    %v173 = vshrl.u32 %v172, 7
    %v174 = vsub.s32 0, %v173
    %v175 = vrot.slane %v171, %v174
    %v177 = vsel %vm58, %v165, 0
    %v180 = vsel %vm58, %v166, 0
    %182 = vmatprep.subr.mxu0 0.0
    %183 = vmatpush1.msra.mxu0 0.0
    %184 = vmatprep.subr.mxu0 0.0
    %185 = vmatpush1.msra.mxu0 0.0
    %186 = vmatprep.subr.mxu0 0.0
    %187 = vmatpush1.msra.mxu0 0.0
    %188 = vmatprep.subr.mxu0 0.0
    %189 = vmatpush1.msra.mxu0 0.0
    %190 = vmatprep.subr.mxu0 0.0
    %191 = vmatpush1.msra.mxu0 0.0
    %192 = vmatprep.subr.mxu0 0.0
    %193 = vmatpush1.msra.mxu0 0.0
    %194 = vmatprep.subr.mxu0 0.0
    %195 = vmatpush1.msra.mxu0 0.0
    %196 = vmatprep.subr.mxu0 0.0
    %197 = vmatpush1.msra.mxu0 0.0
    %198 = vmatprep.subr.mxu0 0.0
    %199 = vmatpush1.msra.mxu0 0.0
    %200 = vmatprep.subr.mxu0 0.0
    %201 = vmatpush1.msra.mxu0 0.0
    %202 = vmatprep.subr.mxu0 0.0
    %203 = vmatpush1.msra.mxu0 0.0
    %204 = vmatprep.subr.mxu0 0.0
    %205 = vmatpush1.msra.mxu0 0.0
    %206 = vmatprep.subr.mxu0 0.0
    %207 = vmatpush1.msra.mxu0 %v170
    %208 = vmatprep.subr.mxu0 0.0
    %209 = vmatpush1.msra.mxu0 %v169
    %210 = vmatprep.subr.mxu0 0.0
    %211 = vmatpush1.msra.mxu0 %v168
    %212 = vmatprep.subr.mxu0 0.0
    %213 = vmatpush1.msra.mxu0 %v167
    %214 = vmatprep.subr.mxu0 0.0
    %215 = vmatpush2.msra.mxu0 0.0
    %216 = vmatprep.subr.mxu0 0.0
    %217 = vmatpush2.msra.mxu0 0.0
    %218 = vmatprep.subr.mxu0 0.0
    %219 = vmatpush2.msra.mxu0 0.0
    %220 = vmatprep.subr.mxu0 0.0
    %221 = vmatpush2.msra.mxu0 0.0
    %222 = vmatprep.subr.mxu0 0.0
    %223 = vmatpush2.msra.mxu0 0.0
    %224 = vmatprep.subr.mxu0 0.0
    %225 = vmatpush2.msra.mxu0 0.0
    %226 = vmatprep.subr.mxu0 0.0
    %227 = vmatpush2.msra.mxu0 0.0
    %228 = vmatprep.subr.mxu0 0.0
    %229 = vmatpush2.msra.mxu0 0.0
    %230 = vmatprep.subr.mxu0 0.0
    %231 = vmatpush2.msra.mxu0 0.0
    %232 = vmatprep.subr.mxu0 0.0
    %233 = vmatpush2.msra.mxu0 0.0
    %234 = vmatprep.subr.mxu0 0.0
    %235 = vmatpush2.msra.mxu0 0.0
    %236 = vmatprep.subr.mxu0 0.0
    %237 = vmatpush2.msra.mxu0 0.0
    %238 = vmatprep.subr.mxu0 0.0
    %239 = vmatpush2.msra.mxu0 0.0
    %240 = vmatprep.subr.mxu0 0.0
    %241 = vmatpush2.msra.mxu0 0.0
    %242 = vmatprep.subr.mxu0 0.0
    %243 = vmatpush2.msra.mxu0 0.0
    %244 = vmatprep.subr.mxu0 0.0
    %245 = vmatpush2.msra.mxu0 0.0
    %246 = vmatprep.mubr.f32.mxu0 0.0
    %247 = vmatmul.mubr.f32.gmra.mxu0 %v177
    %v248 = vpop.f32.mrf.mxu0
    %v249 = vadd.f32 %v175, %v248
    %v250 = vpop.f32.mrf.mxu0
    %251 = vmatprep.mubr.f32.mxu0 0.0
    %252 = vmatmul.mubr.f32.gmra.mxu0 %v180
    %v253 = vpop.f32.mrf.mxu0
    %v254 = vadd.f32 %v175, %v253
    %v255 = vpop.f32.mrf.mxu0
    %256 = vdwg.mxu0
    %v257 = vld [vmem:[#allocation2 + $0x40] sm:$0xff]
    %v258 = vld [vmem:[#allocation2 + $0x48] sm:$0xff]
    %v259 = vld [vmem:[#allocation2 + $0x50] sm:$0xff]
    %v260 = vld [vmem:[#allocation2 + $0x58] sm:$0xff]
    %v261 = vld [vmem:[%s6 + $0x2] sm:$0x1]
    %264 = vrot.lane.b32.xlu0 %v249, 96
    %v265 = vpop.permute.xlu0 %264
    %266 = vrot.lane.b32.xlu0 %v254, 96
    %v267 = vpop.permute.xlu0 %266
    %vm268 = vcmask 64512
    %v269 = vsel %vm268, %v249, 0
    %v271 = vsel %vm268, %v254, 0
    %v273 = vsel %vm268, %v265, 0
    %v275 = vsel %vm268, %v267, 0
    %277 = vmatprep.subr.mxu0 0.0
    %278 = vmatpush1.xpose.msra.mxu0 0.0
    %279 = vmatprep.subr.mxu0 0.0
    %280 = vmatpush1.xpose.msra.mxu0 0.0
    %281 = vmatprep.subr.mxu0 0.0
    %282 = vmatpush1.xpose.msra.mxu0 0.0
    %283 = vmatprep.subr.mxu0 0.0
    %284 = vmatpush1.xpose.msra.mxu0 0.0
    %285 = vmatprep.subr.mxu0 0.0
    %286 = vmatpush1.xpose.msra.mxu0 0.0
    %287 = vmatprep.subr.mxu0 0.0
    %288 = vmatpush1.xpose.msra.mxu0 0.0
    %289 = vmatprep.subr.mxu0 0.0
    %290 = vmatpush1.xpose.msra.mxu0 0.0
    %291 = vmatprep.subr.mxu0 0.0
    %292 = vmatpush1.xpose.msra.mxu0 0.0
    %293 = vmatprep.subr.mxu0 0.0
    %294 = vmatpush1.xpose.msra.mxu0 0.0
    %295 = vmatprep.subr.mxu0 0.0
    %296 = vmatpush1.xpose.msra.mxu0 0.0
    %297 = vmatprep.subr.mxu0 0.0
    %298 = vmatpush1.xpose.msra.mxu0 0.0
    %299 = vmatprep.subr.mxu0 0.0
    %300 = vmatpush1.xpose.msra.mxu0 0.0
    %301 = vmatprep.subr.mxu0 0.0
    %302 = vmatpush1.xpose.msra.mxu0 0.0
    %303 = vmatprep.subr.mxu0 0.0
    %304 = vmatpush1.xpose.msra.mxu0 0.0
    %305 = vmatprep.subr.mxu0 0.0
    %306 = vmatpush1.xpose.msra.mxu0 %v275
    %307 = vmatprep.subr.mxu0 0.0
    %308 = vmatpush1.xpose.msra.mxu0 %v273
    %309 = vmatprep.subr.mxu0 0.0
    %310 = vmatpush2.xpose.msra.mxu0 0.0
    %311 = vmatprep.subr.mxu0 0.0
    %312 = vmatpush2.xpose.msra.mxu0 0.0
    %313 = vmatprep.subr.mxu0 0.0
    %314 = vmatpush2.xpose.msra.mxu0 0.0
    %315 = vmatprep.subr.mxu0 0.0
    %316 = vmatpush2.xpose.msra.mxu0 0.0
    %317 = vmatprep.subr.mxu0 0.0
    %318 = vmatpush2.xpose.msra.mxu0 0.0
    %319 = vmatprep.subr.mxu0 0.0
    %320 = vmatpush2.xpose.msra.mxu0 0.0
    %321 = vmatprep.subr.mxu0 0.0
    %322 = vmatpush2.xpose.msra.mxu0 0.0
    %323 = vmatprep.subr.mxu0 0.0
    %324 = vmatpush2.xpose.msra.mxu0 0.0
    %325 = vmatprep.subr.mxu0 0.0
    %326 = vmatpush2.xpose.msra.mxu0 0.0
    %327 = vmatprep.subr.mxu0 0.0
    %328 = vmatpush2.xpose.msra.mxu0 0.0
    %329 = vmatprep.subr.mxu0 0.0
    %330 = vmatpush2.xpose.msra.mxu0 0.0
    %331 = vmatprep.subr.mxu0 0.0
    %332 = vmatpush2.xpose.msra.mxu0 0.0
    %333 = vmatprep.subr.mxu0 0.0
    %334 = vmatpush2.xpose.msra.mxu0 0.0
    %335 = vmatprep.subr.mxu0 0.0
    %336 = vmatpush2.xpose.msra.mxu0 0.0
    %337 = vmatprep.subr.mxu0 0.0
    %338 = vmatpush2.xpose.msra.mxu0 0.0
    %339 = vmatprep.subr.mxu0 0.0
    %340 = vmatpush2.xpose.msra.mxu0 0.0
    %341 = vmatprep.mubr.f32.mxu0 0.0
    %342 = vmatmul.mubr.f32.gmra.mxu0 %v269
    %v343 = vpop.f32.mrf.mxu0
    %v344 = vadd.f32 0.0, %v343
    %v345 = vpop.f32.mrf.mxu0
    %346 = vmatprep.mubr.f32.mxu0 0.0
    %347 = vmatmul.mubr.f32.gmra.mxu0 %v271
    %v348 = vpop.f32.mrf.mxu0
    %v349 = vadd.f32 0.0, %v348
    %v350 = vpop.f32.mrf.mxu0
    %351 = vdwg.mxu0
    %v352 = vmul.f32 %v344, 0.35355338
    %v353 = vmul.f32 %v349, 0.35355338
    %v354 = vadd.f32 %v352, %v45
    %v355 = vadd.f32 %v353, %v46
    %vm356 = vcmask 130048
    %v357 = vsel %vm356, %v354, -inf
    %358 = vmax.xlane.f32.xlu0 %v357
    %v359 = vpop.xlane.xlu0 %358
    %v360 = vsel %vm356, %v355, -inf
    %361 = vmax.xlane.f32.xlu0 %v360
    %v362 = vpop.xlane.xlu0 %361
    %v363 = vsub.f32 %v354, %v359
    %v364 = vsub.f32 %v355, %v362
    %v365 = vmul.f32 %v363, 1.442695
    %v366 = vpow.pop %v365
    %v367 = vmul.f32 %v364, 1.442695
    %v368 = vpow.pop %v367
    %v369 = vsel %vm356, %v366, 0.0
    %370 = vadd.xlane.f32.xlu0 %v369
    %v371 = vpop.xlane.xlu0 %370
    %v372 = vsel %vm356, %v368, 0.0
    %373 = vadd.xlane.f32.xlu0 %v372
    %v374 = vpop.xlane.xlu0 %373
    %v375 = vrcp.pop %v371
    %v376 = vrcp.pop %v374
    %v377 = vmul.f32 %v366, %v375
    %v378 = vmul.f32 %v368, %v376
    %379 = vrot.lane.b32.xlu0 %v249, 64
    %v380 = vpop.permute.xlu0 %379
    %381 = vrot.lane.b32.xlu0 %v254, 64
    %v382 = vpop.permute.xlu0 %381
    %v386 = vsel %vm356, %v377, 0
    %v389 = vsel %vm356, %v378, 0
    %391 = vmatprep.subr.mxu0 0.0
    %392 = vmatpush1.msra.mxu0 0.0
    %393 = vmatprep.subr.mxu0 0.0
    %394 = vmatpush1.msra.mxu0 0.0
    %395 = vmatprep.subr.mxu0 0.0
    %396 = vmatpush1.msra.mxu0 0.0
    %397 = vmatprep.subr.mxu0 0.0
    %398 = vmatpush1.msra.mxu0 0.0
    %399 = vmatprep.subr.mxu0 0.0
    %400 = vmatpush1.msra.mxu0 0.0
    %401 = vmatprep.subr.mxu0 0.0
    %402 = vmatpush1.msra.mxu0 0.0
    %403 = vmatprep.subr.mxu0 0.0
    %404 = vmatpush1.msra.mxu0 0.0
    %405 = vmatprep.subr.mxu0 0.0
    %406 = vmatpush1.msra.mxu0 0.0
    %407 = vmatprep.subr.mxu0 0.0
    %408 = vmatpush1.msra.mxu0 0.0
    %409 = vmatprep.subr.mxu0 0.0
    %410 = vmatpush1.msra.mxu0 0.0
    %411 = vmatprep.subr.mxu0 0.0
    %412 = vmatpush1.msra.mxu0 0.0
    %413 = vmatprep.subr.mxu0 0.0
    %414 = vmatpush1.msra.mxu0 0.0
    %415 = vmatprep.subr.mxu0 0.0
    %416 = vmatpush1.msra.mxu0 0.0
    %417 = vmatprep.subr.mxu0 0.0
    %418 = vmatpush1.msra.mxu0 0.0
    %419 = vmatprep.subr.mxu0 0.0
    %420 = vmatpush1.msra.mxu0 %v382
    %421 = vmatprep.subr.mxu0 0.0
    %422 = vmatpush1.msra.mxu0 %v380
    %423 = vmatprep.subr.mxu0 0.0
    %424 = vmatpush2.msra.mxu0 0.0
    %425 = vmatprep.subr.mxu0 0.0
    %426 = vmatpush2.msra.mxu0 0.0
    %427 = vmatprep.subr.mxu0 0.0
    %428 = vmatpush2.msra.mxu0 0.0
    %429 = vmatprep.subr.mxu0 0.0
    %430 = vmatpush2.msra.mxu0 0.0
    %431 = vmatprep.subr.mxu0 0.0
    %432 = vmatpush2.msra.mxu0 0.0
    %433 = vmatprep.subr.mxu0 0.0
    %434 = vmatpush2.msra.mxu0 0.0
    %435 = vmatprep.subr.mxu0 0.0
    %436 = vmatpush2.msra.mxu0 0.0
    %437 = vmatprep.subr.mxu0 0.0
    %438 = vmatpush2.msra.mxu0 0.0
    %439 = vmatprep.subr.mxu0 0.0
    %440 = vmatpush2.msra.mxu0 0.0
    %441 = vmatprep.subr.mxu0 0.0
    %442 = vmatpush2.msra.mxu0 0.0
    %443 = vmatprep.subr.mxu0 0.0
    %444 = vmatpush2.msra.mxu0 0.0
    %445 = vmatprep.subr.mxu0 0.0
    %446 = vmatpush2.msra.mxu0 0.0
    %447 = vmatprep.subr.mxu0 0.0
    %448 = vmatpush2.msra.mxu0 0.0
    %449 = vmatprep.subr.mxu0 0.0
    %450 = vmatpush2.msra.mxu0 0.0
    %451 = vmatprep.subr.mxu0 0.0
    %452 = vmatpush2.msra.mxu0 0.0
    %453 = vmatprep.subr.mxu0 0.0
    %454 = vmatpush2.msra.mxu0 0.0
    %455 = vmatprep.mubr.f32.mxu0 0.0
    %456 = vmatmul.mubr.f32.gmra.mxu0 %v386
    %v457 = vpop.f32.mrf.mxu0
    %v458 = vadd.f32 0.0, %v457
    %v459 = vpop.f32.mrf.mxu0
    %460 = vmatprep.mubr.f32.mxu0 0.0
    %461 = vmatmul.mubr.f32.gmra.mxu0 %v389
    %v462 = vpop.f32.mrf.mxu0
    %v463 = vadd.f32 0.0, %v462
    %v464 = vpop.f32.mrf.mxu0
    %465 = vdwg.mxu0
    %466 = vrot.lane.b32.xlu0 %v249, 120
    %v467 = vpop.permute.xlu0 %466
    %468 = vrot.lane.b32.xlu0 %v254, 120
    %v469 = vpop.permute.xlu0 %468
    %470 = vrot.lane.b32.xlu0 %v249, 88
    %v471 = vpop.permute.xlu0 %470
    %472 = vrot.lane.b32.xlu0 %v254, 88
    %v473 = vpop.permute.xlu0 %472
    %v474 = vsel %vm268, %v467, 0
    %v476 = vsel %vm268, %v469, 0
    %v478 = vsel %vm268, %v471, 0
    %v480 = vsel %vm268, %v473, 0
    %482 = vmatprep.subr.mxu0 0.0
    %483 = vmatpush1.xpose.msra.mxu0 0.0
    %484 = vmatprep.subr.mxu0 0.0
    %485 = vmatpush1.xpose.msra.mxu0 0.0
    %486 = vmatprep.subr.mxu0 0.0
    %487 = vmatpush1.xpose.msra.mxu0 0.0
    %488 = vmatprep.subr.mxu0 0.0
    %489 = vmatpush1.xpose.msra.mxu0 0.0
    %490 = vmatprep.subr.mxu0 0.0
    %491 = vmatpush1.xpose.msra.mxu0 0.0
    %492 = vmatprep.subr.mxu0 0.0
    %493 = vmatpush1.xpose.msra.mxu0 0.0
    %494 = vmatprep.subr.mxu0 0.0
    %495 = vmatpush1.xpose.msra.mxu0 0.0
    %496 = vmatprep.subr.mxu0 0.0
    %497 = vmatpush1.xpose.msra.mxu0 0.0
    %498 = vmatprep.subr.mxu0 0.0
    %499 = vmatpush1.xpose.msra.mxu0 0.0
    %500 = vmatprep.subr.mxu0 0.0
    %501 = vmatpush1.xpose.msra.mxu0 0.0
    %502 = vmatprep.subr.mxu0 0.0
    %503 = vmatpush1.xpose.msra.mxu0 0.0
    %504 = vmatprep.subr.mxu0 0.0
    %505 = vmatpush1.xpose.msra.mxu0 0.0
    %506 = vmatprep.subr.mxu0 0.0
    %507 = vmatpush1.xpose.msra.mxu0 0.0
    %508 = vmatprep.subr.mxu0 0.0
    %509 = vmatpush1.xpose.msra.mxu0 0.0
    %510 = vmatprep.subr.mxu0 0.0
    %511 = vmatpush1.xpose.msra.mxu0 %v480
    %512 = vmatprep.subr.mxu0 0.0
    %513 = vmatpush1.xpose.msra.mxu0 %v478
    %514 = vmatprep.subr.mxu0 0.0
    %515 = vmatpush2.xpose.msra.mxu0 0.0
    %516 = vmatprep.subr.mxu0 0.0
    %517 = vmatpush2.xpose.msra.mxu0 0.0
    %518 = vmatprep.subr.mxu0 0.0
    %519 = vmatpush2.xpose.msra.mxu0 0.0
    %520 = vmatprep.subr.mxu0 0.0
    %521 = vmatpush2.xpose.msra.mxu0 0.0
    %522 = vmatprep.subr.mxu0 0.0
    %523 = vmatpush2.xpose.msra.mxu0 0.0
    %524 = vmatprep.subr.mxu0 0.0
    %525 = vmatpush2.xpose.msra.mxu0 0.0
    %526 = vmatprep.subr.mxu0 0.0
    %527 = vmatpush2.xpose.msra.mxu0 0.0
    %528 = vmatprep.subr.mxu0 0.0
    %529 = vmatpush2.xpose.msra.mxu0 0.0
    %530 = vmatprep.subr.mxu0 0.0
    %531 = vmatpush2.xpose.msra.mxu0 0.0
    %532 = vmatprep.subr.mxu0 0.0
    %533 = vmatpush2.xpose.msra.mxu0 0.0
    %534 = vmatprep.subr.mxu0 0.0
    %535 = vmatpush2.xpose.msra.mxu0 0.0
    %536 = vmatprep.subr.mxu0 0.0
    %537 = vmatpush2.xpose.msra.mxu0 0.0
    %538 = vmatprep.subr.mxu0 0.0
    %539 = vmatpush2.xpose.msra.mxu0 0.0
    %540 = vmatprep.subr.mxu0 0.0
    %541 = vmatpush2.xpose.msra.mxu0 0.0
    %542 = vmatprep.subr.mxu0 0.0
    %543 = vmatpush2.xpose.msra.mxu0 0.0
    %544 = vmatprep.subr.mxu0 0.0
    %545 = vmatpush2.xpose.msra.mxu0 0.0
    %546 = vmatprep.mubr.f32.mxu0 0.0
    %547 = vmatmul.mubr.f32.gmra.mxu0 %v474
    %v548 = vpop.f32.mrf.mxu0
    %v549 = vadd.f32 0.0, %v548
    %v550 = vpop.f32.mrf.mxu0
    %551 = vmatprep.mubr.f32.mxu0 0.0
    %552 = vmatmul.mubr.f32.gmra.mxu0 %v476
    %v553 = vpop.f32.mrf.mxu0
    %v554 = vadd.f32 0.0, %v553
    %v555 = vpop.f32.mrf.mxu0
    %556 = vdwg.mxu0
    %v557 = vmul.f32 %v549, 0.35355338
    %v558 = vmul.f32 %v554, 0.35355338
    %v559 = vadd.f32 %v557, %v45
    %v560 = vadd.f32 %v558, %v46
    %v561 = vsel %vm356, %v559, -inf
    %562 = vmax.xlane.f32.xlu0 %v561
    %v563 = vpop.xlane.xlu0 %562
    %v564 = vsel %vm356, %v560, -inf
    %565 = vmax.xlane.f32.xlu0 %v564
    %v566 = vpop.xlane.xlu0 %565
    %v567 = vsub.f32 %v559, %v563
    %v568 = vsub.f32 %v560, %v566
    %v569 = vmul.f32 %v567, 1.442695
    %v570 = vpow.pop %v569
    %v571 = vmul.f32 %v568, 1.442695
    %v572 = vpow.pop %v571
    %v573 = vsel %vm356, %v570, 0.0
    %574 = vadd.xlane.f32.xlu0 %v573
    %v575 = vpop.xlane.xlu0 %574
    %v576 = vsel %vm356, %v572, 0.0
    %577 = vadd.xlane.f32.xlu0 %v576
    %v578 = vpop.xlane.xlu0 %577
    %v579 = vrcp.pop %v575
    %v580 = vrcp.pop %v578
    %v581 = vmul.f32 %v570, %v579
    %v582 = vmul.f32 %v572, %v580
    %583 = vrot.lane.b32.xlu0 %v249, 56
    %v584 = vpop.permute.xlu0 %583
    %585 = vrot.lane.b32.xlu0 %v254, 56
    %v586 = vpop.permute.xlu0 %585
    %v590 = vsel %vm356, %v581, 0
    %v593 = vsel %vm356, %v582, 0
    %595 = vmatprep.subr.mxu0 0.0
    %596 = vmatpush1.msra.mxu0 0.0
    %597 = vmatprep.subr.mxu0 0.0
    %598 = vmatpush1.msra.mxu0 0.0
    %599 = vmatprep.subr.mxu0 0.0
    %600 = vmatpush1.msra.mxu0 0.0
    %601 = vmatprep.subr.mxu0 0.0
    %602 = vmatpush1.msra.mxu0 0.0
    %603 = vmatprep.subr.mxu0 0.0
    %604 = vmatpush1.msra.mxu0 0.0
    %605 = vmatprep.subr.mxu0 0.0
    %606 = vmatpush1.msra.mxu0 0.0
    %607 = vmatprep.subr.mxu0 0.0
    %608 = vmatpush1.msra.mxu0 0.0
    %609 = vmatprep.subr.mxu0 0.0
    %610 = vmatpush1.msra.mxu0 0.0
    %611 = vmatprep.subr.mxu0 0.0
    %612 = vmatpush1.msra.mxu0 0.0
    %613 = vmatprep.subr.mxu0 0.0
    %614 = vmatpush1.msra.mxu0 0.0
    %615 = vmatprep.subr.mxu0 0.0
    %616 = vmatpush1.msra.mxu0 0.0
    %617 = vmatprep.subr.mxu0 0.0
    %618 = vmatpush1.msra.mxu0 0.0
    %619 = vmatprep.subr.mxu0 0.0
    %620 = vmatpush1.msra.mxu0 0.0
    %621 = vmatprep.subr.mxu0 0.0
    %622 = vmatpush1.msra.mxu0 0.0
    %623 = vmatprep.subr.mxu0 0.0
    %624 = vmatpush1.msra.mxu0 %v586
    %625 = vmatprep.subr.mxu0 0.0
    %626 = vmatpush1.msra.mxu0 %v584
    %627 = vmatprep.subr.mxu0 0.0
    %628 = vmatpush2.msra.mxu0 0.0
    %629 = vmatprep.subr.mxu0 0.0
    %630 = vmatpush2.msra.mxu0 0.0
    %631 = vmatprep.subr.mxu0 0.0
    %632 = vmatpush2.msra.mxu0 0.0
    %633 = vmatprep.subr.mxu0 0.0
    %634 = vmatpush2.msra.mxu0 0.0
    %635 = vmatprep.subr.mxu0 0.0
    %636 = vmatpush2.msra.mxu0 0.0
    %637 = vmatprep.subr.mxu0 0.0
    %638 = vmatpush2.msra.mxu0 0.0
    %639 = vmatprep.subr.mxu0 0.0
    %640 = vmatpush2.msra.mxu0 0.0
    %641 = vmatprep.subr.mxu0 0.0
    %642 = vmatpush2.msra.mxu0 0.0
    %643 = vmatprep.subr.mxu0 0.0
    %644 = vmatpush2.msra.mxu0 0.0
    %645 = vmatprep.subr.mxu0 0.0
    %646 = vmatpush2.msra.mxu0 0.0
    %647 = vmatprep.subr.mxu0 0.0
    %648 = vmatpush2.msra.mxu0 0.0
    %649 = vmatprep.subr.mxu0 0.0
    %650 = vmatpush2.msra.mxu0 0.0
    %651 = vmatprep.subr.mxu0 0.0
    %652 = vmatpush2.msra.mxu0 0.0
    %653 = vmatprep.subr.mxu0 0.0
    %654 = vmatpush2.msra.mxu0 0.0
    %655 = vmatprep.subr.mxu0 0.0
    %656 = vmatpush2.msra.mxu0 0.0
    %657 = vmatprep.subr.mxu0 0.0
    %658 = vmatpush2.msra.mxu0 0.0
    %659 = vmatprep.mubr.f32.mxu0 0.0
    %660 = vmatmul.mubr.f32.gmra.mxu0 %v590
    %v661 = vpop.f32.mrf.mxu0
    %v662 = vadd.f32 0.0, %v661
    %v663 = vpop.f32.mrf.mxu0
    %664 = vmatprep.mubr.f32.mxu0 0.0
    %665 = vmatmul.mubr.f32.gmra.mxu0 %v593
    %v666 = vpop.f32.mrf.mxu0
    %v667 = vadd.f32 0.0, %v666
    %v668 = vpop.f32.mrf.mxu0
    %669 = vdwg.mxu0
    %670 = vrot.lane.b32.xlu0 %v249, 112
    %v671 = vpop.permute.xlu0 %670
    %672 = vrot.lane.b32.xlu0 %v254, 112
    %v673 = vpop.permute.xlu0 %672
    %674 = vrot.lane.b32.xlu0 %v249, 80
    %v675 = vpop.permute.xlu0 %674
    %676 = vrot.lane.b32.xlu0 %v254, 80
    %v677 = vpop.permute.xlu0 %676
    %v678 = vsel %vm268, %v671, 0
    %v680 = vsel %vm268, %v673, 0
    %v682 = vsel %vm268, %v675, 0
    %v684 = vsel %vm268, %v677, 0
    %686 = vmatprep.subr.mxu0 0.0
    %687 = vmatpush1.xpose.msra.mxu0 0.0
    %688 = vmatprep.subr.mxu0 0.0
    %689 = vmatpush1.xpose.msra.mxu0 0.0
    %690 = vmatprep.subr.mxu0 0.0
    %691 = vmatpush1.xpose.msra.mxu0 0.0
    %692 = vmatprep.subr.mxu0 0.0
    %693 = vmatpush1.xpose.msra.mxu0 0.0
    %694 = vmatprep.subr.mxu0 0.0
    %695 = vmatpush1.xpose.msra.mxu0 0.0
    %696 = vmatprep.subr.mxu0 0.0
    %697 = vmatpush1.xpose.msra.mxu0 0.0
    %698 = vmatprep.subr.mxu0 0.0
    %699 = vmatpush1.xpose.msra.mxu0 0.0
    %700 = vmatprep.subr.mxu0 0.0
    %701 = vmatpush1.xpose.msra.mxu0 0.0
    %702 = vmatprep.subr.mxu0 0.0
    %703 = vmatpush1.xpose.msra.mxu0 0.0
    %704 = vmatprep.subr.mxu0 0.0
    %705 = vmatpush1.xpose.msra.mxu0 0.0
    %706 = vmatprep.subr.mxu0 0.0
    %707 = vmatpush1.xpose.msra.mxu0 0.0
    %708 = vmatprep.subr.mxu0 0.0
    %709 = vmatpush1.xpose.msra.mxu0 0.0
    %710 = vmatprep.subr.mxu0 0.0
    %711 = vmatpush1.xpose.msra.mxu0 0.0
    %712 = vmatprep.subr.mxu0 0.0
    %713 = vmatpush1.xpose.msra.mxu0 0.0
    %714 = vmatprep.subr.mxu0 0.0
    %715 = vmatpush1.xpose.msra.mxu0 %v684
    %716 = vmatprep.subr.mxu0 0.0
    %717 = vmatpush1.xpose.msra.mxu0 %v682
    %718 = vmatprep.subr.mxu0 0.0
    %719 = vmatpush2.xpose.msra.mxu0 0.0
    %720 = vmatprep.subr.mxu0 0.0
    %721 = vmatpush2.xpose.msra.mxu0 0.0
    %722 = vmatprep.subr.mxu0 0.0
    %723 = vmatpush2.xpose.msra.mxu0 0.0
    %724 = vmatprep.subr.mxu0 0.0
    %725 = vmatpush2.xpose.msra.mxu0 0.0
    %726 = vmatprep.subr.mxu0 0.0
    %727 = vmatpush2.xpose.msra.mxu0 0.0
    %728 = vmatprep.subr.mxu0 0.0
    %729 = vmatpush2.xpose.msra.mxu0 0.0
    %730 = vmatprep.subr.mxu0 0.0
    %731 = vmatpush2.xpose.msra.mxu0 0.0
    %732 = vmatprep.subr.mxu0 0.0
    %733 = vmatpush2.xpose.msra.mxu0 0.0
    %734 = vmatprep.subr.mxu0 0.0
    %735 = vmatpush2.xpose.msra.mxu0 0.0
    %736 = vmatprep.subr.mxu0 0.0
    %737 = vmatpush2.xpose.msra.mxu0 0.0
    %738 = vmatprep.subr.mxu0 0.0
    %739 = vmatpush2.xpose.msra.mxu0 0.0
    %740 = vmatprep.subr.mxu0 0.0
    %741 = vmatpush2.xpose.msra.mxu0 0.0
    %742 = vmatprep.subr.mxu0 0.0
    %743 = vmatpush2.xpose.msra.mxu0 0.0
    %744 = vmatprep.subr.mxu0 0.0
    %745 = vmatpush2.xpose.msra.mxu0 0.0
    %746 = vmatprep.subr.mxu0 0.0
    %747 = vmatpush2.xpose.msra.mxu0 0.0
    %748 = vmatprep.subr.mxu0 0.0
    %749 = vmatpush2.xpose.msra.mxu0 0.0
    %750 = vmatprep.mubr.f32.mxu0 0.0
    %751 = vmatmul.mubr.f32.gmra.mxu0 %v678
    %v752 = vpop.f32.mrf.mxu0
    %v753 = vadd.f32 0.0, %v752
    %v754 = vpop.f32.mrf.mxu0
    %755 = vmatprep.mubr.f32.mxu0 0.0
    %756 = vmatmul.mubr.f32.gmra.mxu0 %v680
    %v757 = vpop.f32.mrf.mxu0
    %v758 = vadd.f32 0.0, %v757
    %v759 = vpop.f32.mrf.mxu0
    %760 = vdwg.mxu0
    %v761 = vmul.f32 %v753, 0.35355338
    %v762 = vmul.f32 %v758, 0.35355338
    %v763 = vadd.f32 %v761, %v45
    %v764 = vadd.f32 %v762, %v46
    %v765 = vsel %vm356, %v763, -inf
    %766 = vmax.xlane.f32.xlu0 %v765
    %v767 = vpop.xlane.xlu0 %766
    %v768 = vsel %vm356, %v764, -inf
    %769 = vmax.xlane.f32.xlu0 %v768
    %v770 = vpop.xlane.xlu0 %769
    %v771 = vsub.f32 %v763, %v767
    %v772 = vsub.f32 %v764, %v770
    %v773 = vmul.f32 %v771, 1.442695
    %v774 = vpow.pop %v773
    %v775 = vmul.f32 %v772, 1.442695
    %v776 = vpow.pop %v775
    %v777 = vsel %vm356, %v774, 0.0
    %778 = vadd.xlane.f32.xlu0 %v777
    %v779 = vpop.xlane.xlu0 %778
    %v780 = vsel %vm356, %v776, 0.0
    %781 = vadd.xlane.f32.xlu0 %v780
    %v782 = vpop.xlane.xlu0 %781
    %v783 = vrcp.pop %v779
    %v784 = vrcp.pop %v782
    %v785 = vmul.f32 %v774, %v783
    %v786 = vmul.f32 %v776, %v784
    %787 = vrot.lane.b32.xlu0 %v249, 48
    %v788 = vpop.permute.xlu0 %787
    %789 = vrot.lane.b32.xlu0 %v254, 48
    %v790 = vpop.permute.xlu0 %789
    %v794 = vsel %vm356, %v785, 0
    %v797 = vsel %vm356, %v786, 0
    %799 = vmatprep.subr.mxu0 0.0
    %800 = vmatpush1.msra.mxu0 0.0
    %801 = vmatprep.subr.mxu0 0.0
    %802 = vmatpush1.msra.mxu0 0.0
    %803 = vmatprep.subr.mxu0 0.0
    %804 = vmatpush1.msra.mxu0 0.0
    %805 = vmatprep.subr.mxu0 0.0
    %806 = vmatpush1.msra.mxu0 0.0
    %807 = vmatprep.subr.mxu0 0.0
    %808 = vmatpush1.msra.mxu0 0.0
    %809 = vmatprep.subr.mxu0 0.0
    %810 = vmatpush1.msra.mxu0 0.0
    %811 = vmatprep.subr.mxu0 0.0
    %812 = vmatpush1.msra.mxu0 0.0
    %813 = vmatprep.subr.mxu0 0.0
    %814 = vmatpush1.msra.mxu0 0.0
    %815 = vmatprep.subr.mxu0 0.0
    %816 = vmatpush1.msra.mxu0 0.0
    %817 = vmatprep.subr.mxu0 0.0
    %818 = vmatpush1.msra.mxu0 0.0
    %819 = vmatprep.subr.mxu0 0.0
    %820 = vmatpush1.msra.mxu0 0.0
    %821 = vmatprep.subr.mxu0 0.0
    %822 = vmatpush1.msra.mxu0 0.0
    %823 = vmatprep.subr.mxu0 0.0
    %824 = vmatpush1.msra.mxu0 0.0
    %825 = vmatprep.subr.mxu0 0.0
    %826 = vmatpush1.msra.mxu0 0.0
    %827 = vmatprep.subr.mxu0 0.0
    %828 = vmatpush1.msra.mxu0 %v790
    %829 = vmatprep.subr.mxu0 0.0
    %830 = vmatpush1.msra.mxu0 %v788
    %831 = vmatprep.subr.mxu0 0.0
    %832 = vmatpush2.msra.mxu0 0.0
    %833 = vmatprep.subr.mxu0 0.0
    %834 = vmatpush2.msra.mxu0 0.0
    %835 = vmatprep.subr.mxu0 0.0
    %836 = vmatpush2.msra.mxu0 0.0
    %837 = vmatprep.subr.mxu0 0.0
    %838 = vmatpush2.msra.mxu0 0.0
    %839 = vmatprep.subr.mxu0 0.0
    %840 = vmatpush2.msra.mxu0 0.0
    %841 = vmatprep.subr.mxu0 0.0
    %842 = vmatpush2.msra.mxu0 0.0
    %843 = vmatprep.subr.mxu0 0.0
    %844 = vmatpush2.msra.mxu0 0.0
    %845 = vmatprep.subr.mxu0 0.0
    %846 = vmatpush2.msra.mxu0 0.0
    %847 = vmatprep.subr.mxu0 0.0
    %848 = vmatpush2.msra.mxu0 0.0
    %849 = vmatprep.subr.mxu0 0.0
    %850 = vmatpush2.msra.mxu0 0.0
    %851 = vmatprep.subr.mxu0 0.0
    %852 = vmatpush2.msra.mxu0 0.0
    %853 = vmatprep.subr.mxu0 0.0
    %854 = vmatpush2.msra.mxu0 0.0
    %855 = vmatprep.subr.mxu0 0.0
    %856 = vmatpush2.msra.mxu0 0.0
    %857 = vmatprep.subr.mxu0 0.0
    %858 = vmatpush2.msra.mxu0 0.0
    %859 = vmatprep.subr.mxu0 0.0
    %860 = vmatpush2.msra.mxu0 0.0
    %861 = vmatprep.subr.mxu0 0.0
    %862 = vmatpush2.msra.mxu0 0.0
    %863 = vmatprep.mubr.f32.mxu0 0.0
    %864 = vmatmul.mubr.f32.gmra.mxu0 %v794
    %v865 = vpop.f32.mrf.mxu0
    %v866 = vadd.f32 0.0, %v865
    %v867 = vpop.f32.mrf.mxu0
    %868 = vmatprep.mubr.f32.mxu0 0.0
    %869 = vmatmul.mubr.f32.gmra.mxu0 %v797
    %v870 = vpop.f32.mrf.mxu0
    %v871 = vadd.f32 0.0, %v870
    %v872 = vpop.f32.mrf.mxu0
    %873 = vdwg.mxu0
    %874 = vrot.lane.b32.xlu0 %v249, 104
    %v875 = vpop.permute.xlu0 %874
    %876 = vrot.lane.b32.xlu0 %v254, 104
    %v877 = vpop.permute.xlu0 %876
    %878 = vrot.lane.b32.xlu0 %v249, 72
    %v879 = vpop.permute.xlu0 %878
    %880 = vrot.lane.b32.xlu0 %v254, 72
    %v881 = vpop.permute.xlu0 %880
    %v882 = vsel %vm268, %v875, 0
    %v884 = vsel %vm268, %v877, 0
    %v886 = vsel %vm268, %v879, 0
    %v888 = vsel %vm268, %v881, 0
    %890 = vmatprep.subr.mxu0 0.0
    %891 = vmatpush1.xpose.msra.mxu0 0.0
    %892 = vmatprep.subr.mxu0 0.0
    %893 = vmatpush1.xpose.msra.mxu0 0.0
    %894 = vmatprep.subr.mxu0 0.0
    %895 = vmatpush1.xpose.msra.mxu0 0.0
    %896 = vmatprep.subr.mxu0 0.0
    %897 = vmatpush1.xpose.msra.mxu0 0.0
    %898 = vmatprep.subr.mxu0 0.0
    %899 = vmatpush1.xpose.msra.mxu0 0.0
    %900 = vmatprep.subr.mxu0 0.0
    %901 = vmatpush1.xpose.msra.mxu0 0.0
    %902 = vmatprep.subr.mxu0 0.0
    %903 = vmatpush1.xpose.msra.mxu0 0.0
    %904 = vmatprep.subr.mxu0 0.0
    %905 = vmatpush1.xpose.msra.mxu0 0.0
    %906 = vmatprep.subr.mxu0 0.0
    %907 = vmatpush1.xpose.msra.mxu0 0.0
    %908 = vmatprep.subr.mxu0 0.0
    %909 = vmatpush1.xpose.msra.mxu0 0.0
    %910 = vmatprep.subr.mxu0 0.0
    %911 = vmatpush1.xpose.msra.mxu0 0.0
    %912 = vmatprep.subr.mxu0 0.0
    %913 = vmatpush1.xpose.msra.mxu0 0.0
    %914 = vmatprep.subr.mxu0 0.0
    %915 = vmatpush1.xpose.msra.mxu0 0.0
    %916 = vmatprep.subr.mxu0 0.0
    %917 = vmatpush1.xpose.msra.mxu0 0.0
    %918 = vmatprep.subr.mxu0 0.0
    %919 = vmatpush1.xpose.msra.mxu0 %v888
    %920 = vmatprep.subr.mxu0 0.0
    %921 = vmatpush1.xpose.msra.mxu0 %v886
    %922 = vmatprep.subr.mxu0 0.0
    %923 = vmatpush2.xpose.msra.mxu0 0.0
    %924 = vmatprep.subr.mxu0 0.0
    %925 = vmatpush2.xpose.msra.mxu0 0.0
    %926 = vmatprep.subr.mxu0 0.0
    %927 = vmatpush2.xpose.msra.mxu0 0.0
    %928 = vmatprep.subr.mxu0 0.0
    %929 = vmatpush2.xpose.msra.mxu0 0.0
    %930 = vmatprep.subr.mxu0 0.0
    %931 = vmatpush2.xpose.msra.mxu0 0.0
    %932 = vmatprep.subr.mxu0 0.0
    %933 = vmatpush2.xpose.msra.mxu0 0.0
    %934 = vmatprep.subr.mxu0 0.0
    %935 = vmatpush2.xpose.msra.mxu0 0.0
    %936 = vmatprep.subr.mxu0 0.0
    %937 = vmatpush2.xpose.msra.mxu0 0.0
    %938 = vmatprep.subr.mxu0 0.0
    %939 = vmatpush2.xpose.msra.mxu0 0.0
    %940 = vmatprep.subr.mxu0 0.0
    %941 = vmatpush2.xpose.msra.mxu0 0.0
    %942 = vmatprep.subr.mxu0 0.0
    %943 = vmatpush2.xpose.msra.mxu0 0.0
    %944 = vmatprep.subr.mxu0 0.0
    %945 = vmatpush2.xpose.msra.mxu0 0.0
    %946 = vmatprep.subr.mxu0 0.0
    %947 = vmatpush2.xpose.msra.mxu0 0.0
    %948 = vmatprep.subr.mxu0 0.0
    %949 = vmatpush2.xpose.msra.mxu0 0.0
    %950 = vmatprep.subr.mxu0 0.0
    %951 = vmatpush2.xpose.msra.mxu0 0.0
    %952 = vmatprep.subr.mxu0 0.0
    %953 = vmatpush2.xpose.msra.mxu0 0.0
    %954 = vmatprep.mubr.f32.mxu0 0.0
    %955 = vmatmul.mubr.f32.gmra.mxu0 %v882
    %v956 = vpop.f32.mrf.mxu0
    %v957 = vadd.f32 0.0, %v956
    %v958 = vpop.f32.mrf.mxu0
    %959 = vmatprep.mubr.f32.mxu0 0.0
    %960 = vmatmul.mubr.f32.gmra.mxu0 %v884
    %v961 = vpop.f32.mrf.mxu0
    %v962 = vadd.f32 0.0, %v961
    %v963 = vpop.f32.mrf.mxu0
    %964 = vdwg.mxu0
    %v965 = vmul.f32 %v957, 0.35355338
    %v966 = vmul.f32 %v962, 0.35355338
    %v967 = vadd.f32 %v965, %v45
    %v968 = vadd.f32 %v966, %v46
    %v969 = vsel %vm356, %v967, -inf
    %970 = vmax.xlane.f32.xlu0 %v969
    %v971 = vpop.xlane.xlu0 %970
    %v972 = vsel %vm356, %v968, -inf
    %973 = vmax.xlane.f32.xlu0 %v972
    %v974 = vpop.xlane.xlu0 %973
    %v975 = vsub.f32 %v967, %v971
    %v976 = vsub.f32 %v968, %v974
    %v977 = vmul.f32 %v975, 1.442695
    %v978 = vpow.pop %v977
    %v979 = vmul.f32 %v976, 1.442695
    %v980 = vpow.pop %v979
    %v981 = vsel %vm356, %v978, 0.0
    %982 = vadd.xlane.f32.xlu0 %v981
    %v983 = vpop.xlane.xlu0 %982
    %v984 = vsel %vm356, %v980, 0.0
    %985 = vadd.xlane.f32.xlu0 %v984
    %v986 = vpop.xlane.xlu0 %985
    %v987 = vrcp.pop %v983
    %v988 = vrcp.pop %v986
    %v989 = vmul.f32 %v978, %v987
    %v990 = vmul.f32 %v980, %v988
    %991 = vrot.lane.b32.xlu0 %v249, 40
    %v992 = vpop.permute.xlu0 %991
    %993 = vrot.lane.b32.xlu0 %v254, 40
    %v994 = vpop.permute.xlu0 %993
    %v998 = vsel %vm356, %v989, 0
    %v1001 = vsel %vm356, %v990, 0
    %1003 = vmatprep.subr.mxu0 0.0
    %1004 = vmatpush1.msra.mxu0 0.0
    %1005 = vmatprep.subr.mxu0 0.0
    %1006 = vmatpush1.msra.mxu0 0.0
    %1007 = vmatprep.subr.mxu0 0.0
    %1008 = vmatpush1.msra.mxu0 0.0
    %1009 = vmatprep.subr.mxu0 0.0
    %1010 = vmatpush1.msra.mxu0 0.0
    %1011 = vmatprep.subr.mxu0 0.0
    %1012 = vmatpush1.msra.mxu0 0.0
    %1013 = vmatprep.subr.mxu0 0.0
    %1014 = vmatpush1.msra.mxu0 0.0
    %1015 = vmatprep.subr.mxu0 0.0
    %1016 = vmatpush1.msra.mxu0 0.0
    %1017 = vmatprep.subr.mxu0 0.0
    %1018 = vmatpush1.msra.mxu0 0.0
    %1019 = vmatprep.subr.mxu0 0.0
    %1020 = vmatpush1.msra.mxu0 0.0
    %1021 = vmatprep.subr.mxu0 0.0
    %1022 = vmatpush1.msra.mxu0 0.0
    %1023 = vmatprep.subr.mxu0 0.0
    %1024 = vmatpush1.msra.mxu0 0.0
    %1025 = vmatprep.subr.mxu0 0.0
    %1026 = vmatpush1.msra.mxu0 0.0
    %1027 = vmatprep.subr.mxu0 0.0
    %1028 = vmatpush1.msra.mxu0 0.0
    %1029 = vmatprep.subr.mxu0 0.0
    %1030 = vmatpush1.msra.mxu0 0.0
    %1031 = vmatprep.subr.mxu0 0.0
    %1032 = vmatpush1.msra.mxu0 %v994
    %1033 = vmatprep.subr.mxu0 0.0
    %1034 = vmatpush1.msra.mxu0 %v992
    %1035 = vmatprep.subr.mxu0 0.0
    %1036 = vmatpush2.msra.mxu0 0.0
    %1037 = vmatprep.subr.mxu0 0.0
    %1038 = vmatpush2.msra.mxu0 0.0
    %1039 = vmatprep.subr.mxu0 0.0
    %1040 = vmatpush2.msra.mxu0 0.0
    %1041 = vmatprep.subr.mxu0 0.0
    %1042 = vmatpush2.msra.mxu0 0.0
    %1043 = vmatprep.subr.mxu0 0.0
    %1044 = vmatpush2.msra.mxu0 0.0
    %1045 = vmatprep.subr.mxu0 0.0
    %1046 = vmatpush2.msra.mxu0 0.0
    %1047 = vmatprep.subr.mxu0 0.0
    %1048 = vmatpush2.msra.mxu0 0.0
    %1049 = vmatprep.subr.mxu0 0.0
    %1050 = vmatpush2.msra.mxu0 0.0
    %1051 = vmatprep.subr.mxu0 0.0
    %1052 = vmatpush2.msra.mxu0 0.0
    %1053 = vmatprep.subr.mxu0 0.0
    %1054 = vmatpush2.msra.mxu0 0.0
    %1055 = vmatprep.subr.mxu0 0.0
    %1056 = vmatpush2.msra.mxu0 0.0
    %1057 = vmatprep.subr.mxu0 0.0
    %1058 = vmatpush2.msra.mxu0 0.0
    %1059 = vmatprep.subr.mxu0 0.0
    %1060 = vmatpush2.msra.mxu0 0.0
    %1061 = vmatprep.subr.mxu0 0.0
    %1062 = vmatpush2.msra.mxu0 0.0
    %1063 = vmatprep.subr.mxu0 0.0
    %1064 = vmatpush2.msra.mxu0 0.0
    %1065 = vmatprep.subr.mxu0 0.0
    %1066 = vmatpush2.msra.mxu0 0.0
    %1067 = vmatprep.mubr.f32.mxu0 0.0
    %1068 = vmatmul.mubr.f32.gmra.mxu0 %v998
    %v1069 = vpop.f32.mrf.mxu0
    %v1070 = vadd.f32 0.0, %v1069
    %v1071 = vpop.f32.mrf.mxu0
    %1072 = vmatprep.mubr.f32.mxu0 0.0
    %1073 = vmatmul.mubr.f32.gmra.mxu0 %v1001
    %v1074 = vpop.f32.mrf.mxu0
    %v1075 = vadd.f32 0.0, %v1074
    %v1076 = vpop.f32.mrf.mxu0
    %1077 = vdwg.mxu0
    %1080 = vrot.lane.b32.xlu0 %v662, 8
    %v1081 = vpop.permute.xlu0 %1080
    %1082 = vrot.lane.b32.xlu0 %v667, 8
    %v1083 = vpop.permute.xlu0 %1082
    %1088 = vrot.lane.b32.xlu0 %v866, 16
    %v1089 = vpop.permute.xlu0 %1088
    %1090 = vrot.lane.b32.xlu0 %v871, 16
    %v1091 = vpop.permute.xlu0 %1090
    %1096 = vrot.lane.b32.xlu0 %v1070, 24
    %v1097 = vpop.permute.xlu0 %1096
    %1098 = vrot.lane.b32.xlu0 %v1075, 24
    %v1099 = vpop.permute.xlu0 %1098
    %v1102 = vsel %vm268, %v458, %v1081
    %v1103 = vsel %vm268, %v463, %v1083
    %v1104 = vsel %vm356, %v1102, %v1089
    %v1105 = vsel %vm356, %v1103, %v1091
    %vm1106 = vcmask 195584
    %v1107 = vsel %vm1106, %v1104, %v1097
    %v1108 = vsel %vm1106, %v1105, %v1099
    %v1109 = vlaneseq
    %v1110 = vshrl.u32 %v1109, 7
    %v1111 = vsub.s32 0, %v1110
    %v1112 = vrot.slane %v261, %v1111
    %v1114 = vsel %vm58, %v1107, 0
    %v1117 = vsel %vm58, %v1108, 0
    %1119 = vmatprep.subr.mxu0 0.0
    %1120 = vmatpush1.msra.mxu0 0.0
    %1121 = vmatprep.subr.mxu0 0.0
    %1122 = vmatpush1.msra.mxu0 0.0
    %1123 = vmatprep.subr.mxu0 0.0
    %1124 = vmatpush1.msra.mxu0 0.0
    %1125 = vmatprep.subr.mxu0 0.0
    %1126 = vmatpush1.msra.mxu0 0.0
    %1127 = vmatprep.subr.mxu0 0.0
    %1128 = vmatpush1.msra.mxu0 0.0
    %1129 = vmatprep.subr.mxu0 0.0
    %1130 = vmatpush1.msra.mxu0 0.0
    %1131 = vmatprep.subr.mxu0 0.0
    %1132 = vmatpush1.msra.mxu0 0.0
    %1133 = vmatprep.subr.mxu0 0.0
    %1134 = vmatpush1.msra.mxu0 0.0
    %1135 = vmatprep.subr.mxu0 0.0
    %1136 = vmatpush1.msra.mxu0 0.0
    %1137 = vmatprep.subr.mxu0 0.0
    %1138 = vmatpush1.msra.mxu0 0.0
    %1139 = vmatprep.subr.mxu0 0.0
    %1140 = vmatpush1.msra.mxu0 0.0
    %1141 = vmatprep.subr.mxu0 0.0
    %1142 = vmatpush1.msra.mxu0 0.0
    %1143 = vmatprep.subr.mxu0 0.0
    %1144 = vmatpush1.msra.mxu0 %v260
    %1145 = vmatprep.subr.mxu0 0.0
    %1146 = vmatpush1.msra.mxu0 %v259
    %1147 = vmatprep.subr.mxu0 0.0
    %1148 = vmatpush1.msra.mxu0 %v258
    %1149 = vmatprep.subr.mxu0 0.0
    %1150 = vmatpush1.msra.mxu0 %v257
    %1151 = vmatprep.subr.mxu0 0.0
    %1152 = vmatpush2.msra.mxu0 0.0
    %1153 = vmatprep.subr.mxu0 0.0
    %1154 = vmatpush2.msra.mxu0 0.0
    %1155 = vmatprep.subr.mxu0 0.0
    %1156 = vmatpush2.msra.mxu0 0.0
    %1157 = vmatprep.subr.mxu0 0.0
    %1158 = vmatpush2.msra.mxu0 0.0
    %1159 = vmatprep.subr.mxu0 0.0
    %1160 = vmatpush2.msra.mxu0 0.0
    %1161 = vmatprep.subr.mxu0 0.0
    %1162 = vmatpush2.msra.mxu0 0.0
    %1163 = vmatprep.subr.mxu0 0.0
    %1164 = vmatpush2.msra.mxu0 0.0
    %1165 = vmatprep.subr.mxu0 0.0
    %1166 = vmatpush2.msra.mxu0 0.0
    %1167 = vmatprep.subr.mxu0 0.0
    %1168 = vmatpush2.msra.mxu0 0.0
    %1169 = vmatprep.subr.mxu0 0.0
    %1170 = vmatpush2.msra.mxu0 0.0
    %1171 = vmatprep.subr.mxu0 0.0
    %1172 = vmatpush2.msra.mxu0 0.0
    %1173 = vmatprep.subr.mxu0 0.0
    %1174 = vmatpush2.msra.mxu0 0.0
    %1175 = vmatprep.subr.mxu0 0.0
    %1176 = vmatpush2.msra.mxu0 0.0
    %1177 = vmatprep.subr.mxu0 0.0
    %1178 = vmatpush2.msra.mxu0 0.0
    %1179 = vmatprep.subr.mxu0 0.0
    %1180 = vmatpush2.msra.mxu0 0.0
    %1181 = vmatprep.subr.mxu0 0.0
    %1182 = vmatpush2.msra.mxu0 0.0
    %1183 = vmatprep.mubr.f32.mxu0 0.0
    %1184 = vmatmul.mubr.f32.gmra.mxu0 %v1114
    %v1185 = vpop.f32.mrf.mxu0
    %v1186 = vadd.f32 %v1112, %v1185
    %v1187 = vpop.f32.mrf.mxu0
    %1188 = vmatprep.mubr.f32.mxu0 0.0
    %1189 = vmatmul.mubr.f32.gmra.mxu0 %v1117
    %v1190 = vpop.f32.mrf.mxu0
    %v1191 = vadd.f32 %v1112, %v1190
    %v1192 = vpop.f32.mrf.mxu0
    %1193 = vdwg.mxu0
    %v1194 = vadd.f32 %v41, %v1186
    %v1195 = vadd.f32 %v42, %v1191
    %v1196 = vsel %vm58, %v1194, 0.0
    %1197 = vadd.xlane.f32.xlu0 %v1196
    %v1198 = vpop.xlane.xlu0 %1197
    %v1199 = vsel %vm58, %v1195, 0.0
    %1200 = vadd.xlane.f32.xlu0 %v1199
    %v1201 = vpop.xlane.xlu0 %1200
    %v1202 = vmul.f32 %v1198, %v146
    %v1203 = vmul.f32 %v1201, %v146
    %v1204 = vsub.f32 %v1194, %v1202
    %v1205 = vsub.f32 %v1195, %v1203
    %v1206 = vmul.f32 %v1204, %v1204
    %v1207 = vmul.f32 %v1205, %v1205
    %v1208 = vsel %vm58, %v1206, 0.0
    %1209 = vadd.xlane.f32.xlu0 %v1208
    %v1210 = vpop.xlane.xlu0 %1209
    %v1211 = vsel %vm58, %v1207, 0.0
    %1212 = vadd.xlane.f32.xlu0 %v1211
    %v1213 = vpop.xlane.xlu0 %1212
    %v1214 = vmul.f32 %v1210, %v146
    %v1215 = vmul.f32 %v1213, %v146
    %v1216 = vadd.f32 %v1214, 1e-05
    %v1217 = vadd.f32 %v1215, 1e-05
    %v1218 = vrsqrt.pop %v1216
    %v1219 = vrsqrt.pop %v1217
    %v1220 = vmul.f32 %v1204, %v1218
    %v1221 = vmul.f32 %v1205, %v1219
    %v1222 = vld [vmem:[#allocation2 + $0x20] sm:$0xff]
    %v1223 = vld [vmem:[#allocation2 + $0x28] sm:$0xff]
    %v1224 = vld [vmem:[#allocation2 + $0x30] sm:$0xff]
    %v1225 = vld [vmem:[#allocation2 + $0x38] sm:$0xff]
    %v1226 = vld [vmem:[%s6 + $0x1] sm:$0x1]
    %v1227 = vlaneseq
    %v1228 = vshrl.u32 %v1227, 7
    %v1229 = vsub.s32 0, %v1228
    %v1230 = vrot.slane %v1226, %v1229
    %v1232 = vsel %vm58, %v1220, 0
    %v1235 = vsel %vm58, %v1221, 0
    %1237 = vmatprep.subr.mxu0 0.0
    %1238 = vmatpush1.msra.mxu0 0.0
    %1239 = vmatprep.subr.mxu0 0.0
    %1240 = vmatpush1.msra.mxu0 0.0
    %1241 = vmatprep.subr.mxu0 0.0
    %1242 = vmatpush1.msra.mxu0 0.0
    %1243 = vmatprep.subr.mxu0 0.0
    %1244 = vmatpush1.msra.mxu0 0.0
    %1245 = vmatprep.subr.mxu0 0.0
    %1246 = vmatpush1.msra.mxu0 0.0
    %1247 = vmatprep.subr.mxu0 0.0
    %1248 = vmatpush1.msra.mxu0 0.0
    %1249 = vmatprep.subr.mxu0 0.0
    %1250 = vmatpush1.msra.mxu0 0.0
    %1251 = vmatprep.subr.mxu0 0.0
    %1252 = vmatpush1.msra.mxu0 0.0
    %1253 = vmatprep.subr.mxu0 0.0
    %1254 = vmatpush1.msra.mxu0 0.0
    %1255 = vmatprep.subr.mxu0 0.0
    %1256 = vmatpush1.msra.mxu0 0.0
    %1257 = vmatprep.subr.mxu0 0.0
    %1258 = vmatpush1.msra.mxu0 0.0
    %1259 = vmatprep.subr.mxu0 0.0
    %1260 = vmatpush1.msra.mxu0 0.0
    %1261 = vmatprep.subr.mxu0 0.0
    %1262 = vmatpush1.msra.mxu0 %v1225
    %1263 = vmatprep.subr.mxu0 0.0
    %1264 = vmatpush1.msra.mxu0 %v1224
    %1265 = vmatprep.subr.mxu0 0.0
    %1266 = vmatpush1.msra.mxu0 %v1223
    %1267 = vmatprep.subr.mxu0 0.0
    %1268 = vmatpush1.msra.mxu0 %v1222
    %1269 = vmatprep.subr.mxu0 0.0
    %1270 = vmatpush2.msra.mxu0 0.0
    %1271 = vmatprep.subr.mxu0 0.0
    %1272 = vmatpush2.msra.mxu0 0.0
    %1273 = vmatprep.subr.mxu0 0.0
    %1274 = vmatpush2.msra.mxu0 0.0
    %1275 = vmatprep.subr.mxu0 0.0
    %1276 = vmatpush2.msra.mxu0 0.0
    %1277 = vmatprep.subr.mxu0 0.0
    %1278 = vmatpush2.msra.mxu0 0.0
    %1279 = vmatprep.subr.mxu0 0.0
    %1280 = vmatpush2.msra.mxu0 0.0
    %1281 = vmatprep.subr.mxu0 0.0
    %1282 = vmatpush2.msra.mxu0 0.0
    %1283 = vmatprep.subr.mxu0 0.0
    %1284 = vmatpush2.msra.mxu0 0.0
    %1285 = vmatprep.subr.mxu0 0.0
    %1286 = vmatpush2.msra.mxu0 0.0
    %1287 = vmatprep.subr.mxu0 0.0
    %1288 = vmatpush2.msra.mxu0 0.0
    %1289 = vmatprep.subr.mxu0 0.0
    %1290 = vmatpush2.msra.mxu0 0.0
    %1291 = vmatprep.subr.mxu0 0.0
    %1292 = vmatpush2.msra.mxu0 0.0
    %1293 = vmatprep.subr.mxu0 0.0
    %1294 = vmatpush2.msra.mxu0 0.0
    %1295 = vmatprep.subr.mxu0 0.0
    %1296 = vmatpush2.msra.mxu0 0.0
    %1297 = vmatprep.subr.mxu0 0.0
    %1298 = vmatpush2.msra.mxu0 0.0
    %1299 = vmatprep.subr.mxu0 0.0
    %1300 = vmatpush2.msra.mxu0 0.0
    %1301 = vmatprep.mubr.f32.mxu0 0.0
    %1302 = vmatmul.mubr.f32.gmra.mxu0 %v1232
    %v1303 = vpop.f32.mrf.mxu0
    %v1304 = vadd.f32 %v1230, %v1303
    %v1305 = vpop.f32.mrf.mxu0
    %1306 = vmatprep.mubr.f32.mxu0 0.0
    %1307 = vmatmul.mubr.f32.gmra.mxu0 %v1235
    %v1308 = vpop.f32.mrf.mxu0
    %v1309 = vadd.f32 %v1230, %v1308
    %v1310 = vpop.f32.mrf.mxu0
    %1311 = vdwg.mxu0
    %v1312 = vld [vmem:[#allocation2 + $0x60] sm:$0xff]
    %v1313 = vld [vmem:[#allocation2 + $0x68] sm:$0xff]
    %v1314 = vld [vmem:[#allocation2 + $0x70] sm:$0xff]
    %v1315 = vld [vmem:[#allocation2 + $0x78] sm:$0xff]
    %v1316 = vld [vmem:[%s6 + $0x3] sm:$0x1]
    %v1318 = vsel %vm268, %v1304, 0
    %v1321 = vsel %vm268, %v1309, 0
    %v1324 = vsel %vm268, %v132, 0
    %v1327 = vsel %vm268, %v137, 0
    %1329 = vmatprep.subr.mxu0 0.0
    %1330 = vmatpush1.xpose.msra.mxu0 0.0
    %1331 = vmatprep.subr.mxu0 0.0
    %1332 = vmatpush1.xpose.msra.mxu0 0.0
    %1333 = vmatprep.subr.mxu0 0.0
    %1334 = vmatpush1.xpose.msra.mxu0 0.0
    %1335 = vmatprep.subr.mxu0 0.0
    %1336 = vmatpush1.xpose.msra.mxu0 0.0
    %1337 = vmatprep.subr.mxu0 0.0
    %1338 = vmatpush1.xpose.msra.mxu0 0.0
    %1339 = vmatprep.subr.mxu0 0.0
    %1340 = vmatpush1.xpose.msra.mxu0 0.0
    %1341 = vmatprep.subr.mxu0 0.0
    %1342 = vmatpush1.xpose.msra.mxu0 0.0
    %1343 = vmatprep.subr.mxu0 0.0
    %1344 = vmatpush1.xpose.msra.mxu0 0.0
    %1345 = vmatprep.subr.mxu0 0.0
    %1346 = vmatpush1.xpose.msra.mxu0 0.0
    %1347 = vmatprep.subr.mxu0 0.0
    %1348 = vmatpush1.xpose.msra.mxu0 0.0
    %1349 = vmatprep.subr.mxu0 0.0
    %1350 = vmatpush1.xpose.msra.mxu0 0.0
    %1351 = vmatprep.subr.mxu0 0.0
    %1352 = vmatpush1.xpose.msra.mxu0 0.0
    %1353 = vmatprep.subr.mxu0 0.0
    %1354 = vmatpush1.xpose.msra.mxu0 0.0
    %1355 = vmatprep.subr.mxu0 0.0
    %1356 = vmatpush1.xpose.msra.mxu0 0.0
    %1357 = vmatprep.subr.mxu0 0.0
    %1358 = vmatpush1.xpose.msra.mxu0 %v1327
    %1359 = vmatprep.subr.mxu0 0.0
    %1360 = vmatpush1.xpose.msra.mxu0 %v1324
    %1361 = vmatprep.subr.mxu0 0.0
    %1362 = vmatpush2.xpose.msra.mxu0 0.0
    %1363 = vmatprep.subr.mxu0 0.0
    %1364 = vmatpush2.xpose.msra.mxu0 0.0
    %1365 = vmatprep.subr.mxu0 0.0
    %1366 = vmatpush2.xpose.msra.mxu0 0.0
    %1367 = vmatprep.subr.mxu0 0.0
    %1368 = vmatpush2.xpose.msra.mxu0 0.0
    %1369 = vmatprep.subr.mxu0 0.0
    %1370 = vmatpush2.xpose.msra.mxu0 0.0
    %1371 = vmatprep.subr.mxu0 0.0
    %1372 = vmatpush2.xpose.msra.mxu0 0.0
    %1373 = vmatprep.subr.mxu0 0.0
    %1374 = vmatpush2.xpose.msra.mxu0 0.0
    %1375 = vmatprep.subr.mxu0 0.0
    %1376 = vmatpush2.xpose.msra.mxu0 0.0
    %1377 = vmatprep.subr.mxu0 0.0
    %1378 = vmatpush2.xpose.msra.mxu0 0.0
    %1379 = vmatprep.subr.mxu0 0.0
    %1380 = vmatpush2.xpose.msra.mxu0 0.0
    %1381 = vmatprep.subr.mxu0 0.0
    %1382 = vmatpush2.xpose.msra.mxu0 0.0
    %1383 = vmatprep.subr.mxu0 0.0
    %1384 = vmatpush2.xpose.msra.mxu0 0.0
    %1385 = vmatprep.subr.mxu0 0.0
    %1386 = vmatpush2.xpose.msra.mxu0 0.0
    %1387 = vmatprep.subr.mxu0 0.0
    %1388 = vmatpush2.xpose.msra.mxu0 0.0
    %1389 = vmatprep.subr.mxu0 0.0
    %1390 = vmatpush2.xpose.msra.mxu0 0.0
    %1391 = vmatprep.subr.mxu0 0.0
    %1392 = vmatpush2.xpose.msra.mxu0 0.0
    %1393 = vmatprep.mubr.f32.mxu0 0.0
    %1394 = vmatmul.mubr.f32.gmra.mxu0 %v1318
    %v1395 = vpop.f32.mrf.mxu0
    %v1396 = vadd.f32 0.0, %v1395
    %v1397 = vpop.f32.mrf.mxu0
    %1398 = vmatprep.mubr.f32.mxu0 0.0
    %1399 = vmatmul.mubr.f32.gmra.mxu0 %v1321
    %v1400 = vpop.f32.mrf.mxu0
    %v1401 = vadd.f32 0.0, %v1400
    %v1402 = vpop.f32.mrf.mxu0
    %1403 = vdwg.mxu0
    %v1404 = vmul.f32 %v1396, 0.35355338
    %v1405 = vmul.f32 %v1401, 0.35355338
    %v1406 = vadd.f32 %v1404, %v47
    %v1407 = vadd.f32 %v1405, %v48
    %v1408 = vsel %vm356, %v1406, -inf
    %1409 = vmax.xlane.f32.xlu0 %v1408
    %v1410 = vpop.xlane.xlu0 %1409
    %v1411 = vsel %vm356, %v1407, -inf
    %1412 = vmax.xlane.f32.xlu0 %v1411
    %v1413 = vpop.xlane.xlu0 %1412
    %v1414 = vsub.f32 %v1406, %v1410
    %v1415 = vsub.f32 %v1407, %v1413
    %v1416 = vmul.f32 %v1414, 1.442695
    %v1417 = vpow.pop %v1416
    %v1418 = vmul.f32 %v1415, 1.442695
    %v1419 = vpow.pop %v1418
    %v1420 = vsel %vm356, %v1417, 0.0
    %1421 = vadd.xlane.f32.xlu0 %v1420
    %v1422 = vpop.xlane.xlu0 %1421
    %v1423 = vsel %vm356, %v1419, 0.0
    %1424 = vadd.xlane.f32.xlu0 %v1423
    %v1425 = vpop.xlane.xlu0 %1424
    %v1426 = vrcp.pop %v1422
    %v1427 = vrcp.pop %v1425
    %v1428 = vmul.f32 %v1417, %v1426
    %v1429 = vmul.f32 %v1419, %v1427
    %1430 = vrot.lane.b32.xlu0 %v132, 96
    %v1431 = vpop.permute.xlu0 %1430
    %1432 = vrot.lane.b32.xlu0 %v137, 96
    %v1433 = vpop.permute.xlu0 %1432
    %v1437 = vsel %vm356, %v1428, 0
    %v1440 = vsel %vm356, %v1429, 0
    %1442 = vmatprep.subr.mxu0 0.0
    %1443 = vmatpush1.msra.mxu0 0.0
    %1444 = vmatprep.subr.mxu0 0.0
    %1445 = vmatpush1.msra.mxu0 0.0
    %1446 = vmatprep.subr.mxu0 0.0
    %1447 = vmatpush1.msra.mxu0 0.0
    %1448 = vmatprep.subr.mxu0 0.0
    %1449 = vmatpush1.msra.mxu0 0.0
    %1450 = vmatprep.subr.mxu0 0.0
    %1451 = vmatpush1.msra.mxu0 0.0
    %1452 = vmatprep.subr.mxu0 0.0
    %1453 = vmatpush1.msra.mxu0 0.0
    %1454 = vmatprep.subr.mxu0 0.0
    %1455 = vmatpush1.msra.mxu0 0.0
    %1456 = vmatprep.subr.mxu0 0.0
    %1457 = vmatpush1.msra.mxu0 0.0
    %1458 = vmatprep.subr.mxu0 0.0
    %1459 = vmatpush1.msra.mxu0 0.0
    %1460 = vmatprep.subr.mxu0 0.0
    %1461 = vmatpush1.msra.mxu0 0.0
    %1462 = vmatprep.subr.mxu0 0.0
    %1463 = vmatpush1.msra.mxu0 0.0
    %1464 = vmatprep.subr.mxu0 0.0
    %1465 = vmatpush1.msra.mxu0 0.0
    %1466 = vmatprep.subr.mxu0 0.0
    %1467 = vmatpush1.msra.mxu0 0.0
    %1468 = vmatprep.subr.mxu0 0.0
    %1469 = vmatpush1.msra.mxu0 0.0
    %1470 = vmatprep.subr.mxu0 0.0
    %1471 = vmatpush1.msra.mxu0 %v1433
    %1472 = vmatprep.subr.mxu0 0.0
    %1473 = vmatpush1.msra.mxu0 %v1431
    %1474 = vmatprep.subr.mxu0 0.0
    %1475 = vmatpush2.msra.mxu0 0.0
    %1476 = vmatprep.subr.mxu0 0.0
    %1477 = vmatpush2.msra.mxu0 0.0
    %1478 = vmatprep.subr.mxu0 0.0
    %1479 = vmatpush2.msra.mxu0 0.0
    %1480 = vmatprep.subr.mxu0 0.0
    %1481 = vmatpush2.msra.mxu0 0.0
    %1482 = vmatprep.subr.mxu0 0.0
    %1483 = vmatpush2.msra.mxu0 0.0
    %1484 = vmatprep.subr.mxu0 0.0
    %1485 = vmatpush2.msra.mxu0 0.0
    %1486 = vmatprep.subr.mxu0 0.0
    %1487 = vmatpush2.msra.mxu0 0.0
    %1488 = vmatprep.subr.mxu0 0.0
    %1489 = vmatpush2.msra.mxu0 0.0
    %1490 = vmatprep.subr.mxu0 0.0
    %1491 = vmatpush2.msra.mxu0 0.0
    %1492 = vmatprep.subr.mxu0 0.0
    %1493 = vmatpush2.msra.mxu0 0.0
    %1494 = vmatprep.subr.mxu0 0.0
    %1495 = vmatpush2.msra.mxu0 0.0
    %1496 = vmatprep.subr.mxu0 0.0
    %1497 = vmatpush2.msra.mxu0 0.0
    %1498 = vmatprep.subr.mxu0 0.0
    %1499 = vmatpush2.msra.mxu0 0.0
    %1500 = vmatprep.subr.mxu0 0.0
    %1501 = vmatpush2.msra.mxu0 0.0
    %1502 = vmatprep.subr.mxu0 0.0
    %1503 = vmatpush2.msra.mxu0 0.0
    %1504 = vmatprep.subr.mxu0 0.0
    %1505 = vmatpush2.msra.mxu0 0.0
    %1506 = vmatprep.mubr.f32.mxu0 0.0
    %1507 = vmatmul.mubr.f32.gmra.mxu0 %v1437
    %v1508 = vpop.f32.mrf.mxu0
    %v1509 = vadd.f32 0.0, %v1508
    %v1510 = vpop.f32.mrf.mxu0
    %1511 = vmatprep.mubr.f32.mxu0 0.0
    %1512 = vmatmul.mubr.f32.gmra.mxu0 %v1440
    %v1513 = vpop.f32.mrf.mxu0
    %v1514 = vadd.f32 0.0, %v1513
    %v1515 = vpop.f32.mrf.mxu0
    %1516 = vdwg.mxu0
    %1517 = vrot.lane.b32.xlu0 %v1304, 120
    %v1518 = vpop.permute.xlu0 %1517
    %1519 = vrot.lane.b32.xlu0 %v1309, 120
    %v1520 = vpop.permute.xlu0 %1519
    %1521 = vrot.lane.b32.xlu0 %v132, 120
    %v1522 = vpop.permute.xlu0 %1521
    %1523 = vrot.lane.b32.xlu0 %v137, 120
    %v1524 = vpop.permute.xlu0 %1523
    %v1525 = vsel %vm268, %v1518, 0
    %v1527 = vsel %vm268, %v1520, 0
    %v1529 = vsel %vm268, %v1522, 0
    %v1531 = vsel %vm268, %v1524, 0
    %1533 = vmatprep.subr.mxu0 0.0
    %1534 = vmatpush1.xpose.msra.mxu0 0.0
    %1535 = vmatprep.subr.mxu0 0.0
    %1536 = vmatpush1.xpose.msra.mxu0 0.0
    %1537 = vmatprep.subr.mxu0 0.0
    %1538 = vmatpush1.xpose.msra.mxu0 0.0
    %1539 = vmatprep.subr.mxu0 0.0
    %1540 = vmatpush1.xpose.msra.mxu0 0.0
    %1541 = vmatprep.subr.mxu0 0.0
    %1542 = vmatpush1.xpose.msra.mxu0 0.0
    %1543 = vmatprep.subr.mxu0 0.0
    %1544 = vmatpush1.xpose.msra.mxu0 0.0
    %1545 = vmatprep.subr.mxu0 0.0
    %1546 = vmatpush1.xpose.msra.mxu0 0.0
    %1547 = vmatprep.subr.mxu0 0.0
    %1548 = vmatpush1.xpose.msra.mxu0 0.0
    %1549 = vmatprep.subr.mxu0 0.0
    %1550 = vmatpush1.xpose.msra.mxu0 0.0
    %1551 = vmatprep.subr.mxu0 0.0
    %1552 = vmatpush1.xpose.msra.mxu0 0.0
    %1553 = vmatprep.subr.mxu0 0.0
    %1554 = vmatpush1.xpose.msra.mxu0 0.0
    %1555 = vmatprep.subr.mxu0 0.0
    %1556 = vmatpush1.xpose.msra.mxu0 0.0
    %1557 = vmatprep.subr.mxu0 0.0
    %1558 = vmatpush1.xpose.msra.mxu0 0.0
    %1559 = vmatprep.subr.mxu0 0.0
    %1560 = vmatpush1.xpose.msra.mxu0 0.0
    %1561 = vmatprep.subr.mxu0 0.0
    %1562 = vmatpush1.xpose.msra.mxu0 %v1531
    %1563 = vmatprep.subr.mxu0 0.0
    %1564 = vmatpush1.xpose.msra.mxu0 %v1529
    %1565 = vmatprep.subr.mxu0 0.0
    %1566 = vmatpush2.xpose.msra.mxu0 0.0
    %1567 = vmatprep.subr.mxu0 0.0
    %1568 = vmatpush2.xpose.msra.mxu0 0.0
    %1569 = vmatprep.subr.mxu0 0.0
    %1570 = vmatpush2.xpose.msra.mxu0 0.0
    %1571 = vmatprep.subr.mxu0 0.0
    %1572 = vmatpush2.xpose.msra.mxu0 0.0
    %1573 = vmatprep.subr.mxu0 0.0
    %1574 = vmatpush2.xpose.msra.mxu0 0.0
    %1575 = vmatprep.subr.mxu0 0.0
    %1576 = vmatpush2.xpose.msra.mxu0 0.0
    %1577 = vmatprep.subr.mxu0 0.0
    %1578 = vmatpush2.xpose.msra.mxu0 0.0
    %1579 = vmatprep.subr.mxu0 0.0
    %1580 = vmatpush2.xpose.msra.mxu0 0.0
    %1581 = vmatprep.subr.mxu0 0.0
    %1582 = vmatpush2.xpose.msra.mxu0 0.0
    %1583 = vmatprep.subr.mxu0 0.0
    %1584 = vmatpush2.xpose.msra.mxu0 0.0
    %1585 = vmatprep.subr.mxu0 0.0
    %1586 = vmatpush2.xpose.msra.mxu0 0.0
    %1587 = vmatprep.subr.mxu0 0.0
    %1588 = vmatpush2.xpose.msra.mxu0 0.0
    %1589 = vmatprep.subr.mxu0 0.0
    %1590 = vmatpush2.xpose.msra.mxu0 0.0
    %1591 = vmatprep.subr.mxu0 0.0
    %1592 = vmatpush2.xpose.msra.mxu0 0.0
    %1593 = vmatprep.subr.mxu0 0.0
    %1594 = vmatpush2.xpose.msra.mxu0 0.0
    %1595 = vmatprep.subr.mxu0 0.0
    %1596 = vmatpush2.xpose.msra.mxu0 0.0
    %1597 = vmatprep.mubr.f32.mxu0 0.0
    %1598 = vmatmul.mubr.f32.gmra.mxu0 %v1525
    %v1599 = vpop.f32.mrf.mxu0
    %v1600 = vadd.f32 0.0, %v1599
    %v1601 = vpop.f32.mrf.mxu0
    %1602 = vmatprep.mubr.f32.mxu0 0.0
    %1603 = vmatmul.mubr.f32.gmra.mxu0 %v1527
    %v1604 = vpop.f32.mrf.mxu0
    %v1605 = vadd.f32 0.0, %v1604
    %v1606 = vpop.f32.mrf.mxu0
    %1607 = vdwg.mxu0
    %v1608 = vmul.f32 %v1600, 0.35355338
    %v1609 = vmul.f32 %v1605, 0.35355338
    %v1610 = vadd.f32 %v1608, %v47
    %v1611 = vadd.f32 %v1609, %v48
    %v1612 = vsel %vm356, %v1610, -inf
    %1613 = vmax.xlane.f32.xlu0 %v1612
    %v1614 = vpop.xlane.xlu0 %1613
    %v1615 = vsel %vm356, %v1611, -inf
    %1616 = vmax.xlane.f32.xlu0 %v1615
    %v1617 = vpop.xlane.xlu0 %1616
    %v1618 = vsub.f32 %v1610, %v1614
    %v1619 = vsub.f32 %v1611, %v1617
    %v1620 = vmul.f32 %v1618, 1.442695
    %v1621 = vpow.pop %v1620
    %v1622 = vmul.f32 %v1619, 1.442695
    %v1623 = vpow.pop %v1622
    %v1624 = vsel %vm356, %v1621, 0.0
    %1625 = vadd.xlane.f32.xlu0 %v1624
    %v1626 = vpop.xlane.xlu0 %1625
    %v1627 = vsel %vm356, %v1623, 0.0
    %1628 = vadd.xlane.f32.xlu0 %v1627
    %v1629 = vpop.xlane.xlu0 %1628
    %v1630 = vrcp.pop %v1626
    %v1631 = vrcp.pop %v1629
    %v1632 = vmul.f32 %v1621, %v1630
    %v1633 = vmul.f32 %v1623, %v1631
    %1634 = vrot.lane.b32.xlu0 %v132, 88
    %v1635 = vpop.permute.xlu0 %1634
    %1636 = vrot.lane.b32.xlu0 %v137, 88
    %v1637 = vpop.permute.xlu0 %1636
    %v1641 = vsel %vm356, %v1632, 0
    %v1644 = vsel %vm356, %v1633, 0
    %1646 = vmatprep.subr.mxu0 0.0
    %1647 = vmatpush1.msra.mxu0 0.0
    %1648 = vmatprep.subr.mxu0 0.0
    %1649 = vmatpush1.msra.mxu0 0.0
    %1650 = vmatprep.subr.mxu0 0.0
    %1651 = vmatpush1.msra.mxu0 0.0
    %1652 = vmatprep.subr.mxu0 0.0
    %1653 = vmatpush1.msra.mxu0 0.0
    %1654 = vmatprep.subr.mxu0 0.0
    %1655 = vmatpush1.msra.mxu0 0.0
    %1656 = vmatprep.subr.mxu0 0.0
    %1657 = vmatpush1.msra.mxu0 0.0
    %1658 = vmatprep.subr.mxu0 0.0
    %1659 = vmatpush1.msra.mxu0 0.0
    %1660 = vmatprep.subr.mxu0 0.0
    %1661 = vmatpush1.msra.mxu0 0.0
    %1662 = vmatprep.subr.mxu0 0.0
    %1663 = vmatpush1.msra.mxu0 0.0
    %1664 = vmatprep.subr.mxu0 0.0
    %1665 = vmatpush1.msra.mxu0 0.0
    %1666 = vmatprep.subr.mxu0 0.0
    %1667 = vmatpush1.msra.mxu0 0.0
    %1668 = vmatprep.subr.mxu0 0.0
    %1669 = vmatpush1.msra.mxu0 0.0
    %1670 = vmatprep.subr.mxu0 0.0
    %1671 = vmatpush1.msra.mxu0 0.0
    %1672 = vmatprep.subr.mxu0 0.0
    %1673 = vmatpush1.msra.mxu0 0.0
    %1674 = vmatprep.subr.mxu0 0.0
    %1675 = vmatpush1.msra.mxu0 %v1637
    %1676 = vmatprep.subr.mxu0 0.0
    %1677 = vmatpush1.msra.mxu0 %v1635
    %1678 = vmatprep.subr.mxu0 0.0
    %1679 = vmatpush2.msra.mxu0 0.0
    %1680 = vmatprep.subr.mxu0 0.0
    %1681 = vmatpush2.msra.mxu0 0.0
    %1682 = vmatprep.subr.mxu0 0.0
    %1683 = vmatpush2.msra.mxu0 0.0
    %1684 = vmatprep.subr.mxu0 0.0
    %1685 = vmatpush2.msra.mxu0 0.0
    %1686 = vmatprep.subr.mxu0 0.0
    %1687 = vmatpush2.msra.mxu0 0.0
    %1688 = vmatprep.subr.mxu0 0.0
    %1689 = vmatpush2.msra.mxu0 0.0
    %1690 = vmatprep.subr.mxu0 0.0
    %1691 = vmatpush2.msra.mxu0 0.0
    %1692 = vmatprep.subr.mxu0 0.0
    %1693 = vmatpush2.msra.mxu0 0.0
    %1694 = vmatprep.subr.mxu0 0.0
    %1695 = vmatpush2.msra.mxu0 0.0
    %1696 = vmatprep.subr.mxu0 0.0
    %1697 = vmatpush2.msra.mxu0 0.0
    %1698 = vmatprep.subr.mxu0 0.0
    %1699 = vmatpush2.msra.mxu0 0.0
    %1700 = vmatprep.subr.mxu0 0.0
    %1701 = vmatpush2.msra.mxu0 0.0
    %1702 = vmatprep.subr.mxu0 0.0
    %1703 = vmatpush2.msra.mxu0 0.0
    %1704 = vmatprep.subr.mxu0 0.0
    %1705 = vmatpush2.msra.mxu0 0.0
    %1706 = vmatprep.subr.mxu0 0.0
    %1707 = vmatpush2.msra.mxu0 0.0
    %1708 = vmatprep.subr.mxu0 0.0
    %1709 = vmatpush2.msra.mxu0 0.0
    %1710 = vmatprep.mubr.f32.mxu0 0.0
    %1711 = vmatmul.mubr.f32.gmra.mxu0 %v1641
    %v1712 = vpop.f32.mrf.mxu0
    %v1713 = vadd.f32 0.0, %v1712
    %v1714 = vpop.f32.mrf.mxu0
    %1715 = vmatprep.mubr.f32.mxu0 0.0
    %1716 = vmatmul.mubr.f32.gmra.mxu0 %v1644
    %v1717 = vpop.f32.mrf.mxu0
    %v1718 = vadd.f32 0.0, %v1717
    %v1719 = vpop.f32.mrf.mxu0
    %1720 = vdwg.mxu0
    %1721 = vrot.lane.b32.xlu0 %v1304, 112
    %v1722 = vpop.permute.xlu0 %1721
    %1723 = vrot.lane.b32.xlu0 %v1309, 112
    %v1724 = vpop.permute.xlu0 %1723
    %1725 = vrot.lane.b32.xlu0 %v132, 112
    %v1726 = vpop.permute.xlu0 %1725
    %1727 = vrot.lane.b32.xlu0 %v137, 112
    %v1728 = vpop.permute.xlu0 %1727
    %v1729 = vsel %vm268, %v1722, 0
    %v1731 = vsel %vm268, %v1724, 0
    %v1733 = vsel %vm268, %v1726, 0
    %v1735 = vsel %vm268, %v1728, 0
    %1737 = vmatprep.subr.mxu0 0.0
    %1738 = vmatpush1.xpose.msra.mxu0 0.0
    %1739 = vmatprep.subr.mxu0 0.0
    %1740 = vmatpush1.xpose.msra.mxu0 0.0
    %1741 = vmatprep.subr.mxu0 0.0
    %1742 = vmatpush1.xpose.msra.mxu0 0.0
    %1743 = vmatprep.subr.mxu0 0.0
    %1744 = vmatpush1.xpose.msra.mxu0 0.0
    %1745 = vmatprep.subr.mxu0 0.0
    %1746 = vmatpush1.xpose.msra.mxu0 0.0
    %1747 = vmatprep.subr.mxu0 0.0
    %1748 = vmatpush1.xpose.msra.mxu0 0.0
    %1749 = vmatprep.subr.mxu0 0.0
    %1750 = vmatpush1.xpose.msra.mxu0 0.0
    %1751 = vmatprep.subr.mxu0 0.0
    %1752 = vmatpush1.xpose.msra.mxu0 0.0
    %1753 = vmatprep.subr.mxu0 0.0
    %1754 = vmatpush1.xpose.msra.mxu0 0.0
    %1755 = vmatprep.subr.mxu0 0.0
    %1756 = vmatpush1.xpose.msra.mxu0 0.0
    %1757 = vmatprep.subr.mxu0 0.0
    %1758 = vmatpush1.xpose.msra.mxu0 0.0
    %1759 = vmatprep.subr.mxu0 0.0
    %1760 = vmatpush1.xpose.msra.mxu0 0.0
    %1761 = vmatprep.subr.mxu0 0.0
    %1762 = vmatpush1.xpose.msra.mxu0 0.0
    %1763 = vmatprep.subr.mxu0 0.0
    %1764 = vmatpush1.xpose.msra.mxu0 0.0
    %1765 = vmatprep.subr.mxu0 0.0
    %1766 = vmatpush1.xpose.msra.mxu0 %v1735
    %1767 = vmatprep.subr.mxu0 0.0
    %1768 = vmatpush1.xpose.msra.mxu0 %v1733
    %1769 = vmatprep.subr.mxu0 0.0
    %1770 = vmatpush2.xpose.msra.mxu0 0.0
    %1771 = vmatprep.subr.mxu0 0.0
    %1772 = vmatpush2.xpose.msra.mxu0 0.0
    %1773 = vmatprep.subr.mxu0 0.0
    %1774 = vmatpush2.xpose.msra.mxu0 0.0
    %1775 = vmatprep.subr.mxu0 0.0
    %1776 = vmatpush2.xpose.msra.mxu0 0.0
    %1777 = vmatprep.subr.mxu0 0.0
    %1778 = vmatpush2.xpose.msra.mxu0 0.0
    %1779 = vmatprep.subr.mxu0 0.0
    %1780 = vmatpush2.xpose.msra.mxu0 0.0
    %1781 = vmatprep.subr.mxu0 0.0
    %1782 = vmatpush2.xpose.msra.mxu0 0.0
    %1783 = vmatprep.subr.mxu0 0.0
    %1784 = vmatpush2.xpose.msra.mxu0 0.0
    %1785 = vmatprep.subr.mxu0 0.0
    %1786 = vmatpush2.xpose.msra.mxu0 0.0
    %1787 = vmatprep.subr.mxu0 0.0
    %1788 = vmatpush2.xpose.msra.mxu0 0.0
    %1789 = vmatprep.subr.mxu0 0.0
    %1790 = vmatpush2.xpose.msra.mxu0 0.0
    %1791 = vmatprep.subr.mxu0 0.0
    %1792 = vmatpush2.xpose.msra.mxu0 0.0
    %1793 = vmatprep.subr.mxu0 0.0
    %1794 = vmatpush2.xpose.msra.mxu0 0.0
    %1795 = vmatprep.subr.mxu0 0.0
    %1796 = vmatpush2.xpose.msra.mxu0 0.0
    %1797 = vmatprep.subr.mxu0 0.0
    %1798 = vmatpush2.xpose.msra.mxu0 0.0
    %1799 = vmatprep.subr.mxu0 0.0
    %1800 = vmatpush2.xpose.msra.mxu0 0.0
    %1801 = vmatprep.mubr.f32.mxu0 0.0
    %1802 = vmatmul.mubr.f32.gmra.mxu0 %v1729
    %v1803 = vpop.f32.mrf.mxu0
    %v1804 = vadd.f32 0.0, %v1803
    %v1805 = vpop.f32.mrf.mxu0
    %1806 = vmatprep.mubr.f32.mxu0 0.0
    %1807 = vmatmul.mubr.f32.gmra.mxu0 %v1731
    %v1808 = vpop.f32.mrf.mxu0
    %v1809 = vadd.f32 0.0, %v1808
    %v1810 = vpop.f32.mrf.mxu0
    %1811 = vdwg.mxu0
    %v1812 = vmul.f32 %v1804, 0.35355338
    %v1813 = vmul.f32 %v1809, 0.35355338
    %v1814 = vadd.f32 %v1812, %v47
    %v1815 = vadd.f32 %v1813, %v48
    %v1816 = vsel %vm356, %v1814, -inf
    %1817 = vmax.xlane.f32.xlu0 %v1816
    %v1818 = vpop.xlane.xlu0 %1817
    %v1819 = vsel %vm356, %v1815, -inf
    %1820 = vmax.xlane.f32.xlu0 %v1819
    %v1821 = vpop.xlane.xlu0 %1820
    %v1822 = vsub.f32 %v1814, %v1818
    %v1823 = vsub.f32 %v1815, %v1821
    %v1824 = vmul.f32 %v1822, 1.442695
    %v1825 = vpow.pop %v1824
    %v1826 = vmul.f32 %v1823, 1.442695
    %v1827 = vpow.pop %v1826
    %v1828 = vsel %vm356, %v1825, 0.0
    %1829 = vadd.xlane.f32.xlu0 %v1828
    %v1830 = vpop.xlane.xlu0 %1829
    %v1831 = vsel %vm356, %v1827, 0.0
    %1832 = vadd.xlane.f32.xlu0 %v1831
    %v1833 = vpop.xlane.xlu0 %1832
    %v1834 = vrcp.pop %v1830
    %v1835 = vrcp.pop %v1833
    %v1836 = vmul.f32 %v1825, %v1834
    %v1837 = vmul.f32 %v1827, %v1835
    %1838 = vrot.lane.b32.xlu0 %v132, 80
    %v1839 = vpop.permute.xlu0 %1838
    %1840 = vrot.lane.b32.xlu0 %v137, 80
    %v1841 = vpop.permute.xlu0 %1840
    %v1845 = vsel %vm356, %v1836, 0
    %v1848 = vsel %vm356, %v1837, 0
    %1850 = vmatprep.subr.mxu0 0.0
    %1851 = vmatpush1.msra.mxu0 0.0
    %1852 = vmatprep.subr.mxu0 0.0
    %1853 = vmatpush1.msra.mxu0 0.0
    %1854 = vmatprep.subr.mxu0 0.0
    %1855 = vmatpush1.msra.mxu0 0.0
    %1856 = vmatprep.subr.mxu0 0.0
    %1857 = vmatpush1.msra.mxu0 0.0
    %1858 = vmatprep.subr.mxu0 0.0
    %1859 = vmatpush1.msra.mxu0 0.0
    %1860 = vmatprep.subr.mxu0 0.0
    %1861 = vmatpush1.msra.mxu0 0.0
    %1862 = vmatprep.subr.mxu0 0.0
    %1863 = vmatpush1.msra.mxu0 0.0
    %1864 = vmatprep.subr.mxu0 0.0
    %1865 = vmatpush1.msra.mxu0 0.0
    %1866 = vmatprep.subr.mxu0 0.0
    %1867 = vmatpush1.msra.mxu0 0.0
    %1868 = vmatprep.subr.mxu0 0.0
    %1869 = vmatpush1.msra.mxu0 0.0
    %1870 = vmatprep.subr.mxu0 0.0
    %1871 = vmatpush1.msra.mxu0 0.0
    %1872 = vmatprep.subr.mxu0 0.0
    %1873 = vmatpush1.msra.mxu0 0.0
    %1874 = vmatprep.subr.mxu0 0.0
    %1875 = vmatpush1.msra.mxu0 0.0
    %1876 = vmatprep.subr.mxu0 0.0
    %1877 = vmatpush1.msra.mxu0 0.0
    %1878 = vmatprep.subr.mxu0 0.0
    %1879 = vmatpush1.msra.mxu0 %v1841
    %1880 = vmatprep.subr.mxu0 0.0
    %1881 = vmatpush1.msra.mxu0 %v1839
    %1882 = vmatprep.subr.mxu0 0.0
    %1883 = vmatpush2.msra.mxu0 0.0
    %1884 = vmatprep.subr.mxu0 0.0
    %1885 = vmatpush2.msra.mxu0 0.0
    %1886 = vmatprep.subr.mxu0 0.0
    %1887 = vmatpush2.msra.mxu0 0.0
    %1888 = vmatprep.subr.mxu0 0.0
    %1889 = vmatpush2.msra.mxu0 0.0
    %1890 = vmatprep.subr.mxu0 0.0
    %1891 = vmatpush2.msra.mxu0 0.0
    %1892 = vmatprep.subr.mxu0 0.0
    %1893 = vmatpush2.msra.mxu0 0.0
    %1894 = vmatprep.subr.mxu0 0.0
    %1895 = vmatpush2.msra.mxu0 0.0
    %1896 = vmatprep.subr.mxu0 0.0
    %1897 = vmatpush2.msra.mxu0 0.0
    %1898 = vmatprep.subr.mxu0 0.0
    %1899 = vmatpush2.msra.mxu0 0.0
    %1900 = vmatprep.subr.mxu0 0.0
    %1901 = vmatpush2.msra.mxu0 0.0
    %1902 = vmatprep.subr.mxu0 0.0
    %1903 = vmatpush2.msra.mxu0 0.0
    %1904 = vmatprep.subr.mxu0 0.0
    %1905 = vmatpush2.msra.mxu0 0.0
    %1906 = vmatprep.subr.mxu0 0.0
    %1907 = vmatpush2.msra.mxu0 0.0
    %1908 = vmatprep.subr.mxu0 0.0
    %1909 = vmatpush2.msra.mxu0 0.0
    %1910 = vmatprep.subr.mxu0 0.0
    %1911 = vmatpush2.msra.mxu0 0.0
    %1912 = vmatprep.subr.mxu0 0.0
    %1913 = vmatpush2.msra.mxu0 0.0
    %1914 = vmatprep.mubr.f32.mxu0 0.0
    %1915 = vmatmul.mubr.f32.gmra.mxu0 %v1845
    %v1916 = vpop.f32.mrf.mxu0
    %v1917 = vadd.f32 0.0, %v1916
    %v1918 = vpop.f32.mrf.mxu0
    %1919 = vmatprep.mubr.f32.mxu0 0.0
    %1920 = vmatmul.mubr.f32.gmra.mxu0 %v1848
    %v1921 = vpop.f32.mrf.mxu0
    %v1922 = vadd.f32 0.0, %v1921
    %v1923 = vpop.f32.mrf.mxu0
    %1924 = vdwg.mxu0
    %1925 = vrot.lane.b32.xlu0 %v1304, 104
    %v1926 = vpop.permute.xlu0 %1925
    %1927 = vrot.lane.b32.xlu0 %v1309, 104
    %v1928 = vpop.permute.xlu0 %1927
    %1929 = vrot.lane.b32.xlu0 %v132, 104
    %v1930 = vpop.permute.xlu0 %1929
    %1931 = vrot.lane.b32.xlu0 %v137, 104
    %v1932 = vpop.permute.xlu0 %1931
    %v1933 = vsel %vm268, %v1926, 0
    %v1935 = vsel %vm268, %v1928, 0
    %v1937 = vsel %vm268, %v1930, 0
    %v1939 = vsel %vm268, %v1932, 0
    %1941 = vmatprep.subr.mxu0 0.0
    %1942 = vmatpush1.xpose.msra.mxu0 0.0
    %1943 = vmatprep.subr.mxu0 0.0
    %1944 = vmatpush1.xpose.msra.mxu0 0.0
    %1945 = vmatprep.subr.mxu0 0.0
    %1946 = vmatpush1.xpose.msra.mxu0 0.0
    %1947 = vmatprep.subr.mxu0 0.0
    %1948 = vmatpush1.xpose.msra.mxu0 0.0
    %1949 = vmatprep.subr.mxu0 0.0
    %1950 = vmatpush1.xpose.msra.mxu0 0.0
    %1951 = vmatprep.subr.mxu0 0.0
    %1952 = vmatpush1.xpose.msra.mxu0 0.0
    %1953 = vmatprep.subr.mxu0 0.0
    %1954 = vmatpush1.xpose.msra.mxu0 0.0
    %1955 = vmatprep.subr.mxu0 0.0
    %1956 = vmatpush1.xpose.msra.mxu0 0.0
    %1957 = vmatprep.subr.mxu0 0.0
    %1958 = vmatpush1.xpose.msra.mxu0 0.0
    %1959 = vmatprep.subr.mxu0 0.0
    %1960 = vmatpush1.xpose.msra.mxu0 0.0
    %1961 = vmatprep.subr.mxu0 0.0
    %1962 = vmatpush1.xpose.msra.mxu0 0.0
    %1963 = vmatprep.subr.mxu0 0.0
    %1964 = vmatpush1.xpose.msra.mxu0 0.0
    %1965 = vmatprep.subr.mxu0 0.0
    %1966 = vmatpush1.xpose.msra.mxu0 0.0
    %1967 = vmatprep.subr.mxu0 0.0
    %1968 = vmatpush1.xpose.msra.mxu0 0.0
    %1969 = vmatprep.subr.mxu0 0.0
    %1970 = vmatpush1.xpose.msra.mxu0 %v1939
    %1971 = vmatprep.subr.mxu0 0.0
    %1972 = vmatpush1.xpose.msra.mxu0 %v1937
    %1973 = vmatprep.subr.mxu0 0.0
    %1974 = vmatpush2.xpose.msra.mxu0 0.0
    %1975 = vmatprep.subr.mxu0 0.0
    %1976 = vmatpush2.xpose.msra.mxu0 0.0
    %1977 = vmatprep.subr.mxu0 0.0
    %1978 = vmatpush2.xpose.msra.mxu0 0.0
    %1979 = vmatprep.subr.mxu0 0.0
    %1980 = vmatpush2.xpose.msra.mxu0 0.0
    %1981 = vmatprep.subr.mxu0 0.0
    %1982 = vmatpush2.xpose.msra.mxu0 0.0
    %1983 = vmatprep.subr.mxu0 0.0
    %1984 = vmatpush2.xpose.msra.mxu0 0.0
    %1985 = vmatprep.subr.mxu0 0.0
    %1986 = vmatpush2.xpose.msra.mxu0 0.0
    %1987 = vmatprep.subr.mxu0 0.0
    %1988 = vmatpush2.xpose.msra.mxu0 0.0
    %1989 = vmatprep.subr.mxu0 0.0
    %1990 = vmatpush2.xpose.msra.mxu0 0.0
    %1991 = vmatprep.subr.mxu0 0.0
    %1992 = vmatpush2.xpose.msra.mxu0 0.0
    %1993 = vmatprep.subr.mxu0 0.0
    %1994 = vmatpush2.xpose.msra.mxu0 0.0
    %1995 = vmatprep.subr.mxu0 0.0
    %1996 = vmatpush2.xpose.msra.mxu0 0.0
    %1997 = vmatprep.subr.mxu0 0.0
    %1998 = vmatpush2.xpose.msra.mxu0 0.0
    %1999 = vmatprep.subr.mxu0 0.0
    %2000 = vmatpush2.xpose.msra.mxu0 0.0
    %2001 = vmatprep.subr.mxu0 0.0
    %2002 = vmatpush2.xpose.msra.mxu0 0.0
    %2003 = vmatprep.subr.mxu0 0.0
    %2004 = vmatpush2.xpose.msra.mxu0 0.0
    %2005 = vmatprep.mubr.f32.mxu0 0.0
    %2006 = vmatmul.mubr.f32.gmra.mxu0 %v1933
    %v2007 = vpop.f32.mrf.mxu0
    %v2008 = vadd.f32 0.0, %v2007
    %v2009 = vpop.f32.mrf.mxu0
    %2010 = vmatprep.mubr.f32.mxu0 0.0
    %2011 = vmatmul.mubr.f32.gmra.mxu0 %v1935
    %v2012 = vpop.f32.mrf.mxu0
    %v2013 = vadd.f32 0.0, %v2012
    %v2014 = vpop.f32.mrf.mxu0
    %2015 = vdwg.mxu0
    %v2016 = vmul.f32 %v2008, 0.35355338
    %v2017 = vmul.f32 %v2013, 0.35355338
    %v2018 = vadd.f32 %v2016, %v47
    %v2019 = vadd.f32 %v2017, %v48
    %v2020 = vsel %vm356, %v2018, -inf
    %2021 = vmax.xlane.f32.xlu0 %v2020
    %v2022 = vpop.xlane.xlu0 %2021
    %v2023 = vsel %vm356, %v2019, -inf
    %2024 = vmax.xlane.f32.xlu0 %v2023
    %v2025 = vpop.xlane.xlu0 %2024
    %v2026 = vsub.f32 %v2018, %v2022
    %v2027 = vsub.f32 %v2019, %v2025
    %v2028 = vmul.f32 %v2026, 1.442695
    %v2029 = vpow.pop %v2028
    %v2030 = vmul.f32 %v2027, 1.442695
    %v2031 = vpow.pop %v2030
    %v2032 = vsel %vm356, %v2029, 0.0
    %2033 = vadd.xlane.f32.xlu0 %v2032
    %v2034 = vpop.xlane.xlu0 %2033
    %v2035 = vsel %vm356, %v2031, 0.0
    %2036 = vadd.xlane.f32.xlu0 %v2035
    %v2037 = vpop.xlane.xlu0 %2036
    %v2038 = vrcp.pop %v2034
    %v2039 = vrcp.pop %v2037
    %v2040 = vmul.f32 %v2029, %v2038
    %v2041 = vmul.f32 %v2031, %v2039
    %2042 = vrot.lane.b32.xlu0 %v132, 72
    %v2043 = vpop.permute.xlu0 %2042
    %2044 = vrot.lane.b32.xlu0 %v137, 72
    %v2045 = vpop.permute.xlu0 %2044
    %v2049 = vsel %vm356, %v2040, 0
    %v2052 = vsel %vm356, %v2041, 0
    %2054 = vmatprep.subr.mxu0 0.0
    %2055 = vmatpush1.msra.mxu0 0.0
    %2056 = vmatprep.subr.mxu0 0.0
    %2057 = vmatpush1.msra.mxu0 0.0
    %2058 = vmatprep.subr.mxu0 0.0
    %2059 = vmatpush1.msra.mxu0 0.0
    %2060 = vmatprep.subr.mxu0 0.0
    %2061 = vmatpush1.msra.mxu0 0.0
    %2062 = vmatprep.subr.mxu0 0.0
    %2063 = vmatpush1.msra.mxu0 0.0
    %2064 = vmatprep.subr.mxu0 0.0
    %2065 = vmatpush1.msra.mxu0 0.0
    %2066 = vmatprep.subr.mxu0 0.0
    %2067 = vmatpush1.msra.mxu0 0.0
    %2068 = vmatprep.subr.mxu0 0.0
    %2069 = vmatpush1.msra.mxu0 0.0
    %2070 = vmatprep.subr.mxu0 0.0
    %2071 = vmatpush1.msra.mxu0 0.0
    %2072 = vmatprep.subr.mxu0 0.0
    %2073 = vmatpush1.msra.mxu0 0.0
    %2074 = vmatprep.subr.mxu0 0.0
    %2075 = vmatpush1.msra.mxu0 0.0
    %2076 = vmatprep.subr.mxu0 0.0
    %2077 = vmatpush1.msra.mxu0 0.0
    %2078 = vmatprep.subr.mxu0 0.0
    %2079 = vmatpush1.msra.mxu0 0.0
    %2080 = vmatprep.subr.mxu0 0.0
    %2081 = vmatpush1.msra.mxu0 0.0
    %2082 = vmatprep.subr.mxu0 0.0
    %2083 = vmatpush1.msra.mxu0 %v2045
    %2084 = vmatprep.subr.mxu0 0.0
    %2085 = vmatpush1.msra.mxu0 %v2043
    %2086 = vmatprep.subr.mxu0 0.0
    %2087 = vmatpush2.msra.mxu0 0.0
    %2088 = vmatprep.subr.mxu0 0.0
    %2089 = vmatpush2.msra.mxu0 0.0
    %2090 = vmatprep.subr.mxu0 0.0
    %2091 = vmatpush2.msra.mxu0 0.0
    %2092 = vmatprep.subr.mxu0 0.0
    %2093 = vmatpush2.msra.mxu0 0.0
    %2094 = vmatprep.subr.mxu0 0.0
    %2095 = vmatpush2.msra.mxu0 0.0
    %2096 = vmatprep.subr.mxu0 0.0
    %2097 = vmatpush2.msra.mxu0 0.0
    %2098 = vmatprep.subr.mxu0 0.0
    %2099 = vmatpush2.msra.mxu0 0.0
    %2100 = vmatprep.subr.mxu0 0.0
    %2101 = vmatpush2.msra.mxu0 0.0
    %2102 = vmatprep.subr.mxu0 0.0
    %2103 = vmatpush2.msra.mxu0 0.0
    %2104 = vmatprep.subr.mxu0 0.0
    %2105 = vmatpush2.msra.mxu0 0.0
    %2106 = vmatprep.subr.mxu0 0.0
    %2107 = vmatpush2.msra.mxu0 0.0
    %2108 = vmatprep.subr.mxu0 0.0
    %2109 = vmatpush2.msra.mxu0 0.0
    %2110 = vmatprep.subr.mxu0 0.0
    %2111 = vmatpush2.msra.mxu0 0.0
    %2112 = vmatprep.subr.mxu0 0.0
    %2113 = vmatpush2.msra.mxu0 0.0
    %2114 = vmatprep.subr.mxu0 0.0
    %2115 = vmatpush2.msra.mxu0 0.0
    %2116 = vmatprep.subr.mxu0 0.0
    %2117 = vmatpush2.msra.mxu0 0.0
    %2118 = vmatprep.mubr.f32.mxu0 0.0
    %2119 = vmatmul.mubr.f32.gmra.mxu0 %v2049
    %v2120 = vpop.f32.mrf.mxu0
    %v2121 = vadd.f32 0.0, %v2120
    %v2122 = vpop.f32.mrf.mxu0
    %2123 = vmatprep.mubr.f32.mxu0 0.0
    %2124 = vmatmul.mubr.f32.gmra.mxu0 %v2052
    %v2125 = vpop.f32.mrf.mxu0
    %v2126 = vadd.f32 0.0, %v2125
    %v2127 = vpop.f32.mrf.mxu0
    %2128 = vdwg.mxu0
    %2131 = vrot.lane.b32.xlu0 %v1713, 8
    %v2132 = vpop.permute.xlu0 %2131
    %2133 = vrot.lane.b32.xlu0 %v1718, 8
    %v2134 = vpop.permute.xlu0 %2133
    %2139 = vrot.lane.b32.xlu0 %v1917, 16
    %v2140 = vpop.permute.xlu0 %2139
    %2141 = vrot.lane.b32.xlu0 %v1922, 16
    %v2142 = vpop.permute.xlu0 %2141
    %2147 = vrot.lane.b32.xlu0 %v2121, 24
    %v2148 = vpop.permute.xlu0 %2147
    %2149 = vrot.lane.b32.xlu0 %v2126, 24
    %v2150 = vpop.permute.xlu0 %2149
    %v2153 = vsel %vm268, %v1509, %v2132
    %v2154 = vsel %vm268, %v1514, %v2134
    %v2155 = vsel %vm356, %v2153, %v2140
    %v2156 = vsel %vm356, %v2154, %v2142
    %v2157 = vsel %vm1106, %v2155, %v2148
    %v2158 = vsel %vm1106, %v2156, %v2150
    %v2159 = vlaneseq
    %v2160 = vshrl.u32 %v2159, 7
    %v2161 = vsub.s32 0, %v2160
    %v2162 = vrot.slane %v1316, %v2161
    %v2164 = vsel %vm58, %v2157, 0
    %v2167 = vsel %vm58, %v2158, 0
    %2169 = vmatprep.subr.mxu0 0.0
    %2170 = vmatpush1.msra.mxu0 0.0
    %2171 = vmatprep.subr.mxu0 0.0
    %2172 = vmatpush1.msra.mxu0 0.0
    %2173 = vmatprep.subr.mxu0 0.0
    %2174 = vmatpush1.msra.mxu0 0.0
    %2175 = vmatprep.subr.mxu0 0.0
    %2176 = vmatpush1.msra.mxu0 0.0
    %2177 = vmatprep.subr.mxu0 0.0
    %2178 = vmatpush1.msra.mxu0 0.0
    %2179 = vmatprep.subr.mxu0 0.0
    %2180 = vmatpush1.msra.mxu0 0.0
    %2181 = vmatprep.subr.mxu0 0.0
    %2182 = vmatpush1.msra.mxu0 0.0
    %2183 = vmatprep.subr.mxu0 0.0
    %2184 = vmatpush1.msra.mxu0 0.0
    %2185 = vmatprep.subr.mxu0 0.0
    %2186 = vmatpush1.msra.mxu0 0.0
    %2187 = vmatprep.subr.mxu0 0.0
    %2188 = vmatpush1.msra.mxu0 0.0
    %2189 = vmatprep.subr.mxu0 0.0
    %2190 = vmatpush1.msra.mxu0 0.0
    %2191 = vmatprep.subr.mxu0 0.0
    %2192 = vmatpush1.msra.mxu0 0.0
    %2193 = vmatprep.subr.mxu0 0.0
    %2194 = vmatpush1.msra.mxu0 %v1315
    %2195 = vmatprep.subr.mxu0 0.0
    %2196 = vmatpush1.msra.mxu0 %v1314
    %2197 = vmatprep.subr.mxu0 0.0
    %2198 = vmatpush1.msra.mxu0 %v1313
    %2199 = vmatprep.subr.mxu0 0.0
    %2200 = vmatpush1.msra.mxu0 %v1312
    %2201 = vmatprep.subr.mxu0 0.0
    %2202 = vmatpush2.msra.mxu0 0.0
    %2203 = vmatprep.subr.mxu0 0.0
    %2204 = vmatpush2.msra.mxu0 0.0
    %2205 = vmatprep.subr.mxu0 0.0
    %2206 = vmatpush2.msra.mxu0 0.0
    %2207 = vmatprep.subr.mxu0 0.0
    %2208 = vmatpush2.msra.mxu0 0.0
    %2209 = vmatprep.subr.mxu0 0.0
    %2210 = vmatpush2.msra.mxu0 0.0
    %2211 = vmatprep.subr.mxu0 0.0
    %2212 = vmatpush2.msra.mxu0 0.0
    %2213 = vmatprep.subr.mxu0 0.0
    %2214 = vmatpush2.msra.mxu0 0.0
    %2215 = vmatprep.subr.mxu0 0.0
    %2216 = vmatpush2.msra.mxu0 0.0
    %2217 = vmatprep.subr.mxu0 0.0
    %2218 = vmatpush2.msra.mxu0 0.0
    %2219 = vmatprep.subr.mxu0 0.0
    %2220 = vmatpush2.msra.mxu0 0.0
    %2221 = vmatprep.subr.mxu0 0.0
    %2222 = vmatpush2.msra.mxu0 0.0
    %2223 = vmatprep.subr.mxu0 0.0
    %2224 = vmatpush2.msra.mxu0 0.0
    %2225 = vmatprep.subr.mxu0 0.0
    %2226 = vmatpush2.msra.mxu0 0.0
    %2227 = vmatprep.subr.mxu0 0.0
    %2228 = vmatpush2.msra.mxu0 0.0
    %2229 = vmatprep.subr.mxu0 0.0
    %2230 = vmatpush2.msra.mxu0 0.0
    %2231 = vmatprep.subr.mxu0 0.0
    %2232 = vmatpush2.msra.mxu0 0.0
    %2233 = vmatprep.mubr.f32.mxu0 0.0
    %2234 = vmatmul.mubr.f32.gmra.mxu0 %v2164
    %v2235 = vpop.f32.mrf.mxu0
    %v2236 = vadd.f32 %v2162, %v2235
    %v2237 = vpop.f32.mrf.mxu0
    %2238 = vmatprep.mubr.f32.mxu0 0.0
    %2239 = vmatmul.mubr.f32.gmra.mxu0 %v2167
    %v2240 = vpop.f32.mrf.mxu0
    %v2241 = vadd.f32 %v2162, %v2240
    %v2242 = vpop.f32.mrf.mxu0
    %2243 = vdwg.mxu0
    %v2244 = vadd.f32 %v1194, %v2236
    %v2245 = vadd.f32 %v1195, %v2241
    %v2246 = vsel %vm58, %v2244, 0.0
    %2247 = vadd.xlane.f32.xlu0 %v2246
    %v2248 = vpop.xlane.xlu0 %2247
    %v2249 = vsel %vm58, %v2245, 0.0
    %2250 = vadd.xlane.f32.xlu0 %v2249
    %v2251 = vpop.xlane.xlu0 %2250
    %v2252 = vmul.f32 %v2248, %v146
    %v2253 = vmul.f32 %v2251, %v146
    %v2254 = vsub.f32 %v2244, %v2252
    %v2255 = vsub.f32 %v2245, %v2253
    %v2256 = vmul.f32 %v2254, %v2254
    %v2257 = vmul.f32 %v2255, %v2255
    %v2258 = vsel %vm58, %v2256, 0.0
    %2259 = vadd.xlane.f32.xlu0 %v2258
    %v2260 = vpop.xlane.xlu0 %2259
    %v2261 = vsel %vm58, %v2257, 0.0
    %2262 = vadd.xlane.f32.xlu0 %v2261
    %v2263 = vpop.xlane.xlu0 %2262
    %v2264 = vmul.f32 %v2260, %v146
    %v2265 = vmul.f32 %v2263, %v146
    %v2266 = vadd.f32 %v2264, 1e-05
    %v2267 = vadd.f32 %v2265, 1e-05
    %v2268 = vrsqrt.pop %v2266
    %v2269 = vrsqrt.pop %v2267
    %v2270 = vmul.f32 %v2254, %v2268
    %v2271 = vmul.f32 %v2255, %v2269
    %v2272 = vld [vmem:[#allocation2 + $0x80] sm:$0xff]
    %v2273 = vld [vmem:[#allocation2 + $0x88] sm:$0xff]
    %v2274 = vld [vmem:[#allocation2 + $0x90] sm:$0xff]
    %v2275 = vld [vmem:[#allocation2 + $0x98] sm:$0xff]
    %v2276 = vld [vmem:[%s6 + $0x4] sm:$0x1]
    %v2277 = vlaneseq
    %v2278 = vshrl.u32 %v2277, 7
    %v2279 = vsub.s32 0, %v2278
    %v2280 = vrot.slane %v2276, %v2279
    %v2282 = vsel %vm58, %v2270, 0
    %v2285 = vsel %vm58, %v2271, 0
    %2287 = vmatprep.subr.mxu0 0.0
    %2288 = vmatpush1.msra.mxu0 0.0
    %2289 = vmatprep.subr.mxu0 0.0
    %2290 = vmatpush1.msra.mxu0 0.0
    %2291 = vmatprep.subr.mxu0 0.0
    %2292 = vmatpush1.msra.mxu0 0.0
    %2293 = vmatprep.subr.mxu0 0.0
    %2294 = vmatpush1.msra.mxu0 0.0
    %2295 = vmatprep.subr.mxu0 0.0
    %2296 = vmatpush1.msra.mxu0 0.0
    %2297 = vmatprep.subr.mxu0 0.0
    %2298 = vmatpush1.msra.mxu0 0.0
    %2299 = vmatprep.subr.mxu0 0.0
    %2300 = vmatpush1.msra.mxu0 0.0
    %2301 = vmatprep.subr.mxu0 0.0
    %2302 = vmatpush1.msra.mxu0 0.0
    %2303 = vmatprep.subr.mxu0 0.0
    %2304 = vmatpush1.msra.mxu0 0.0
    %2305 = vmatprep.subr.mxu0 0.0
    %2306 = vmatpush1.msra.mxu0 0.0
    %2307 = vmatprep.subr.mxu0 0.0
    %2308 = vmatpush1.msra.mxu0 0.0
    %2309 = vmatprep.subr.mxu0 0.0
    %2310 = vmatpush1.msra.mxu0 0.0
    %2311 = vmatprep.subr.mxu0 0.0
    %2312 = vmatpush1.msra.mxu0 %v2275
    %2313 = vmatprep.subr.mxu0 0.0
    %2314 = vmatpush1.msra.mxu0 %v2274
    %2315 = vmatprep.subr.mxu0 0.0
    %2316 = vmatpush1.msra.mxu0 %v2273
    %2317 = vmatprep.subr.mxu0 0.0
    %2318 = vmatpush1.msra.mxu0 %v2272
    %2319 = vmatprep.subr.mxu0 0.0
    %2320 = vmatpush2.msra.mxu0 0.0
    %2321 = vmatprep.subr.mxu0 0.0
    %2322 = vmatpush2.msra.mxu0 0.0
    %2323 = vmatprep.subr.mxu0 0.0
    %2324 = vmatpush2.msra.mxu0 0.0
    %2325 = vmatprep.subr.mxu0 0.0
    %2326 = vmatpush2.msra.mxu0 0.0
    %2327 = vmatprep.subr.mxu0 0.0
    %2328 = vmatpush2.msra.mxu0 0.0
    %2329 = vmatprep.subr.mxu0 0.0
    %2330 = vmatpush2.msra.mxu0 0.0
    %2331 = vmatprep.subr.mxu0 0.0
    %2332 = vmatpush2.msra.mxu0 0.0
    %2333 = vmatprep.subr.mxu0 0.0
    %2334 = vmatpush2.msra.mxu0 0.0
    %2335 = vmatprep.subr.mxu0 0.0
    %2336 = vmatpush2.msra.mxu0 0.0
    %2337 = vmatprep.subr.mxu0 0.0
    %2338 = vmatpush2.msra.mxu0 0.0
    %2339 = vmatprep.subr.mxu0 0.0
    %2340 = vmatpush2.msra.mxu0 0.0
    %2341 = vmatprep.subr.mxu0 0.0
    %2342 = vmatpush2.msra.mxu0 0.0
    %2343 = vmatprep.subr.mxu0 0.0
    %2344 = vmatpush2.msra.mxu0 0.0
    %2345 = vmatprep.subr.mxu0 0.0
    %2346 = vmatpush2.msra.mxu0 0.0
    %2347 = vmatprep.subr.mxu0 0.0
    %2348 = vmatpush2.msra.mxu0 0.0
    %2349 = vmatprep.subr.mxu0 0.0
    %2350 = vmatpush2.msra.mxu0 0.0
    %2351 = vmatprep.mubr.f32.mxu0 0.0
    %2352 = vmatmul.mubr.f32.gmra.mxu0 %v2282
    %v2353 = vpop.f32.mrf.mxu0
    %v2354 = vadd.f32 %v2280, %v2353
    %v2355 = vpop.f32.mrf.mxu0
    %2356 = vmatprep.mubr.f32.mxu0 0.0
    %2357 = vmatmul.mubr.f32.gmra.mxu0 %v2285
    %v2358 = vpop.f32.mrf.mxu0
    %v2359 = vadd.f32 %v2280, %v2358
    %v2360 = vpop.f32.mrf.mxu0
    %2361 = vdwg.mxu0
    %v2362 = vmax.f32 %v2354, 0.0
    %v2363 = vmax.f32 %v2359, 0.0
    %v2364 = vld [vmem:[%s5] sm:$0xff]
    %v2365 = vld [vmem:[%s5 + $0x8] sm:$0xff]
    %v2366 = vld [vmem:[%s5 + $0x10] sm:$0xff]
    %v2367 = vld [vmem:[%s5 + $0x18] sm:$0xff]
    %v2368 = vld [vmem:[%s5 + $0x20] sm:$0xff]
    %v2369 = vld [vmem:[%s5 + $0x28] sm:$0xff]
    %v2370 = vld [vmem:[%s5 + $0x30] sm:$0xff]
    %v2371 = vld [vmem:[%s5 + $0x38] sm:$0xff]
    %v2372 = vld [vmem:[%s6 + $0x5] sm:$0x1]
    %v2373 = vlaneseq
    %v2374 = vshrl.u32 %v2373, 7
    %v2375 = vsub.s32 0, %v2374
    %v2376 = vrot.slane %v2372, %v2375
    %vm2377 = vcmask 523264
    %v2379 = vsel %vm2377, %v2362, 0
    %v2382 = vsel %vm2377, %v2363, 0
    %2384 = vmatprep.subr.mxu0 0.0
    %2385 = vmatpush1.msra.mxu0 0.0
    %2386 = vmatprep.subr.mxu0 0.0
    %2387 = vmatpush1.msra.mxu0 0.0
    %2388 = vmatprep.subr.mxu0 0.0
    %2389 = vmatpush1.msra.mxu0 0.0
    %2390 = vmatprep.subr.mxu0 0.0
    %2391 = vmatpush1.msra.mxu0 0.0
    %2392 = vmatprep.subr.mxu0 0.0
    %2393 = vmatpush1.msra.mxu0 0.0
    %2394 = vmatprep.subr.mxu0 0.0
    %2395 = vmatpush1.msra.mxu0 0.0
    %2396 = vmatprep.subr.mxu0 0.0
    %2397 = vmatpush1.msra.mxu0 0.0
    %2398 = vmatprep.subr.mxu0 0.0
    %2399 = vmatpush1.msra.mxu0 0.0
    %2400 = vmatprep.subr.mxu0 0.0
    %2401 = vmatpush1.msra.mxu0 %v2371
    %2402 = vmatprep.subr.mxu0 0.0
    %2403 = vmatpush1.msra.mxu0 %v2370
    %2404 = vmatprep.subr.mxu0 0.0
    %2405 = vmatpush1.msra.mxu0 %v2369
    %2406 = vmatprep.subr.mxu0 0.0
    %2407 = vmatpush1.msra.mxu0 %v2368
    %2408 = vmatprep.subr.mxu0 0.0
    %2409 = vmatpush1.msra.mxu0 %v2367
    %2410 = vmatprep.subr.mxu0 0.0
    %2411 = vmatpush1.msra.mxu0 %v2366
    %2412 = vmatprep.subr.mxu0 0.0
    %2413 = vmatpush1.msra.mxu0 %v2365
    %2414 = vmatprep.subr.mxu0 0.0
    %2415 = vmatpush1.msra.mxu0 %v2364
    %2416 = vmatprep.subr.mxu0 0.0
    %2417 = vmatpush2.msra.mxu0 0.0
    %2418 = vmatprep.subr.mxu0 0.0
    %2419 = vmatpush2.msra.mxu0 0.0
    %2420 = vmatprep.subr.mxu0 0.0
    %2421 = vmatpush2.msra.mxu0 0.0
    %2422 = vmatprep.subr.mxu0 0.0
    %2423 = vmatpush2.msra.mxu0 0.0
    %2424 = vmatprep.subr.mxu0 0.0
    %2425 = vmatpush2.msra.mxu0 0.0
    %2426 = vmatprep.subr.mxu0 0.0
    %2427 = vmatpush2.msra.mxu0 0.0
    %2428 = vmatprep.subr.mxu0 0.0
    %2429 = vmatpush2.msra.mxu0 0.0
    %2430 = vmatprep.subr.mxu0 0.0
    %2431 = vmatpush2.msra.mxu0 0.0
    %2432 = vmatprep.subr.mxu0 0.0
    %2433 = vmatpush2.msra.mxu0 0.0
    %2434 = vmatprep.subr.mxu0 0.0
    %2435 = vmatpush2.msra.mxu0 0.0
    %2436 = vmatprep.subr.mxu0 0.0
    %2437 = vmatpush2.msra.mxu0 0.0
    %2438 = vmatprep.subr.mxu0 0.0
    %2439 = vmatpush2.msra.mxu0 0.0
    %2440 = vmatprep.subr.mxu0 0.0
    %2441 = vmatpush2.msra.mxu0 0.0
    %2442 = vmatprep.subr.mxu0 0.0
    %2443 = vmatpush2.msra.mxu0 0.0
    %2444 = vmatprep.subr.mxu0 0.0
    %2445 = vmatpush2.msra.mxu0 0.0
    %2446 = vmatprep.subr.mxu0 0.0
    %2447 = vmatpush2.msra.mxu0 0.0
    %2448 = vmatprep.mubr.f32.mxu0 0.0
    %2449 = vmatmul.mubr.f32.gmra.mxu0 %v2379
    %v2450 = vpop.f32.mrf.mxu0
    %v2451 = vadd.f32 %v2376, %v2450
    %v2452 = vpop.f32.mrf.mxu0
    %2453 = vmatprep.mubr.f32.mxu0 0.0
    %2454 = vmatmul.mubr.f32.gmra.mxu0 %v2382
    %v2455 = vpop.f32.mrf.mxu0
    %v2456 = vadd.f32 %v2376, %v2455
    %v2457 = vpop.f32.mrf.mxu0
    %2458 = vdwg.mxu0
    %v2459 = vadd.f32 %v2244, %v2451
    %v2460 = vadd.f32 %v2245, %v2456
    %v2461 = vsel %vm58, %v2459, 0.0
    %2462 = vadd.xlane.f32.xlu0 %v2461
    %v2463 = vpop.xlane.xlu0 %2462
    %v2464 = vsel %vm58, %v2460, 0.0
    %2465 = vadd.xlane.f32.xlu0 %v2464
    %v2466 = vpop.xlane.xlu0 %2465
    %v2467 = vmul.f32 %v2463, %v146
    %v2468 = vmul.f32 %v2466, %v146
    %v2469 = vsub.f32 %v2459, %v2467
    %v2470 = vsub.f32 %v2460, %v2468
    %v2471 = vmul.f32 %v2469, %v2469
    %v2472 = vmul.f32 %v2470, %v2470
    %v2473 = vsel %vm58, %v2471, 0.0
    %2474 = vadd.xlane.f32.xlu0 %v2473
    %v2475 = vpop.xlane.xlu0 %2474
    %v2476 = vsel %vm58, %v2472, 0.0
    %2477 = vadd.xlane.f32.xlu0 %v2476
    %v2478 = vpop.xlane.xlu0 %2477
    %v2479 = vmul.f32 %v2475, %v146
    %v2480 = vmul.f32 %v2478, %v146
    %v2481 = vadd.f32 %v2479, 1e-05
    %v2482 = vadd.f32 %v2480, 1e-05
    %v2483 = vrsqrt.pop %v2481
    %v2484 = vrsqrt.pop %v2482
    %v2485 = vmul.f32 %v2469, %v2483
    %v2486 = vmul.f32 %v2470, %v2484
    %v2487 = vld [vmem:[#allocation2 + $0xa0] sm:$0xff]
    %v2488 = vld [vmem:[#allocation2 + $0xa8] sm:$0xff]
    %v2489 = vld [vmem:[#allocation2 + $0xb0] sm:$0xff]
    %v2490 = vld [vmem:[#allocation2 + $0xb8] sm:$0xff]
    %v2491 = vld [vmem:[%s6 + $0x6] sm:$0x1]
    %v2492 = vlaneseq
    %v2493 = vshrl.u32 %v2492, 7
    %v2494 = vsub.s32 0, %v2493
    %v2495 = vrot.slane %v2491, %v2494
    %v2497 = vsel %vm58, %v2485, 0
    %v2500 = vsel %vm58, %v2486, 0
    %2502 = vmatprep.subr.mxu0 0.0
    %2503 = vmatpush1.msra.mxu0 0.0
    %2504 = vmatprep.subr.mxu0 0.0
    %2505 = vmatpush1.msra.mxu0 0.0
    %2506 = vmatprep.subr.mxu0 0.0
    %2507 = vmatpush1.msra.mxu0 0.0
    %2508 = vmatprep.subr.mxu0 0.0
    %2509 = vmatpush1.msra.mxu0 0.0
    %2510 = vmatprep.subr.mxu0 0.0
    %2511 = vmatpush1.msra.mxu0 0.0
    %2512 = vmatprep.subr.mxu0 0.0
    %2513 = vmatpush1.msra.mxu0 0.0
    %2514 = vmatprep.subr.mxu0 0.0
    %2515 = vmatpush1.msra.mxu0 0.0
    %2516 = vmatprep.subr.mxu0 0.0
    %2517 = vmatpush1.msra.mxu0 0.0
    %2518 = vmatprep.subr.mxu0 0.0
    %2519 = vmatpush1.msra.mxu0 0.0
    %2520 = vmatprep.subr.mxu0 0.0
    %2521 = vmatpush1.msra.mxu0 0.0
    %2522 = vmatprep.subr.mxu0 0.0
    %2523 = vmatpush1.msra.mxu0 0.0
    %2524 = vmatprep.subr.mxu0 0.0
    %2525 = vmatpush1.msra.mxu0 0.0
    %2526 = vmatprep.subr.mxu0 0.0
    %2527 = vmatpush1.msra.mxu0 %v2490
    %2528 = vmatprep.subr.mxu0 0.0
    %2529 = vmatpush1.msra.mxu0 %v2489
    %2530 = vmatprep.subr.mxu0 0.0
    %2531 = vmatpush1.msra.mxu0 %v2488
    %2532 = vmatprep.subr.mxu0 0.0
    %2533 = vmatpush1.msra.mxu0 %v2487
    %2534 = vmatprep.subr.mxu0 0.0
    %2535 = vmatpush2.msra.mxu0 0.0
    %2536 = vmatprep.subr.mxu0 0.0
    %2537 = vmatpush2.msra.mxu0 0.0
    %2538 = vmatprep.subr.mxu0 0.0
    %2539 = vmatpush2.msra.mxu0 0.0
    %2540 = vmatprep.subr.mxu0 0.0
    %2541 = vmatpush2.msra.mxu0 0.0
    %2542 = vmatprep.subr.mxu0 0.0
    %2543 = vmatpush2.msra.mxu0 0.0
    %2544 = vmatprep.subr.mxu0 0.0
    %2545 = vmatpush2.msra.mxu0 0.0
    %2546 = vmatprep.subr.mxu0 0.0
    %2547 = vmatpush2.msra.mxu0 0.0
    %2548 = vmatprep.subr.mxu0 0.0
    %2549 = vmatpush2.msra.mxu0 0.0
    %2550 = vmatprep.subr.mxu0 0.0
    %2551 = vmatpush2.msra.mxu0 0.0
    %2552 = vmatprep.subr.mxu0 0.0
    %2553 = vmatpush2.msra.mxu0 0.0
    %2554 = vmatprep.subr.mxu0 0.0
    %2555 = vmatpush2.msra.mxu0 0.0
    %2556 = vmatprep.subr.mxu0 0.0
    %2557 = vmatpush2.msra.mxu0 0.0
    %2558 = vmatprep.subr.mxu0 0.0
    %2559 = vmatpush2.msra.mxu0 0.0
    %2560 = vmatprep.subr.mxu0 0.0
    %2561 = vmatpush2.msra.mxu0 0.0
    %2562 = vmatprep.subr.mxu0 0.0
    %2563 = vmatpush2.msra.mxu0 0.0
    %2564 = vmatprep.subr.mxu0 0.0
    %2565 = vmatpush2.msra.mxu0 0.0
    %2566 = vmatprep.mubr.f32.mxu0 0.0
    %2567 = vmatmul.mubr.f32.gmra.mxu0 %v2497
    %v2568 = vpop.f32.mrf.mxu0
    %v2569 = vadd.f32 %v2495, %v2568
    %v2570 = vpop.f32.mrf.mxu0
    %2571 = vmatprep.mubr.f32.mxu0 0.0
    %2572 = vmatmul.mubr.f32.gmra.mxu0 %v2500
    %v2573 = vpop.f32.mrf.mxu0
    %v2574 = vadd.f32 %v2495, %v2573
    %v2575 = vpop.f32.mrf.mxu0
    %2576 = vdwg.mxu0
    %v2577 = vld [vmem:[#allocation2 + $0xe0] sm:$0xff]
    %v2578 = vld [vmem:[#allocation2 + $0xe8] sm:$0xff]
    %v2579 = vld [vmem:[#allocation2 + $0xf0] sm:$0xff]
    %v2580 = vld [vmem:[#allocation2 + $0xf8] sm:$0xff]
    %v2581 = vld [vmem:[%s6 + $0x8] sm:$0x1]
    %2584 = vrot.lane.b32.xlu0 %v2569, 96
    %v2585 = vpop.permute.xlu0 %2584
    %2586 = vrot.lane.b32.xlu0 %v2574, 96
    %v2587 = vpop.permute.xlu0 %2586
    %v2588 = vsel %vm268, %v2569, 0
    %v2590 = vsel %vm268, %v2574, 0
    %v2592 = vsel %vm268, %v2585, 0
    %v2594 = vsel %vm268, %v2587, 0
    %2596 = vmatprep.subr.mxu0 0.0
    %2597 = vmatpush1.xpose.msra.mxu0 0.0
    %2598 = vmatprep.subr.mxu0 0.0
    %2599 = vmatpush1.xpose.msra.mxu0 0.0
    %2600 = vmatprep.subr.mxu0 0.0
    %2601 = vmatpush1.xpose.msra.mxu0 0.0
    %2602 = vmatprep.subr.mxu0 0.0
    %2603 = vmatpush1.xpose.msra.mxu0 0.0
    %2604 = vmatprep.subr.mxu0 0.0
    %2605 = vmatpush1.xpose.msra.mxu0 0.0
    %2606 = vmatprep.subr.mxu0 0.0
    %2607 = vmatpush1.xpose.msra.mxu0 0.0
    %2608 = vmatprep.subr.mxu0 0.0
    %2609 = vmatpush1.xpose.msra.mxu0 0.0
    %2610 = vmatprep.subr.mxu0 0.0
    %2611 = vmatpush1.xpose.msra.mxu0 0.0
    %2612 = vmatprep.subr.mxu0 0.0
    %2613 = vmatpush1.xpose.msra.mxu0 0.0
    %2614 = vmatprep.subr.mxu0 0.0
    %2615 = vmatpush1.xpose.msra.mxu0 0.0
    %2616 = vmatprep.subr.mxu0 0.0
    %2617 = vmatpush1.xpose.msra.mxu0 0.0
    %2618 = vmatprep.subr.mxu0 0.0
    %2619 = vmatpush1.xpose.msra.mxu0 0.0
    %2620 = vmatprep.subr.mxu0 0.0
    %2621 = vmatpush1.xpose.msra.mxu0 0.0
    %2622 = vmatprep.subr.mxu0 0.0
    %2623 = vmatpush1.xpose.msra.mxu0 0.0
    %2624 = vmatprep.subr.mxu0 0.0
    %2625 = vmatpush1.xpose.msra.mxu0 %v2594
    %2626 = vmatprep.subr.mxu0 0.0
    %2627 = vmatpush1.xpose.msra.mxu0 %v2592
    %2628 = vmatprep.subr.mxu0 0.0
    %2629 = vmatpush2.xpose.msra.mxu0 0.0
    %2630 = vmatprep.subr.mxu0 0.0
    %2631 = vmatpush2.xpose.msra.mxu0 0.0
    %2632 = vmatprep.subr.mxu0 0.0
    %2633 = vmatpush2.xpose.msra.mxu0 0.0
    %2634 = vmatprep.subr.mxu0 0.0
    %2635 = vmatpush2.xpose.msra.mxu0 0.0
    %2636 = vmatprep.subr.mxu0 0.0
    %2637 = vmatpush2.xpose.msra.mxu0 0.0
    %2638 = vmatprep.subr.mxu0 0.0
    %2639 = vmatpush2.xpose.msra.mxu0 0.0
    %2640 = vmatprep.subr.mxu0 0.0
    %2641 = vmatpush2.xpose.msra.mxu0 0.0
    %2642 = vmatprep.subr.mxu0 0.0
    %2643 = vmatpush2.xpose.msra.mxu0 0.0
    %2644 = vmatprep.subr.mxu0 0.0
    %2645 = vmatpush2.xpose.msra.mxu0 0.0
    %2646 = vmatprep.subr.mxu0 0.0
    %2647 = vmatpush2.xpose.msra.mxu0 0.0
    %2648 = vmatprep.subr.mxu0 0.0
    %2649 = vmatpush2.xpose.msra.mxu0 0.0
    %2650 = vmatprep.subr.mxu0 0.0
    %2651 = vmatpush2.xpose.msra.mxu0 0.0
    %2652 = vmatprep.subr.mxu0 0.0
    %2653 = vmatpush2.xpose.msra.mxu0 0.0
    %2654 = vmatprep.subr.mxu0 0.0
    %2655 = vmatpush2.xpose.msra.mxu0 0.0
    %2656 = vmatprep.subr.mxu0 0.0
    %2657 = vmatpush2.xpose.msra.mxu0 0.0
    %2658 = vmatprep.subr.mxu0 0.0
    %2659 = vmatpush2.xpose.msra.mxu0 0.0
    %2660 = vmatprep.mubr.f32.mxu0 0.0
    %2661 = vmatmul.mubr.f32.gmra.mxu0 %v2588
    %v2662 = vpop.f32.mrf.mxu0
    %v2663 = vadd.f32 0.0, %v2662
    %v2664 = vpop.f32.mrf.mxu0
    %2665 = vmatprep.mubr.f32.mxu0 0.0
    %2666 = vmatmul.mubr.f32.gmra.mxu0 %v2590
    %v2667 = vpop.f32.mrf.mxu0
    %v2668 = vadd.f32 0.0, %v2667
    %v2669 = vpop.f32.mrf.mxu0
    %2670 = vdwg.mxu0
    %v2671 = vmul.f32 %v2663, 0.35355338
    %v2672 = vmul.f32 %v2668, 0.35355338
    %v2673 = vadd.f32 %v2671, %v45
    %v2674 = vadd.f32 %v2672, %v46
    %v2675 = vsel %vm356, %v2673, -inf
    %2676 = vmax.xlane.f32.xlu0 %v2675
    %v2677 = vpop.xlane.xlu0 %2676
    %v2678 = vsel %vm356, %v2674, -inf
    %2679 = vmax.xlane.f32.xlu0 %v2678
    %v2680 = vpop.xlane.xlu0 %2679
    %v2681 = vsub.f32 %v2673, %v2677
    %v2682 = vsub.f32 %v2674, %v2680
    %v2683 = vmul.f32 %v2681, 1.442695
    %v2684 = vpow.pop %v2683
    %v2685 = vmul.f32 %v2682, 1.442695
    %v2686 = vpow.pop %v2685
    %v2687 = vsel %vm356, %v2684, 0.0
    %2688 = vadd.xlane.f32.xlu0 %v2687
    %v2689 = vpop.xlane.xlu0 %2688
    %v2690 = vsel %vm356, %v2686, 0.0
    %2691 = vadd.xlane.f32.xlu0 %v2690
    %v2692 = vpop.xlane.xlu0 %2691
    %v2693 = vrcp.pop %v2689
    %v2694 = vrcp.pop %v2692
    %v2695 = vmul.f32 %v2684, %v2693
    %v2696 = vmul.f32 %v2686, %v2694
    %2697 = vrot.lane.b32.xlu0 %v2569, 64
    %v2698 = vpop.permute.xlu0 %2697
    %2699 = vrot.lane.b32.xlu0 %v2574, 64
    %v2700 = vpop.permute.xlu0 %2699
    %v2704 = vsel %vm356, %v2695, 0
    %v2707 = vsel %vm356, %v2696, 0
    %2709 = vmatprep.subr.mxu0 0.0
    %2710 = vmatpush1.msra.mxu0 0.0
    %2711 = vmatprep.subr.mxu0 0.0
    %2712 = vmatpush1.msra.mxu0 0.0
    %2713 = vmatprep.subr.mxu0 0.0
    %2714 = vmatpush1.msra.mxu0 0.0
    %2715 = vmatprep.subr.mxu0 0.0
    %2716 = vmatpush1.msra.mxu0 0.0
    %2717 = vmatprep.subr.mxu0 0.0
    %2718 = vmatpush1.msra.mxu0 0.0
    %2719 = vmatprep.subr.mxu0 0.0
    %2720 = vmatpush1.msra.mxu0 0.0
    %2721 = vmatprep.subr.mxu0 0.0
    %2722 = vmatpush1.msra.mxu0 0.0
    %2723 = vmatprep.subr.mxu0 0.0
    %2724 = vmatpush1.msra.mxu0 0.0
    %2725 = vmatprep.subr.mxu0 0.0
    %2726 = vmatpush1.msra.mxu0 0.0
    %2727 = vmatprep.subr.mxu0 0.0
    %2728 = vmatpush1.msra.mxu0 0.0
    %2729 = vmatprep.subr.mxu0 0.0
    %2730 = vmatpush1.msra.mxu0 0.0
    %2731 = vmatprep.subr.mxu0 0.0
    %2732 = vmatpush1.msra.mxu0 0.0
    %2733 = vmatprep.subr.mxu0 0.0
    %2734 = vmatpush1.msra.mxu0 0.0
    %2735 = vmatprep.subr.mxu0 0.0
    %2736 = vmatpush1.msra.mxu0 0.0
    %2737 = vmatprep.subr.mxu0 0.0
    %2738 = vmatpush1.msra.mxu0 %v2700
    %2739 = vmatprep.subr.mxu0 0.0
    %2740 = vmatpush1.msra.mxu0 %v2698
    %2741 = vmatprep.subr.mxu0 0.0
    %2742 = vmatpush2.msra.mxu0 0.0
    %2743 = vmatprep.subr.mxu0 0.0
    %2744 = vmatpush2.msra.mxu0 0.0
    %2745 = vmatprep.subr.mxu0 0.0
    %2746 = vmatpush2.msra.mxu0 0.0
    %2747 = vmatprep.subr.mxu0 0.0
    %2748 = vmatpush2.msra.mxu0 0.0
    %2749 = vmatprep.subr.mxu0 0.0
    %2750 = vmatpush2.msra.mxu0 0.0
    %2751 = vmatprep.subr.mxu0 0.0
    %2752 = vmatpush2.msra.mxu0 0.0
    %2753 = vmatprep.subr.mxu0 0.0
    %2754 = vmatpush2.msra.mxu0 0.0
    %2755 = vmatprep.subr.mxu0 0.0
    %2756 = vmatpush2.msra.mxu0 0.0
    %2757 = vmatprep.subr.mxu0 0.0
    %2758 = vmatpush2.msra.mxu0 0.0
    %2759 = vmatprep.subr.mxu0 0.0
    %2760 = vmatpush2.msra.mxu0 0.0
    %2761 = vmatprep.subr.mxu0 0.0
    %2762 = vmatpush2.msra.mxu0 0.0
    %2763 = vmatprep.subr.mxu0 0.0
    %2764 = vmatpush2.msra.mxu0 0.0
    %2765 = vmatprep.subr.mxu0 0.0
    %2766 = vmatpush2.msra.mxu0 0.0
    %2767 = vmatprep.subr.mxu0 0.0
    %2768 = vmatpush2.msra.mxu0 0.0
    %2769 = vmatprep.subr.mxu0 0.0
    %2770 = vmatpush2.msra.mxu0 0.0
    %2771 = vmatprep.subr.mxu0 0.0
    %2772 = vmatpush2.msra.mxu0 0.0
    %2773 = vmatprep.mubr.f32.mxu0 0.0
    %2774 = vmatmul.mubr.f32.gmra.mxu0 %v2704
    %v2775 = vpop.f32.mrf.mxu0
    %v2776 = vadd.f32 0.0, %v2775
    %v2777 = vpop.f32.mrf.mxu0
    %2778 = vmatprep.mubr.f32.mxu0 0.0
    %2779 = vmatmul.mubr.f32.gmra.mxu0 %v2707
    %v2780 = vpop.f32.mrf.mxu0
    %v2781 = vadd.f32 0.0, %v2780
    %v2782 = vpop.f32.mrf.mxu0
    %2783 = vdwg.mxu0
    %2784 = vrot.lane.b32.xlu0 %v2569, 120
    %v2785 = vpop.permute.xlu0 %2784
    %2786 = vrot.lane.b32.xlu0 %v2574, 120
    %v2787 = vpop.permute.xlu0 %2786
    %2788 = vrot.lane.b32.xlu0 %v2569, 88
    %v2789 = vpop.permute.xlu0 %2788
    %2790 = vrot.lane.b32.xlu0 %v2574, 88
    %v2791 = vpop.permute.xlu0 %2790
    %v2792 = vsel %vm268, %v2785, 0
    %v2794 = vsel %vm268, %v2787, 0
    %v2796 = vsel %vm268, %v2789, 0
    %v2798 = vsel %vm268, %v2791, 0
    %2800 = vmatprep.subr.mxu0 0.0
    %2801 = vmatpush1.xpose.msra.mxu0 0.0
    %2802 = vmatprep.subr.mxu0 0.0
    %2803 = vmatpush1.xpose.msra.mxu0 0.0
    %2804 = vmatprep.subr.mxu0 0.0
    %2805 = vmatpush1.xpose.msra.mxu0 0.0
    %2806 = vmatprep.subr.mxu0 0.0
    %2807 = vmatpush1.xpose.msra.mxu0 0.0
    %2808 = vmatprep.subr.mxu0 0.0
    %2809 = vmatpush1.xpose.msra.mxu0 0.0
    %2810 = vmatprep.subr.mxu0 0.0
    %2811 = vmatpush1.xpose.msra.mxu0 0.0
    %2812 = vmatprep.subr.mxu0 0.0
    %2813 = vmatpush1.xpose.msra.mxu0 0.0
    %2814 = vmatprep.subr.mxu0 0.0
    %2815 = vmatpush1.xpose.msra.mxu0 0.0
    %2816 = vmatprep.subr.mxu0 0.0
    %2817 = vmatpush1.xpose.msra.mxu0 0.0
    %2818 = vmatprep.subr.mxu0 0.0
    %2819 = vmatpush1.xpose.msra.mxu0 0.0
    %2820 = vmatprep.subr.mxu0 0.0
    %2821 = vmatpush1.xpose.msra.mxu0 0.0
    %2822 = vmatprep.subr.mxu0 0.0
    %2823 = vmatpush1.xpose.msra.mxu0 0.0
    %2824 = vmatprep.subr.mxu0 0.0
    %2825 = vmatpush1.xpose.msra.mxu0 0.0
    %2826 = vmatprep.subr.mxu0 0.0
    %2827 = vmatpush1.xpose.msra.mxu0 0.0
    %2828 = vmatprep.subr.mxu0 0.0
    %2829 = vmatpush1.xpose.msra.mxu0 %v2798
    %2830 = vmatprep.subr.mxu0 0.0
    %2831 = vmatpush1.xpose.msra.mxu0 %v2796
    %2832 = vmatprep.subr.mxu0 0.0
    %2833 = vmatpush2.xpose.msra.mxu0 0.0
    %2834 = vmatprep.subr.mxu0 0.0
    %2835 = vmatpush2.xpose.msra.mxu0 0.0
    %2836 = vmatprep.subr.mxu0 0.0
    %2837 = vmatpush2.xpose.msra.mxu0 0.0
    %2838 = vmatprep.subr.mxu0 0.0
    %2839 = vmatpush2.xpose.msra.mxu0 0.0
    %2840 = vmatprep.subr.mxu0 0.0
    %2841 = vmatpush2.xpose.msra.mxu0 0.0
    %2842 = vmatprep.subr.mxu0 0.0
    %2843 = vmatpush2.xpose.msra.mxu0 0.0
    %2844 = vmatprep.subr.mxu0 0.0
    %2845 = vmatpush2.xpose.msra.mxu0 0.0
    %2846 = vmatprep.subr.mxu0 0.0
    %2847 = vmatpush2.xpose.msra.mxu0 0.0
    %2848 = vmatprep.subr.mxu0 0.0
    %2849 = vmatpush2.xpose.msra.mxu0 0.0
    %2850 = vmatprep.subr.mxu0 0.0
    %2851 = vmatpush2.xpose.msra.mxu0 0.0
    %2852 = vmatprep.subr.mxu0 0.0
    %2853 = vmatpush2.xpose.msra.mxu0 0.0
    %2854 = vmatprep.subr.mxu0 0.0
    %2855 = vmatpush2.xpose.msra.mxu0 0.0
    %2856 = vmatprep.subr.mxu0 0.0
    %2857 = vmatpush2.xpose.msra.mxu0 0.0
    %2858 = vmatprep.subr.mxu0 0.0
    %2859 = vmatpush2.xpose.msra.mxu0 0.0
    %2860 = vmatprep.subr.mxu0 0.0
    %2861 = vmatpush2.xpose.msra.mxu0 0.0
    %2862 = vmatprep.subr.mxu0 0.0
    %2863 = vmatpush2.xpose.msra.mxu0 0.0
    %2864 = vmatprep.mubr.f32.mxu0 0.0
    %2865 = vmatmul.mubr.f32.gmra.mxu0 %v2792
    %v2866 = vpop.f32.mrf.mxu0
    %v2867 = vadd.f32 0.0, %v2866
    %v2868 = vpop.f32.mrf.mxu0
    %2869 = vmatprep.mubr.f32.mxu0 0.0
    %2870 = vmatmul.mubr.f32.gmra.mxu0 %v2794
    %v2871 = vpop.f32.mrf.mxu0
    %v2872 = vadd.f32 0.0, %v2871
    %v2873 = vpop.f32.mrf.mxu0
    %2874 = vdwg.mxu0
    %v2875 = vmul.f32 %v2867, 0.35355338
    %v2876 = vmul.f32 %v2872, 0.35355338
    %v2877 = vadd.f32 %v2875, %v45
    %v2878 = vadd.f32 %v2876, %v46
    %v2879 = vsel %vm356, %v2877, -inf
    %2880 = vmax.xlane.f32.xlu0 %v2879
    %v2881 = vpop.xlane.xlu0 %2880
    %v2882 = vsel %vm356, %v2878, -inf
    %2883 = vmax.xlane.f32.xlu0 %v2882
    %v2884 = vpop.xlane.xlu0 %2883
    %v2885 = vsub.f32 %v2877, %v2881
    %v2886 = vsub.f32 %v2878, %v2884
    %v2887 = vmul.f32 %v2885, 1.442695
    %v2888 = vpow.pop %v2887
    %v2889 = vmul.f32 %v2886, 1.442695
    %v2890 = vpow.pop %v2889
    %v2891 = vsel %vm356, %v2888, 0.0
    %2892 = vadd.xlane.f32.xlu0 %v2891
    %v2893 = vpop.xlane.xlu0 %2892
    %v2894 = vsel %vm356, %v2890, 0.0
    %2895 = vadd.xlane.f32.xlu0 %v2894
    %v2896 = vpop.xlane.xlu0 %2895
    %v2897 = vrcp.pop %v2893
    %v2898 = vrcp.pop %v2896
    %v2899 = vmul.f32 %v2888, %v2897
    %v2900 = vmul.f32 %v2890, %v2898
    %2901 = vrot.lane.b32.xlu0 %v2569, 56
    %v2902 = vpop.permute.xlu0 %2901
    %2903 = vrot.lane.b32.xlu0 %v2574, 56
    %v2904 = vpop.permute.xlu0 %2903
    %v2908 = vsel %vm356, %v2899, 0
    %v2911 = vsel %vm356, %v2900, 0
    %2913 = vmatprep.subr.mxu0 0.0
    %2914 = vmatpush1.msra.mxu0 0.0
    %2915 = vmatprep.subr.mxu0 0.0
    %2916 = vmatpush1.msra.mxu0 0.0
    %2917 = vmatprep.subr.mxu0 0.0
    %2918 = vmatpush1.msra.mxu0 0.0
    %2919 = vmatprep.subr.mxu0 0.0
    %2920 = vmatpush1.msra.mxu0 0.0
    %2921 = vmatprep.subr.mxu0 0.0
    %2922 = vmatpush1.msra.mxu0 0.0
    %2923 = vmatprep.subr.mxu0 0.0
    %2924 = vmatpush1.msra.mxu0 0.0
    %2925 = vmatprep.subr.mxu0 0.0
    %2926 = vmatpush1.msra.mxu0 0.0
    %2927 = vmatprep.subr.mxu0 0.0
    %2928 = vmatpush1.msra.mxu0 0.0
    %2929 = vmatprep.subr.mxu0 0.0
    %2930 = vmatpush1.msra.mxu0 0.0
    %2931 = vmatprep.subr.mxu0 0.0
    %2932 = vmatpush1.msra.mxu0 0.0
    %2933 = vmatprep.subr.mxu0 0.0
    %2934 = vmatpush1.msra.mxu0 0.0
    %2935 = vmatprep.subr.mxu0 0.0
    %2936 = vmatpush1.msra.mxu0 0.0
    %2937 = vmatprep.subr.mxu0 0.0
    %2938 = vmatpush1.msra.mxu0 0.0
    %2939 = vmatprep.subr.mxu0 0.0
    %2940 = vmatpush1.msra.mxu0 0.0
    %2941 = vmatprep.subr.mxu0 0.0
    %2942 = vmatpush1.msra.mxu0 %v2904
    %2943 = vmatprep.subr.mxu0 0.0
    %2944 = vmatpush1.msra.mxu0 %v2902
    %2945 = vmatprep.subr.mxu0 0.0
    %2946 = vmatpush2.msra.mxu0 0.0
    %2947 = vmatprep.subr.mxu0 0.0
    %2948 = vmatpush2.msra.mxu0 0.0
    %2949 = vmatprep.subr.mxu0 0.0
    %2950 = vmatpush2.msra.mxu0 0.0
    %2951 = vmatprep.subr.mxu0 0.0
    %2952 = vmatpush2.msra.mxu0 0.0
    %2953 = vmatprep.subr.mxu0 0.0
    %2954 = vmatpush2.msra.mxu0 0.0
    %2955 = vmatprep.subr.mxu0 0.0
    %2956 = vmatpush2.msra.mxu0 0.0
    %2957 = vmatprep.subr.mxu0 0.0
    %2958 = vmatpush2.msra.mxu0 0.0
    %2959 = vmatprep.subr.mxu0 0.0
    %2960 = vmatpush2.msra.mxu0 0.0
    %2961 = vmatprep.subr.mxu0 0.0
    %2962 = vmatpush2.msra.mxu0 0.0
    %2963 = vmatprep.subr.mxu0 0.0
    %2964 = vmatpush2.msra.mxu0 0.0
    %2965 = vmatprep.subr.mxu0 0.0
    %2966 = vmatpush2.msra.mxu0 0.0
    %2967 = vmatprep.subr.mxu0 0.0
    %2968 = vmatpush2.msra.mxu0 0.0
    %2969 = vmatprep.subr.mxu0 0.0
    %2970 = vmatpush2.msra.mxu0 0.0
    %2971 = vmatprep.subr.mxu0 0.0
    %2972 = vmatpush2.msra.mxu0 0.0
    %2973 = vmatprep.subr.mxu0 0.0
    %2974 = vmatpush2.msra.mxu0 0.0
    %2975 = vmatprep.subr.mxu0 0.0
    %2976 = vmatpush2.msra.mxu0 0.0
    %2977 = vmatprep.mubr.f32.mxu0 0.0
    %2978 = vmatmul.mubr.f32.gmra.mxu0 %v2908
    %v2979 = vpop.f32.mrf.mxu0
    %v2980 = vadd.f32 0.0, %v2979
    %v2981 = vpop.f32.mrf.mxu0
    %2982 = vmatprep.mubr.f32.mxu0 0.0
    %2983 = vmatmul.mubr.f32.gmra.mxu0 %v2911
    %v2984 = vpop.f32.mrf.mxu0
    %v2985 = vadd.f32 0.0, %v2984
    %v2986 = vpop.f32.mrf.mxu0
    %2987 = vdwg.mxu0
    %2988 = vrot.lane.b32.xlu0 %v2569, 112
    %v2989 = vpop.permute.xlu0 %2988
    %2990 = vrot.lane.b32.xlu0 %v2574, 112
    %v2991 = vpop.permute.xlu0 %2990
    %2992 = vrot.lane.b32.xlu0 %v2569, 80
    %v2993 = vpop.permute.xlu0 %2992
    %2994 = vrot.lane.b32.xlu0 %v2574, 80
    %v2995 = vpop.permute.xlu0 %2994
    %v2996 = vsel %vm268, %v2989, 0
    %v2998 = vsel %vm268, %v2991, 0
    %v3000 = vsel %vm268, %v2993, 0
    %v3002 = vsel %vm268, %v2995, 0
    %3004 = vmatprep.subr.mxu0 0.0
    %3005 = vmatpush1.xpose.msra.mxu0 0.0
    %3006 = vmatprep.subr.mxu0 0.0
    %3007 = vmatpush1.xpose.msra.mxu0 0.0
    %3008 = vmatprep.subr.mxu0 0.0
    %3009 = vmatpush1.xpose.msra.mxu0 0.0
    %3010 = vmatprep.subr.mxu0 0.0
    %3011 = vmatpush1.xpose.msra.mxu0 0.0
    %3012 = vmatprep.subr.mxu0 0.0
    %3013 = vmatpush1.xpose.msra.mxu0 0.0
    %3014 = vmatprep.subr.mxu0 0.0
    %3015 = vmatpush1.xpose.msra.mxu0 0.0
    %3016 = vmatprep.subr.mxu0 0.0
    %3017 = vmatpush1.xpose.msra.mxu0 0.0
    %3018 = vmatprep.subr.mxu0 0.0
    %3019 = vmatpush1.xpose.msra.mxu0 0.0
    %3020 = vmatprep.subr.mxu0 0.0
    %3021 = vmatpush1.xpose.msra.mxu0 0.0
    %3022 = vmatprep.subr.mxu0 0.0
    %3023 = vmatpush1.xpose.msra.mxu0 0.0
    %3024 = vmatprep.subr.mxu0 0.0
    %3025 = vmatpush1.xpose.msra.mxu0 0.0
    %3026 = vmatprep.subr.mxu0 0.0
    %3027 = vmatpush1.xpose.msra.mxu0 0.0
    %3028 = vmatprep.subr.mxu0 0.0
    %3029 = vmatpush1.xpose.msra.mxu0 0.0
    %3030 = vmatprep.subr.mxu0 0.0
    %3031 = vmatpush1.xpose.msra.mxu0 0.0
    %3032 = vmatprep.subr.mxu0 0.0
    %3033 = vmatpush1.xpose.msra.mxu0 %v3002
    %3034 = vmatprep.subr.mxu0 0.0
    %3035 = vmatpush1.xpose.msra.mxu0 %v3000
    %3036 = vmatprep.subr.mxu0 0.0
    %3037 = vmatpush2.xpose.msra.mxu0 0.0
    %3038 = vmatprep.subr.mxu0 0.0
    %3039 = vmatpush2.xpose.msra.mxu0 0.0
    %3040 = vmatprep.subr.mxu0 0.0
    %3041 = vmatpush2.xpose.msra.mxu0 0.0
    %3042 = vmatprep.subr.mxu0 0.0
    %3043 = vmatpush2.xpose.msra.mxu0 0.0
    %3044 = vmatprep.subr.mxu0 0.0
    %3045 = vmatpush2.xpose.msra.mxu0 0.0
    %3046 = vmatprep.subr.mxu0 0.0
    %3047 = vmatpush2.xpose.msra.mxu0 0.0
    %3048 = vmatprep.subr.mxu0 0.0
    %3049 = vmatpush2.xpose.msra.mxu0 0.0
    %3050 = vmatprep.subr.mxu0 0.0
    %3051 = vmatpush2.xpose.msra.mxu0 0.0
    %3052 = vmatprep.subr.mxu0 0.0
    %3053 = vmatpush2.xpose.msra.mxu0 0.0
    %3054 = vmatprep.subr.mxu0 0.0
    %3055 = vmatpush2.xpose.msra.mxu0 0.0
    %3056 = vmatprep.subr.mxu0 0.0
    %3057 = vmatpush2.xpose.msra.mxu0 0.0
    %3058 = vmatprep.subr.mxu0 0.0
    %3059 = vmatpush2.xpose.msra.mxu0 0.0
    %3060 = vmatprep.subr.mxu0 0.0
    %3061 = vmatpush2.xpose.msra.mxu0 0.0
    %3062 = vmatprep.subr.mxu0 0.0
    %3063 = vmatpush2.xpose.msra.mxu0 0.0
    %3064 = vmatprep.subr.mxu0 0.0
    %3065 = vmatpush2.xpose.msra.mxu0 0.0
    %3066 = vmatprep.subr.mxu0 0.0
    %3067 = vmatpush2.xpose.msra.mxu0 0.0
    %3068 = vmatprep.mubr.f32.mxu0 0.0
    %3069 = vmatmul.mubr.f32.gmra.mxu0 %v2996
    %v3070 = vpop.f32.mrf.mxu0
    %v3071 = vadd.f32 0.0, %v3070
    %v3072 = vpop.f32.mrf.mxu0
    %3073 = vmatprep.mubr.f32.mxu0 0.0
    %3074 = vmatmul.mubr.f32.gmra.mxu0 %v2998
    %v3075 = vpop.f32.mrf.mxu0
    %v3076 = vadd.f32 0.0, %v3075
    %v3077 = vpop.f32.mrf.mxu0
    %3078 = vdwg.mxu0
    %v3079 = vmul.f32 %v3071, 0.35355338
    %v3080 = vmul.f32 %v3076, 0.35355338
    %v3081 = vadd.f32 %v3079, %v45
    %v3082 = vadd.f32 %v3080, %v46
    %v3083 = vsel %vm356, %v3081, -inf
    %3084 = vmax.xlane.f32.xlu0 %v3083
    %v3085 = vpop.xlane.xlu0 %3084
    %v3086 = vsel %vm356, %v3082, -inf
    %3087 = vmax.xlane.f32.xlu0 %v3086
    %v3088 = vpop.xlane.xlu0 %3087
    %v3089 = vsub.f32 %v3081, %v3085
    %v3090 = vsub.f32 %v3082, %v3088
    %v3091 = vmul.f32 %v3089, 1.442695
    %v3092 = vpow.pop %v3091
    %v3093 = vmul.f32 %v3090, 1.442695
    %v3094 = vpow.pop %v3093
    %v3095 = vsel %vm356, %v3092, 0.0
    %3096 = vadd.xlane.f32.xlu0 %v3095
    %v3097 = vpop.xlane.xlu0 %3096
    %v3098 = vsel %vm356, %v3094, 0.0
    %3099 = vadd.xlane.f32.xlu0 %v3098
    %v3100 = vpop.xlane.xlu0 %3099
    %v3101 = vrcp.pop %v3097
    %v3102 = vrcp.pop %v3100
    %v3103 = vmul.f32 %v3092, %v3101
    %v3104 = vmul.f32 %v3094, %v3102
    %3105 = vrot.lane.b32.xlu0 %v2569, 48
    %v3106 = vpop.permute.xlu0 %3105
    %3107 = vrot.lane.b32.xlu0 %v2574, 48
    %v3108 = vpop.permute.xlu0 %3107
    %v3112 = vsel %vm356, %v3103, 0
    %v3115 = vsel %vm356, %v3104, 0
    %3117 = vmatprep.subr.mxu0 0.0
    %3118 = vmatpush1.msra.mxu0 0.0
    %3119 = vmatprep.subr.mxu0 0.0
    %3120 = vmatpush1.msra.mxu0 0.0
    %3121 = vmatprep.subr.mxu0 0.0
    %3122 = vmatpush1.msra.mxu0 0.0
    %3123 = vmatprep.subr.mxu0 0.0
    %3124 = vmatpush1.msra.mxu0 0.0
    %3125 = vmatprep.subr.mxu0 0.0
    %3126 = vmatpush1.msra.mxu0 0.0
    %3127 = vmatprep.subr.mxu0 0.0
    %3128 = vmatpush1.msra.mxu0 0.0
    %3129 = vmatprep.subr.mxu0 0.0
    %3130 = vmatpush1.msra.mxu0 0.0
    %3131 = vmatprep.subr.mxu0 0.0
    %3132 = vmatpush1.msra.mxu0 0.0
    %3133 = vmatprep.subr.mxu0 0.0
    %3134 = vmatpush1.msra.mxu0 0.0
    %3135 = vmatprep.subr.mxu0 0.0
    %3136 = vmatpush1.msra.mxu0 0.0
    %3137 = vmatprep.subr.mxu0 0.0
    %3138 = vmatpush1.msra.mxu0 0.0
    %3139 = vmatprep.subr.mxu0 0.0
    %3140 = vmatpush1.msra.mxu0 0.0
    %3141 = vmatprep.subr.mxu0 0.0
    %3142 = vmatpush1.msra.mxu0 0.0
    %3143 = vmatprep.subr.mxu0 0.0
    %3144 = vmatpush1.msra.mxu0 0.0
    %3145 = vmatprep.subr.mxu0 0.0
    %3146 = vmatpush1.msra.mxu0 %v3108
    %3147 = vmatprep.subr.mxu0 0.0
    %3148 = vmatpush1.msra.mxu0 %v3106
    %3149 = vmatprep.subr.mxu0 0.0
    %3150 = vmatpush2.msra.mxu0 0.0
    %3151 = vmatprep.subr.mxu0 0.0
    %3152 = vmatpush2.msra.mxu0 0.0
    %3153 = vmatprep.subr.mxu0 0.0
    %3154 = vmatpush2.msra.mxu0 0.0
    %3155 = vmatprep.subr.mxu0 0.0
    %3156 = vmatpush2.msra.mxu0 0.0
    %3157 = vmatprep.subr.mxu0 0.0
    %3158 = vmatpush2.msra.mxu0 0.0
    %3159 = vmatprep.subr.mxu0 0.0
    %3160 = vmatpush2.msra.mxu0 0.0
    %3161 = vmatprep.subr.mxu0 0.0
    %3162 = vmatpush2.msra.mxu0 0.0
    %3163 = vmatprep.subr.mxu0 0.0
    %3164 = vmatpush2.msra.mxu0 0.0
    %3165 = vmatprep.subr.mxu0 0.0
    %3166 = vmatpush2.msra.mxu0 0.0
    %3167 = vmatprep.subr.mxu0 0.0
    %3168 = vmatpush2.msra.mxu0 0.0
    %3169 = vmatprep.subr.mxu0 0.0
    %3170 = vmatpush2.msra.mxu0 0.0
    %3171 = vmatprep.subr.mxu0 0.0
    %3172 = vmatpush2.msra.mxu0 0.0
    %3173 = vmatprep.subr.mxu0 0.0
    %3174 = vmatpush2.msra.mxu0 0.0
    %3175 = vmatprep.subr.mxu0 0.0
    %3176 = vmatpush2.msra.mxu0 0.0
    %3177 = vmatprep.subr.mxu0 0.0
    %3178 = vmatpush2.msra.mxu0 0.0
    %3179 = vmatprep.subr.mxu0 0.0
    %3180 = vmatpush2.msra.mxu0 0.0
    %3181 = vmatprep.mubr.f32.mxu0 0.0
    %3182 = vmatmul.mubr.f32.gmra.mxu0 %v3112
    %v3183 = vpop.f32.mrf.mxu0
    %v3184 = vadd.f32 0.0, %v3183
    %v3185 = vpop.f32.mrf.mxu0
    %3186 = vmatprep.mubr.f32.mxu0 0.0
    %3187 = vmatmul.mubr.f32.gmra.mxu0 %v3115
    %v3188 = vpop.f32.mrf.mxu0
    %v3189 = vadd.f32 0.0, %v3188
    %v3190 = vpop.f32.mrf.mxu0
    %3191 = vdwg.mxu0
    %3192 = vrot.lane.b32.xlu0 %v2569, 104
    %v3193 = vpop.permute.xlu0 %3192
    %3194 = vrot.lane.b32.xlu0 %v2574, 104
    %v3195 = vpop.permute.xlu0 %3194
    %3196 = vrot.lane.b32.xlu0 %v2569, 72
    %v3197 = vpop.permute.xlu0 %3196
    %3198 = vrot.lane.b32.xlu0 %v2574, 72
    %v3199 = vpop.permute.xlu0 %3198
    %v3200 = vsel %vm268, %v3193, 0
    %v3202 = vsel %vm268, %v3195, 0
    %v3204 = vsel %vm268, %v3197, 0
    %v3206 = vsel %vm268, %v3199, 0
    %3208 = vmatprep.subr.mxu0 0.0
    %3209 = vmatpush1.xpose.msra.mxu0 0.0
    %3210 = vmatprep.subr.mxu0 0.0
    %3211 = vmatpush1.xpose.msra.mxu0 0.0
    %3212 = vmatprep.subr.mxu0 0.0
    %3213 = vmatpush1.xpose.msra.mxu0 0.0
    %3214 = vmatprep.subr.mxu0 0.0
    %3215 = vmatpush1.xpose.msra.mxu0 0.0
    %3216 = vmatprep.subr.mxu0 0.0
    %3217 = vmatpush1.xpose.msra.mxu0 0.0
    %3218 = vmatprep.subr.mxu0 0.0
    %3219 = vmatpush1.xpose.msra.mxu0 0.0
    %3220 = vmatprep.subr.mxu0 0.0
    %3221 = vmatpush1.xpose.msra.mxu0 0.0
    %3222 = vmatprep.subr.mxu0 0.0
    %3223 = vmatpush1.xpose.msra.mxu0 0.0
    %3224 = vmatprep.subr.mxu0 0.0
    %3225 = vmatpush1.xpose.msra.mxu0 0.0
    %3226 = vmatprep.subr.mxu0 0.0
    %3227 = vmatpush1.xpose.msra.mxu0 0.0
    %3228 = vmatprep.subr.mxu0 0.0
    %3229 = vmatpush1.xpose.msra.mxu0 0.0
    %3230 = vmatprep.subr.mxu0 0.0
    %3231 = vmatpush1.xpose.msra.mxu0 0.0
    %3232 = vmatprep.subr.mxu0 0.0
    %3233 = vmatpush1.xpose.msra.mxu0 0.0
    %3234 = vmatprep.subr.mxu0 0.0
    %3235 = vmatpush1.xpose.msra.mxu0 0.0
    %3236 = vmatprep.subr.mxu0 0.0
    %3237 = vmatpush1.xpose.msra.mxu0 %v3206
    %3238 = vmatprep.subr.mxu0 0.0
    %3239 = vmatpush1.xpose.msra.mxu0 %v3204
    %3240 = vmatprep.subr.mxu0 0.0
    %3241 = vmatpush2.xpose.msra.mxu0 0.0
    %3242 = vmatprep.subr.mxu0 0.0
    %3243 = vmatpush2.xpose.msra.mxu0 0.0
    %3244 = vmatprep.subr.mxu0 0.0
    %3245 = vmatpush2.xpose.msra.mxu0 0.0
    %3246 = vmatprep.subr.mxu0 0.0
    %3247 = vmatpush2.xpose.msra.mxu0 0.0
    %3248 = vmatprep.subr.mxu0 0.0
    %3249 = vmatpush2.xpose.msra.mxu0 0.0
    %3250 = vmatprep.subr.mxu0 0.0
    %3251 = vmatpush2.xpose.msra.mxu0 0.0
    %3252 = vmatprep.subr.mxu0 0.0
    %3253 = vmatpush2.xpose.msra.mxu0 0.0
    %3254 = vmatprep.subr.mxu0 0.0
    %3255 = vmatpush2.xpose.msra.mxu0 0.0
    %3256 = vmatprep.subr.mxu0 0.0
    %3257 = vmatpush2.xpose.msra.mxu0 0.0
    %3258 = vmatprep.subr.mxu0 0.0
    %3259 = vmatpush2.xpose.msra.mxu0 0.0
    %3260 = vmatprep.subr.mxu0 0.0
    %3261 = vmatpush2.xpose.msra.mxu0 0.0
    %3262 = vmatprep.subr.mxu0 0.0
    %3263 = vmatpush2.xpose.msra.mxu0 0.0
    %3264 = vmatprep.subr.mxu0 0.0
    %3265 = vmatpush2.xpose.msra.mxu0 0.0
    %3266 = vmatprep.subr.mxu0 0.0
    %3267 = vmatpush2.xpose.msra.mxu0 0.0
    %3268 = vmatprep.subr.mxu0 0.0
    %3269 = vmatpush2.xpose.msra.mxu0 0.0
    %3270 = vmatprep.subr.mxu0 0.0
    %3271 = vmatpush2.xpose.msra.mxu0 0.0
    %3272 = vmatprep.mubr.f32.mxu0 0.0
    %3273 = vmatmul.mubr.f32.gmra.mxu0 %v3200
    %v3274 = vpop.f32.mrf.mxu0
    %v3275 = vadd.f32 0.0, %v3274
    %v3276 = vpop.f32.mrf.mxu0
    %3277 = vmatprep.mubr.f32.mxu0 0.0
    %3278 = vmatmul.mubr.f32.gmra.mxu0 %v3202
    %v3279 = vpop.f32.mrf.mxu0
    %v3280 = vadd.f32 0.0, %v3279
    %v3281 = vpop.f32.mrf.mxu0
    %3282 = vdwg.mxu0
    %v3283 = vmul.f32 %v3275, 0.35355338
    %v3284 = vmul.f32 %v3280, 0.35355338
    %v3285 = vadd.f32 %v3283, %v45
    %v3286 = vadd.f32 %v3284, %v46
    %v3287 = vsel %vm356, %v3285, -inf
    %3288 = vmax.xlane.f32.xlu0 %v3287
    %v3289 = vpop.xlane.xlu0 %3288
    %v3290 = vsel %vm356, %v3286, -inf
    %3291 = vmax.xlane.f32.xlu0 %v3290
    %v3292 = vpop.xlane.xlu0 %3291
    %v3293 = vsub.f32 %v3285, %v3289
    %v3294 = vsub.f32 %v3286, %v3292
    %v3295 = vmul.f32 %v3293, 1.442695
    %v3296 = vpow.pop %v3295
    %v3297 = vmul.f32 %v3294, 1.442695
    %v3298 = vpow.pop %v3297
    %v3299 = vsel %vm356, %v3296, 0.0
    %3300 = vadd.xlane.f32.xlu0 %v3299
    %v3301 = vpop.xlane.xlu0 %3300
    %v3302 = vsel %vm356, %v3298, 0.0
    %3303 = vadd.xlane.f32.xlu0 %v3302
    %v3304 = vpop.xlane.xlu0 %3303
    %v3305 = vrcp.pop %v3301
    %v3306 = vrcp.pop %v3304
    %v3307 = vmul.f32 %v3296, %v3305
    %v3308 = vmul.f32 %v3298, %v3306
    %3309 = vrot.lane.b32.xlu0 %v2569, 40
    %v3310 = vpop.permute.xlu0 %3309
    %3311 = vrot.lane.b32.xlu0 %v2574, 40
    %v3312 = vpop.permute.xlu0 %3311
    %v3316 = vsel %vm356, %v3307, 0
    %v3319 = vsel %vm356, %v3308, 0
    %3321 = vmatprep.subr.mxu0 0.0
    %3322 = vmatpush1.msra.mxu0 0.0
    %3323 = vmatprep.subr.mxu0 0.0
    %3324 = vmatpush1.msra.mxu0 0.0
    %3325 = vmatprep.subr.mxu0 0.0
    %3326 = vmatpush1.msra.mxu0 0.0
    %3327 = vmatprep.subr.mxu0 0.0
    %3328 = vmatpush1.msra.mxu0 0.0
    %3329 = vmatprep.subr.mxu0 0.0
    %3330 = vmatpush1.msra.mxu0 0.0
    %3331 = vmatprep.subr.mxu0 0.0
    %3332 = vmatpush1.msra.mxu0 0.0
    %3333 = vmatprep.subr.mxu0 0.0
    %3334 = vmatpush1.msra.mxu0 0.0
    %3335 = vmatprep.subr.mxu0 0.0
    %3336 = vmatpush1.msra.mxu0 0.0
    %3337 = vmatprep.subr.mxu0 0.0
    %3338 = vmatpush1.msra.mxu0 0.0
    %3339 = vmatprep.subr.mxu0 0.0
    %3340 = vmatpush1.msra.mxu0 0.0
    %3341 = vmatprep.subr.mxu0 0.0
    %3342 = vmatpush1.msra.mxu0 0.0
    %3343 = vmatprep.subr.mxu0 0.0
    %3344 = vmatpush1.msra.mxu0 0.0
    %3345 = vmatprep.subr.mxu0 0.0
    %3346 = vmatpush1.msra.mxu0 0.0
    %3347 = vmatprep.subr.mxu0 0.0
    %3348 = vmatpush1.msra.mxu0 0.0
    %3349 = vmatprep.subr.mxu0 0.0
    %3350 = vmatpush1.msra.mxu0 %v3312
    %3351 = vmatprep.subr.mxu0 0.0
    %3352 = vmatpush1.msra.mxu0 %v3310
    %3353 = vmatprep.subr.mxu0 0.0
    %3354 = vmatpush2.msra.mxu0 0.0
    %3355 = vmatprep.subr.mxu0 0.0
    %3356 = vmatpush2.msra.mxu0 0.0
    %3357 = vmatprep.subr.mxu0 0.0
    %3358 = vmatpush2.msra.mxu0 0.0
    %3359 = vmatprep.subr.mxu0 0.0
    %3360 = vmatpush2.msra.mxu0 0.0
    %3361 = vmatprep.subr.mxu0 0.0
    %3362 = vmatpush2.msra.mxu0 0.0
    %3363 = vmatprep.subr.mxu0 0.0
    %3364 = vmatpush2.msra.mxu0 0.0
    %3365 = vmatprep.subr.mxu0 0.0
    %3366 = vmatpush2.msra.mxu0 0.0
    %3367 = vmatprep.subr.mxu0 0.0
    %3368 = vmatpush2.msra.mxu0 0.0
    %3369 = vmatprep.subr.mxu0 0.0
    %3370 = vmatpush2.msra.mxu0 0.0
    %3371 = vmatprep.subr.mxu0 0.0
    %3372 = vmatpush2.msra.mxu0 0.0
    %3373 = vmatprep.subr.mxu0 0.0
    %3374 = vmatpush2.msra.mxu0 0.0
    %3375 = vmatprep.subr.mxu0 0.0
    %3376 = vmatpush2.msra.mxu0 0.0
    %3377 = vmatprep.subr.mxu0 0.0
    %3378 = vmatpush2.msra.mxu0 0.0
    %3379 = vmatprep.subr.mxu0 0.0
    %3380 = vmatpush2.msra.mxu0 0.0
    %3381 = vmatprep.subr.mxu0 0.0
    %3382 = vmatpush2.msra.mxu0 0.0
    %3383 = vmatprep.subr.mxu0 0.0
    %3384 = vmatpush2.msra.mxu0 0.0
    %3385 = vmatprep.mubr.f32.mxu0 0.0
    %3386 = vmatmul.mubr.f32.gmra.mxu0 %v3316
    %v3387 = vpop.f32.mrf.mxu0
    %v3388 = vadd.f32 0.0, %v3387
    %v3389 = vpop.f32.mrf.mxu0
    %3390 = vmatprep.mubr.f32.mxu0 0.0
    %3391 = vmatmul.mubr.f32.gmra.mxu0 %v3319
    %v3392 = vpop.f32.mrf.mxu0
    %v3393 = vadd.f32 0.0, %v3392
    %v3394 = vpop.f32.mrf.mxu0
    %3395 = vdwg.mxu0
    %3398 = vrot.lane.b32.xlu0 %v2980, 8
    %v3399 = vpop.permute.xlu0 %3398
    %3400 = vrot.lane.b32.xlu0 %v2985, 8
    %v3401 = vpop.permute.xlu0 %3400
    %3406 = vrot.lane.b32.xlu0 %v3184, 16
    %v3407 = vpop.permute.xlu0 %3406
    %3408 = vrot.lane.b32.xlu0 %v3189, 16
    %v3409 = vpop.permute.xlu0 %3408
    %3414 = vrot.lane.b32.xlu0 %v3388, 24
    %v3415 = vpop.permute.xlu0 %3414
    %3416 = vrot.lane.b32.xlu0 %v3393, 24
    %v3417 = vpop.permute.xlu0 %3416
    %v3420 = vsel %vm268, %v2776, %v3399
    %v3421 = vsel %vm268, %v2781, %v3401
    %v3422 = vsel %vm356, %v3420, %v3407
    %v3423 = vsel %vm356, %v3421, %v3409
    %v3424 = vsel %vm1106, %v3422, %v3415
    %v3425 = vsel %vm1106, %v3423, %v3417
    %v3426 = vlaneseq
    %v3427 = vshrl.u32 %v3426, 7
    %v3428 = vsub.s32 0, %v3427
    %v3429 = vrot.slane %v2581, %v3428
    %v3431 = vsel %vm58, %v3424, 0
    %v3434 = vsel %vm58, %v3425, 0
    %3436 = vmatprep.subr.mxu0 0.0
    %3437 = vmatpush1.msra.mxu0 0.0
    %3438 = vmatprep.subr.mxu0 0.0
    %3439 = vmatpush1.msra.mxu0 0.0
    %3440 = vmatprep.subr.mxu0 0.0
    %3441 = vmatpush1.msra.mxu0 0.0
    %3442 = vmatprep.subr.mxu0 0.0
    %3443 = vmatpush1.msra.mxu0 0.0
    %3444 = vmatprep.subr.mxu0 0.0
    %3445 = vmatpush1.msra.mxu0 0.0
    %3446 = vmatprep.subr.mxu0 0.0
    %3447 = vmatpush1.msra.mxu0 0.0
    %3448 = vmatprep.subr.mxu0 0.0
    %3449 = vmatpush1.msra.mxu0 0.0
    %3450 = vmatprep.subr.mxu0 0.0
    %3451 = vmatpush1.msra.mxu0 0.0
    %3452 = vmatprep.subr.mxu0 0.0
    %3453 = vmatpush1.msra.mxu0 0.0
    %3454 = vmatprep.subr.mxu0 0.0
    %3455 = vmatpush1.msra.mxu0 0.0
    %3456 = vmatprep.subr.mxu0 0.0
    %3457 = vmatpush1.msra.mxu0 0.0
    %3458 = vmatprep.subr.mxu0 0.0
    %3459 = vmatpush1.msra.mxu0 0.0
    %3460 = vmatprep.subr.mxu0 0.0
    %3461 = vmatpush1.msra.mxu0 %v2580
    %3462 = vmatprep.subr.mxu0 0.0
    %3463 = vmatpush1.msra.mxu0 %v2579
    %3464 = vmatprep.subr.mxu0 0.0
    %3465 = vmatpush1.msra.mxu0 %v2578
    %3466 = vmatprep.subr.mxu0 0.0
    %3467 = vmatpush1.msra.mxu0 %v2577
    %3468 = vmatprep.subr.mxu0 0.0
    %3469 = vmatpush2.msra.mxu0 0.0
    %3470 = vmatprep.subr.mxu0 0.0
    %3471 = vmatpush2.msra.mxu0 0.0
    %3472 = vmatprep.subr.mxu0 0.0
    %3473 = vmatpush2.msra.mxu0 0.0
    %3474 = vmatprep.subr.mxu0 0.0
    %3475 = vmatpush2.msra.mxu0 0.0
    %3476 = vmatprep.subr.mxu0 0.0
    %3477 = vmatpush2.msra.mxu0 0.0
    %3478 = vmatprep.subr.mxu0 0.0
    %3479 = vmatpush2.msra.mxu0 0.0
    %3480 = vmatprep.subr.mxu0 0.0
    %3481 = vmatpush2.msra.mxu0 0.0
    %3482 = vmatprep.subr.mxu0 0.0
    %3483 = vmatpush2.msra.mxu0 0.0
    %3484 = vmatprep.subr.mxu0 0.0
    %3485 = vmatpush2.msra.mxu0 0.0
    %3486 = vmatprep.subr.mxu0 0.0
    %3487 = vmatpush2.msra.mxu0 0.0
    %3488 = vmatprep.subr.mxu0 0.0
    %3489 = vmatpush2.msra.mxu0 0.0
    %3490 = vmatprep.subr.mxu0 0.0
    %3491 = vmatpush2.msra.mxu0 0.0
    %3492 = vmatprep.subr.mxu0 0.0
    %3493 = vmatpush2.msra.mxu0 0.0
    %3494 = vmatprep.subr.mxu0 0.0
    %3495 = vmatpush2.msra.mxu0 0.0
    %3496 = vmatprep.subr.mxu0 0.0
    %3497 = vmatpush2.msra.mxu0 0.0
    %3498 = vmatprep.subr.mxu0 0.0
    %3499 = vmatpush2.msra.mxu0 0.0
    %3500 = vmatprep.mubr.f32.mxu0 0.0
    %3501 = vmatmul.mubr.f32.gmra.mxu0 %v3431
    %v3502 = vpop.f32.mrf.mxu0
    %v3503 = vadd.f32 %v3429, %v3502
    %v3504 = vpop.f32.mrf.mxu0
    %3505 = vmatprep.mubr.f32.mxu0 0.0
    %3506 = vmatmul.mubr.f32.gmra.mxu0 %v3434
    %v3507 = vpop.f32.mrf.mxu0
    %v3508 = vadd.f32 %v3429, %v3507
    %v3509 = vpop.f32.mrf.mxu0
    %3510 = vdwg.mxu0
    %v3511 = vadd.f32 %v2459, %v3503
    %v3512 = vadd.f32 %v2460, %v3508
    %v3513 = vsel %vm58, %v3511, 0.0
    %3514 = vadd.xlane.f32.xlu0 %v3513
    %v3515 = vpop.xlane.xlu0 %3514
    %v3516 = vsel %vm58, %v3512, 0.0
    %3517 = vadd.xlane.f32.xlu0 %v3516
    %v3518 = vpop.xlane.xlu0 %3517
    %v3519 = vmul.f32 %v3515, %v146
    %v3520 = vmul.f32 %v3518, %v146
    %v3521 = vsub.f32 %v3511, %v3519
    %v3522 = vsub.f32 %v3512, %v3520
    %v3523 = vmul.f32 %v3521, %v3521
    %v3524 = vmul.f32 %v3522, %v3522
    %v3525 = vsel %vm58, %v3523, 0.0
    %3526 = vadd.xlane.f32.xlu0 %v3525
    %v3527 = vpop.xlane.xlu0 %3526
    %v3528 = vsel %vm58, %v3524, 0.0
    %3529 = vadd.xlane.f32.xlu0 %v3528
    %v3530 = vpop.xlane.xlu0 %3529
    %v3531 = vmul.f32 %v3527, %v146
    %v3532 = vmul.f32 %v3530, %v146
    %v3533 = vadd.f32 %v3531, 1e-05
    %v3534 = vadd.f32 %v3532, 1e-05
    %v3535 = vrsqrt.pop %v3533
    %v3536 = vrsqrt.pop %v3534
    %v3537 = vmul.f32 %v3521, %v3535
    %v3538 = vmul.f32 %v3522, %v3536
    %v3539 = vld [vmem:[#allocation2 + $0xc0] sm:$0xff]
    %v3540 = vld [vmem:[#allocation2 + $0xc8] sm:$0xff]
    %v3541 = vld [vmem:[#allocation2 + $0xd0] sm:$0xff]
    %v3542 = vld [vmem:[#allocation2 + $0xd8] sm:$0xff]
    %v3543 = vld [vmem:[%s6 + $0x7] sm:$0x1]
    %v3544 = vlaneseq
    %v3545 = vshrl.u32 %v3544, 7
    %v3546 = vsub.s32 0, %v3545
    %v3547 = vrot.slane %v3543, %v3546
    %v3549 = vsel %vm58, %v3537, 0
    %v3552 = vsel %vm58, %v3538, 0
    %3554 = vmatprep.subr.mxu0 0.0
    %3555 = vmatpush1.msra.mxu0 0.0
    %3556 = vmatprep.subr.mxu0 0.0
    %3557 = vmatpush1.msra.mxu0 0.0
    %3558 = vmatprep.subr.mxu0 0.0
    %3559 = vmatpush1.msra.mxu0 0.0
    %3560 = vmatprep.subr.mxu0 0.0
    %3561 = vmatpush1.msra.mxu0 0.0
    %3562 = vmatprep.subr.mxu0 0.0
    %3563 = vmatpush1.msra.mxu0 0.0
    %3564 = vmatprep.subr.mxu0 0.0
    %3565 = vmatpush1.msra.mxu0 0.0
    %3566 = vmatprep.subr.mxu0 0.0
    %3567 = vmatpush1.msra.mxu0 0.0
    %3568 = vmatprep.subr.mxu0 0.0
    %3569 = vmatpush1.msra.mxu0 0.0
    %3570 = vmatprep.subr.mxu0 0.0
    %3571 = vmatpush1.msra.mxu0 0.0
    %3572 = vmatprep.subr.mxu0 0.0
    %3573 = vmatpush1.msra.mxu0 0.0
    %3574 = vmatprep.subr.mxu0 0.0
    %3575 = vmatpush1.msra.mxu0 0.0
    %3576 = vmatprep.subr.mxu0 0.0
    %3577 = vmatpush1.msra.mxu0 0.0
    %3578 = vmatprep.subr.mxu0 0.0
    %3579 = vmatpush1.msra.mxu0 %v3542
    %3580 = vmatprep.subr.mxu0 0.0
    %3581 = vmatpush1.msra.mxu0 %v3541
    %3582 = vmatprep.subr.mxu0 0.0
    %3583 = vmatpush1.msra.mxu0 %v3540
    %3584 = vmatprep.subr.mxu0 0.0
    %3585 = vmatpush1.msra.mxu0 %v3539
    %3586 = vmatprep.subr.mxu0 0.0
    %3587 = vmatpush2.msra.mxu0 0.0
    %3588 = vmatprep.subr.mxu0 0.0
    %3589 = vmatpush2.msra.mxu0 0.0
    %3590 = vmatprep.subr.mxu0 0.0
    %3591 = vmatpush2.msra.mxu0 0.0
    %3592 = vmatprep.subr.mxu0 0.0
    %3593 = vmatpush2.msra.mxu0 0.0
    %3594 = vmatprep.subr.mxu0 0.0
    %3595 = vmatpush2.msra.mxu0 0.0
    %3596 = vmatprep.subr.mxu0 0.0
    %3597 = vmatpush2.msra.mxu0 0.0
    %3598 = vmatprep.subr.mxu0 0.0
    %3599 = vmatpush2.msra.mxu0 0.0
    %3600 = vmatprep.subr.mxu0 0.0
    %3601 = vmatpush2.msra.mxu0 0.0
    %3602 = vmatprep.subr.mxu0 0.0
    %3603 = vmatpush2.msra.mxu0 0.0
    %3604 = vmatprep.subr.mxu0 0.0
    %3605 = vmatpush2.msra.mxu0 0.0
    %3606 = vmatprep.subr.mxu0 0.0
    %3607 = vmatpush2.msra.mxu0 0.0
    %3608 = vmatprep.subr.mxu0 0.0
    %3609 = vmatpush2.msra.mxu0 0.0
    %3610 = vmatprep.subr.mxu0 0.0
    %3611 = vmatpush2.msra.mxu0 0.0
    %3612 = vmatprep.subr.mxu0 0.0
    %3613 = vmatpush2.msra.mxu0 0.0
    %3614 = vmatprep.subr.mxu0 0.0
    %3615 = vmatpush2.msra.mxu0 0.0
    %3616 = vmatprep.subr.mxu0 0.0
    %3617 = vmatpush2.msra.mxu0 0.0
    %3618 = vmatprep.mubr.f32.mxu0 0.0
    %3619 = vmatmul.mubr.f32.gmra.mxu0 %v3549
    %v3620 = vpop.f32.mrf.mxu0
    %v3621 = vadd.f32 %v3547, %v3620
    %v3622 = vpop.f32.mrf.mxu0
    %3623 = vmatprep.mubr.f32.mxu0 0.0
    %3624 = vmatmul.mubr.f32.gmra.mxu0 %v3552
    %v3625 = vpop.f32.mrf.mxu0
    %v3626 = vadd.f32 %v3547, %v3625
    %v3627 = vpop.f32.mrf.mxu0
    %3628 = vdwg.mxu0
    %v3629 = vld [vmem:[#allocation2 + $0x100] sm:$0xff]
    %v3630 = vld [vmem:[#allocation2 + $0x108] sm:$0xff]
    %v3631 = vld [vmem:[#allocation2 + $0x110] sm:$0xff]
    %v3632 = vld [vmem:[#allocation2 + $0x118] sm:$0xff]
    %v3633 = vld [vmem:[%s6 + $0x9] sm:$0x1]
    %3634 = vrot.lane.b32.xlu0 %v132, 64
    %v3635 = vpop.permute.xlu0 %3634
    %3636 = vrot.lane.b32.xlu0 %v137, 64
    %v3637 = vpop.permute.xlu0 %3636
    %v3639 = vsel %vm268, %v3621, 0
    %v3642 = vsel %vm268, %v3626, 0
    %v3644 = vsel %vm268, %v3635, 0
    %v3646 = vsel %vm268, %v3637, 0
    %3648 = vmatprep.subr.mxu0 0.0
    %3649 = vmatpush1.xpose.msra.mxu0 0.0
    %3650 = vmatprep.subr.mxu0 0.0
    %3651 = vmatpush1.xpose.msra.mxu0 0.0
    %3652 = vmatprep.subr.mxu0 0.0
    %3653 = vmatpush1.xpose.msra.mxu0 0.0
    %3654 = vmatprep.subr.mxu0 0.0
    %3655 = vmatpush1.xpose.msra.mxu0 0.0
    %3656 = vmatprep.subr.mxu0 0.0
    %3657 = vmatpush1.xpose.msra.mxu0 0.0
    %3658 = vmatprep.subr.mxu0 0.0
    %3659 = vmatpush1.xpose.msra.mxu0 0.0
    %3660 = vmatprep.subr.mxu0 0.0
    %3661 = vmatpush1.xpose.msra.mxu0 0.0
    %3662 = vmatprep.subr.mxu0 0.0
    %3663 = vmatpush1.xpose.msra.mxu0 0.0
    %3664 = vmatprep.subr.mxu0 0.0
    %3665 = vmatpush1.xpose.msra.mxu0 0.0
    %3666 = vmatprep.subr.mxu0 0.0
    %3667 = vmatpush1.xpose.msra.mxu0 0.0
    %3668 = vmatprep.subr.mxu0 0.0
    %3669 = vmatpush1.xpose.msra.mxu0 0.0
    %3670 = vmatprep.subr.mxu0 0.0
    %3671 = vmatpush1.xpose.msra.mxu0 0.0
    %3672 = vmatprep.subr.mxu0 0.0
    %3673 = vmatpush1.xpose.msra.mxu0 0.0
    %3674 = vmatprep.subr.mxu0 0.0
    %3675 = vmatpush1.xpose.msra.mxu0 0.0
    %3676 = vmatprep.subr.mxu0 0.0
    %3677 = vmatpush1.xpose.msra.mxu0 %v3646
    %3678 = vmatprep.subr.mxu0 0.0
    %3679 = vmatpush1.xpose.msra.mxu0 %v3644
    %3680 = vmatprep.subr.mxu0 0.0
    %3681 = vmatpush2.xpose.msra.mxu0 0.0
    %3682 = vmatprep.subr.mxu0 0.0
    %3683 = vmatpush2.xpose.msra.mxu0 0.0
    %3684 = vmatprep.subr.mxu0 0.0
    %3685 = vmatpush2.xpose.msra.mxu0 0.0
    %3686 = vmatprep.subr.mxu0 0.0
    %3687 = vmatpush2.xpose.msra.mxu0 0.0
    %3688 = vmatprep.subr.mxu0 0.0
    %3689 = vmatpush2.xpose.msra.mxu0 0.0
    %3690 = vmatprep.subr.mxu0 0.0
    %3691 = vmatpush2.xpose.msra.mxu0 0.0
    %3692 = vmatprep.subr.mxu0 0.0
    %3693 = vmatpush2.xpose.msra.mxu0 0.0
    %3694 = vmatprep.subr.mxu0 0.0
    %3695 = vmatpush2.xpose.msra.mxu0 0.0
    %3696 = vmatprep.subr.mxu0 0.0
    %3697 = vmatpush2.xpose.msra.mxu0 0.0
    %3698 = vmatprep.subr.mxu0 0.0
    %3699 = vmatpush2.xpose.msra.mxu0 0.0
    %3700 = vmatprep.subr.mxu0 0.0
    %3701 = vmatpush2.xpose.msra.mxu0 0.0
    %3702 = vmatprep.subr.mxu0 0.0
    %3703 = vmatpush2.xpose.msra.mxu0 0.0
    %3704 = vmatprep.subr.mxu0 0.0
    %3705 = vmatpush2.xpose.msra.mxu0 0.0
    %3706 = vmatprep.subr.mxu0 0.0
    %3707 = vmatpush2.xpose.msra.mxu0 0.0
    %3708 = vmatprep.subr.mxu0 0.0
    %3709 = vmatpush2.xpose.msra.mxu0 0.0
    %3710 = vmatprep.subr.mxu0 0.0
    %3711 = vmatpush2.xpose.msra.mxu0 0.0
    %3712 = vmatprep.mubr.f32.mxu0 0.0
    %3713 = vmatmul.mubr.f32.gmra.mxu0 %v3639
    %v3714 = vpop.f32.mrf.mxu0
    %v3715 = vadd.f32 0.0, %v3714
    %v3716 = vpop.f32.mrf.mxu0
    %3717 = vmatprep.mubr.f32.mxu0 0.0
    %3718 = vmatmul.mubr.f32.gmra.mxu0 %v3642
    %v3719 = vpop.f32.mrf.mxu0
    %v3720 = vadd.f32 0.0, %v3719
    %v3721 = vpop.f32.mrf.mxu0
    %3722 = vdwg.mxu0
    %v3723 = vmul.f32 %v3715, 0.35355338
    %v3724 = vmul.f32 %v3720, 0.35355338
    %v3725 = vadd.f32 %v3723, %v47
    %v3726 = vadd.f32 %v3724, %v48
    %v3727 = vsel %vm356, %v3725, -inf
    %3728 = vmax.xlane.f32.xlu0 %v3727
    %v3729 = vpop.xlane.xlu0 %3728
    %v3730 = vsel %vm356, %v3726, -inf
    %3731 = vmax.xlane.f32.xlu0 %v3730
    %v3732 = vpop.xlane.xlu0 %3731
    %v3733 = vsub.f32 %v3725, %v3729
    %v3734 = vsub.f32 %v3726, %v3732
    %v3735 = vmul.f32 %v3733, 1.442695
    %v3736 = vpow.pop %v3735
    %v3737 = vmul.f32 %v3734, 1.442695
    %v3738 = vpow.pop %v3737
    %v3739 = vsel %vm356, %v3736, 0.0
    %3740 = vadd.xlane.f32.xlu0 %v3739
    %v3741 = vpop.xlane.xlu0 %3740
    %v3742 = vsel %vm356, %v3738, 0.0
    %3743 = vadd.xlane.f32.xlu0 %v3742
    %v3744 = vpop.xlane.xlu0 %3743
    %v3745 = vrcp.pop %v3741
    %v3746 = vrcp.pop %v3744
    %v3747 = vmul.f32 %v3736, %v3745
    %v3748 = vmul.f32 %v3738, %v3746
    %3749 = vrot.lane.b32.xlu0 %v132, 32
    %v3750 = vpop.permute.xlu0 %3749
    %3751 = vrot.lane.b32.xlu0 %v137, 32
    %v3752 = vpop.permute.xlu0 %3751
    %v3756 = vsel %vm356, %v3747, 0
    %v3759 = vsel %vm356, %v3748, 0
    %3761 = vmatprep.subr.mxu0 0.0
    %3762 = vmatpush1.msra.mxu0 0.0
    %3763 = vmatprep.subr.mxu0 0.0
    %3764 = vmatpush1.msra.mxu0 0.0
    %3765 = vmatprep.subr.mxu0 0.0
    %3766 = vmatpush1.msra.mxu0 0.0
    %3767 = vmatprep.subr.mxu0 0.0
    %3768 = vmatpush1.msra.mxu0 0.0
    %3769 = vmatprep.subr.mxu0 0.0
    %3770 = vmatpush1.msra.mxu0 0.0
    %3771 = vmatprep.subr.mxu0 0.0
    %3772 = vmatpush1.msra.mxu0 0.0
    %3773 = vmatprep.subr.mxu0 0.0
    %3774 = vmatpush1.msra.mxu0 0.0
    %3775 = vmatprep.subr.mxu0 0.0
    %3776 = vmatpush1.msra.mxu0 0.0
    %3777 = vmatprep.subr.mxu0 0.0
    %3778 = vmatpush1.msra.mxu0 0.0
    %3779 = vmatprep.subr.mxu0 0.0
    %3780 = vmatpush1.msra.mxu0 0.0
    %3781 = vmatprep.subr.mxu0 0.0
    %3782 = vmatpush1.msra.mxu0 0.0
    %3783 = vmatprep.subr.mxu0 0.0
    %3784 = vmatpush1.msra.mxu0 0.0
    %3785 = vmatprep.subr.mxu0 0.0
    %3786 = vmatpush1.msra.mxu0 0.0
    %3787 = vmatprep.subr.mxu0 0.0
    %3788 = vmatpush1.msra.mxu0 0.0
    %3789 = vmatprep.subr.mxu0 0.0
    %3790 = vmatpush1.msra.mxu0 %v3752
    %3791 = vmatprep.subr.mxu0 0.0
    %3792 = vmatpush1.msra.mxu0 %v3750
    %3793 = vmatprep.subr.mxu0 0.0
    %3794 = vmatpush2.msra.mxu0 0.0
    %3795 = vmatprep.subr.mxu0 0.0
    %3796 = vmatpush2.msra.mxu0 0.0
    %3797 = vmatprep.subr.mxu0 0.0
    %3798 = vmatpush2.msra.mxu0 0.0
    %3799 = vmatprep.subr.mxu0 0.0
    %3800 = vmatpush2.msra.mxu0 0.0
    %3801 = vmatprep.subr.mxu0 0.0
    %3802 = vmatpush2.msra.mxu0 0.0
    %3803 = vmatprep.subr.mxu0 0.0
    %3804 = vmatpush2.msra.mxu0 0.0
    %3805 = vmatprep.subr.mxu0 0.0
    %3806 = vmatpush2.msra.mxu0 0.0
    %3807 = vmatprep.subr.mxu0 0.0
    %3808 = vmatpush2.msra.mxu0 0.0
    %3809 = vmatprep.subr.mxu0 0.0
    %3810 = vmatpush2.msra.mxu0 0.0
    %3811 = vmatprep.subr.mxu0 0.0
    %3812 = vmatpush2.msra.mxu0 0.0
    %3813 = vmatprep.subr.mxu0 0.0
    %3814 = vmatpush2.msra.mxu0 0.0
    %3815 = vmatprep.subr.mxu0 0.0
    %3816 = vmatpush2.msra.mxu0 0.0
    %3817 = vmatprep.subr.mxu0 0.0
    %3818 = vmatpush2.msra.mxu0 0.0
    %3819 = vmatprep.subr.mxu0 0.0
    %3820 = vmatpush2.msra.mxu0 0.0
    %3821 = vmatprep.subr.mxu0 0.0
    %3822 = vmatpush2.msra.mxu0 0.0
    %3823 = vmatprep.subr.mxu0 0.0
    %3824 = vmatpush2.msra.mxu0 0.0
    %3825 = vmatprep.mubr.f32.mxu0 0.0
    %3826 = vmatmul.mubr.f32.gmra.mxu0 %v3756
    %v3827 = vpop.f32.mrf.mxu0
    %v3828 = vadd.f32 0.0, %v3827
    %v3829 = vpop.f32.mrf.mxu0
    %3830 = vmatprep.mubr.f32.mxu0 0.0
    %3831 = vmatmul.mubr.f32.gmra.mxu0 %v3759
    %v3832 = vpop.f32.mrf.mxu0
    %v3833 = vadd.f32 0.0, %v3832
    %v3834 = vpop.f32.mrf.mxu0
    %3835 = vdwg.mxu0
    %3836 = vrot.lane.b32.xlu0 %v3621, 120
    %v3837 = vpop.permute.xlu0 %3836
    %3838 = vrot.lane.b32.xlu0 %v3626, 120
    %v3839 = vpop.permute.xlu0 %3838
    %3840 = vrot.lane.b32.xlu0 %v132, 56
    %v3841 = vpop.permute.xlu0 %3840
    %3842 = vrot.lane.b32.xlu0 %v137, 56
    %v3843 = vpop.permute.xlu0 %3842
    %v3844 = vsel %vm268, %v3837, 0
    %v3846 = vsel %vm268, %v3839, 0
    %v3848 = vsel %vm268, %v3841, 0
    %v3850 = vsel %vm268, %v3843, 0
    %3852 = vmatprep.subr.mxu0 0.0
    %3853 = vmatpush1.xpose.msra.mxu0 0.0
    %3854 = vmatprep.subr.mxu0 0.0
    %3855 = vmatpush1.xpose.msra.mxu0 0.0
    %3856 = vmatprep.subr.mxu0 0.0
    %3857 = vmatpush1.xpose.msra.mxu0 0.0
    %3858 = vmatprep.subr.mxu0 0.0
    %3859 = vmatpush1.xpose.msra.mxu0 0.0
    %3860 = vmatprep.subr.mxu0 0.0
    %3861 = vmatpush1.xpose.msra.mxu0 0.0
    %3862 = vmatprep.subr.mxu0 0.0
    %3863 = vmatpush1.xpose.msra.mxu0 0.0
    %3864 = vmatprep.subr.mxu0 0.0
    %3865 = vmatpush1.xpose.msra.mxu0 0.0
    %3866 = vmatprep.subr.mxu0 0.0
    %3867 = vmatpush1.xpose.msra.mxu0 0.0
    %3868 = vmatprep.subr.mxu0 0.0
    %3869 = vmatpush1.xpose.msra.mxu0 0.0
    %3870 = vmatprep.subr.mxu0 0.0
    %3871 = vmatpush1.xpose.msra.mxu0 0.0
    %3872 = vmatprep.subr.mxu0 0.0
    %3873 = vmatpush1.xpose.msra.mxu0 0.0
    %3874 = vmatprep.subr.mxu0 0.0
    %3875 = vmatpush1.xpose.msra.mxu0 0.0
    %3876 = vmatprep.subr.mxu0 0.0
    %3877 = vmatpush1.xpose.msra.mxu0 0.0
    %3878 = vmatprep.subr.mxu0 0.0
    %3879 = vmatpush1.xpose.msra.mxu0 0.0
    %3880 = vmatprep.subr.mxu0 0.0
    %3881 = vmatpush1.xpose.msra.mxu0 %v3850
    %3882 = vmatprep.subr.mxu0 0.0
    %3883 = vmatpush1.xpose.msra.mxu0 %v3848
    %3884 = vmatprep.subr.mxu0 0.0
    %3885 = vmatpush2.xpose.msra.mxu0 0.0
    %3886 = vmatprep.subr.mxu0 0.0
    %3887 = vmatpush2.xpose.msra.mxu0 0.0
    %3888 = vmatprep.subr.mxu0 0.0
    %3889 = vmatpush2.xpose.msra.mxu0 0.0
    %3890 = vmatprep.subr.mxu0 0.0
    %3891 = vmatpush2.xpose.msra.mxu0 0.0
    %3892 = vmatprep.subr.mxu0 0.0
    %3893 = vmatpush2.xpose.msra.mxu0 0.0
    %3894 = vmatprep.subr.mxu0 0.0
    %3895 = vmatpush2.xpose.msra.mxu0 0.0
    %3896 = vmatprep.subr.mxu0 0.0
    %3897 = vmatpush2.xpose.msra.mxu0 0.0
    %3898 = vmatprep.subr.mxu0 0.0
    %3899 = vmatpush2.xpose.msra.mxu0 0.0
    %3900 = vmatprep.subr.mxu0 0.0
    %3901 = vmatpush2.xpose.msra.mxu0 0.0
    %3902 = vmatprep.subr.mxu0 0.0
    %3903 = vmatpush2.xpose.msra.mxu0 0.0
    %3904 = vmatprep.subr.mxu0 0.0
    %3905 = vmatpush2.xpose.msra.mxu0 0.0
    %3906 = vmatprep.subr.mxu0 0.0
    %3907 = vmatpush2.xpose.msra.mxu0 0.0
    %3908 = vmatprep.subr.mxu0 0.0
    %3909 = vmatpush2.xpose.msra.mxu0 0.0
    %3910 = vmatprep.subr.mxu0 0.0
    %3911 = vmatpush2.xpose.msra.mxu0 0.0
    %3912 = vmatprep.subr.mxu0 0.0
    %3913 = vmatpush2.xpose.msra.mxu0 0.0
    %3914 = vmatprep.subr.mxu0 0.0
    %3915 = vmatpush2.xpose.msra.mxu0 0.0
    %3916 = vmatprep.mubr.f32.mxu0 0.0
    %3917 = vmatmul.mubr.f32.gmra.mxu0 %v3844
    %v3918 = vpop.f32.mrf.mxu0
    %v3919 = vadd.f32 0.0, %v3918
    %v3920 = vpop.f32.mrf.mxu0
    %3921 = vmatprep.mubr.f32.mxu0 0.0
    %3922 = vmatmul.mubr.f32.gmra.mxu0 %v3846
    %v3923 = vpop.f32.mrf.mxu0
    %v3924 = vadd.f32 0.0, %v3923
    %v3925 = vpop.f32.mrf.mxu0
    %3926 = vdwg.mxu0
    %v3927 = vmul.f32 %v3919, 0.35355338
    %v3928 = vmul.f32 %v3924, 0.35355338
    %v3929 = vadd.f32 %v3927, %v47
    %v3930 = vadd.f32 %v3928, %v48
    %v3931 = vsel %vm356, %v3929, -inf
    %3932 = vmax.xlane.f32.xlu0 %v3931
    %v3933 = vpop.xlane.xlu0 %3932
    %v3934 = vsel %vm356, %v3930, -inf
    %3935 = vmax.xlane.f32.xlu0 %v3934
    %v3936 = vpop.xlane.xlu0 %3935
    %v3937 = vsub.f32 %v3929, %v3933
    %v3938 = vsub.f32 %v3930, %v3936
    %v3939 = vmul.f32 %v3937, 1.442695
    %v3940 = vpow.pop %v3939
    %v3941 = vmul.f32 %v3938, 1.442695
    %v3942 = vpow.pop %v3941
    %v3943 = vsel %vm356, %v3940, 0.0
    %3944 = vadd.xlane.f32.xlu0 %v3943
    %v3945 = vpop.xlane.xlu0 %3944
    %v3946 = vsel %vm356, %v3942, 0.0
    %3947 = vadd.xlane.f32.xlu0 %v3946
    %v3948 = vpop.xlane.xlu0 %3947
    %v3949 = vrcp.pop %v3945
    %v3950 = vrcp.pop %v3948
    %v3951 = vmul.f32 %v3940, %v3949
    %v3952 = vmul.f32 %v3942, %v3950
    %3953 = vrot.lane.b32.xlu0 %v132, 24
    %v3954 = vpop.permute.xlu0 %3953
    %3955 = vrot.lane.b32.xlu0 %v137, 24
    %v3956 = vpop.permute.xlu0 %3955
    %v3960 = vsel %vm356, %v3951, 0
    %v3963 = vsel %vm356, %v3952, 0
    %3965 = vmatprep.subr.mxu0 0.0
    %3966 = vmatpush1.msra.mxu0 0.0
    %3967 = vmatprep.subr.mxu0 0.0
    %3968 = vmatpush1.msra.mxu0 0.0
    %3969 = vmatprep.subr.mxu0 0.0
    %3970 = vmatpush1.msra.mxu0 0.0
    %3971 = vmatprep.subr.mxu0 0.0
    %3972 = vmatpush1.msra.mxu0 0.0
    %3973 = vmatprep.subr.mxu0 0.0
    %3974 = vmatpush1.msra.mxu0 0.0
    %3975 = vmatprep.subr.mxu0 0.0
    %3976 = vmatpush1.msra.mxu0 0.0
    %3977 = vmatprep.subr.mxu0 0.0
    %3978 = vmatpush1.msra.mxu0 0.0
    %3979 = vmatprep.subr.mxu0 0.0
    %3980 = vmatpush1.msra.mxu0 0.0
    %3981 = vmatprep.subr.mxu0 0.0
    %3982 = vmatpush1.msra.mxu0 0.0
    %3983 = vmatprep.subr.mxu0 0.0
    %3984 = vmatpush1.msra.mxu0 0.0
    %3985 = vmatprep.subr.mxu0 0.0
    %3986 = vmatpush1.msra.mxu0 0.0
    %3987 = vmatprep.subr.mxu0 0.0
    %3988 = vmatpush1.msra.mxu0 0.0
    %3989 = vmatprep.subr.mxu0 0.0
    %3990 = vmatpush1.msra.mxu0 0.0
    %3991 = vmatprep.subr.mxu0 0.0
    %3992 = vmatpush1.msra.mxu0 0.0
    %3993 = vmatprep.subr.mxu0 0.0
    %3994 = vmatpush1.msra.mxu0 %v3956
    %3995 = vmatprep.subr.mxu0 0.0
    %3996 = vmatpush1.msra.mxu0 %v3954
    %3997 = vmatprep.subr.mxu0 0.0
    %3998 = vmatpush2.msra.mxu0 0.0
    %3999 = vmatprep.subr.mxu0 0.0
    %4000 = vmatpush2.msra.mxu0 0.0
    %4001 = vmatprep.subr.mxu0 0.0
    %4002 = vmatpush2.msra.mxu0 0.0
    %4003 = vmatprep.subr.mxu0 0.0
    %4004 = vmatpush2.msra.mxu0 0.0
    %4005 = vmatprep.subr.mxu0 0.0
    %4006 = vmatpush2.msra.mxu0 0.0
    %4007 = vmatprep.subr.mxu0 0.0
    %4008 = vmatpush2.msra.mxu0 0.0
    %4009 = vmatprep.subr.mxu0 0.0
    %4010 = vmatpush2.msra.mxu0 0.0
    %4011 = vmatprep.subr.mxu0 0.0
    %4012 = vmatpush2.msra.mxu0 0.0
    %4013 = vmatprep.subr.mxu0 0.0
    %4014 = vmatpush2.msra.mxu0 0.0
    %4015 = vmatprep.subr.mxu0 0.0
    %4016 = vmatpush2.msra.mxu0 0.0
    %4017 = vmatprep.subr.mxu0 0.0
    %4018 = vmatpush2.msra.mxu0 0.0
    %4019 = vmatprep.subr.mxu0 0.0
    %4020 = vmatpush2.msra.mxu0 0.0
    %4021 = vmatprep.subr.mxu0 0.0
    %4022 = vmatpush2.msra.mxu0 0.0
    %4023 = vmatprep.subr.mxu0 0.0
    %4024 = vmatpush2.msra.mxu0 0.0
    %4025 = vmatprep.subr.mxu0 0.0
    %4026 = vmatpush2.msra.mxu0 0.0
    %4027 = vmatprep.subr.mxu0 0.0
    %4028 = vmatpush2.msra.mxu0 0.0
    %4029 = vmatprep.mubr.f32.mxu0 0.0
    %4030 = vmatmul.mubr.f32.gmra.mxu0 %v3960
    %v4031 = vpop.f32.mrf.mxu0
    %v4032 = vadd.f32 0.0, %v4031
    %v4033 = vpop.f32.mrf.mxu0
    %4034 = vmatprep.mubr.f32.mxu0 0.0
    %4035 = vmatmul.mubr.f32.gmra.mxu0 %v3963
    %v4036 = vpop.f32.mrf.mxu0
    %v4037 = vadd.f32 0.0, %v4036
    %v4038 = vpop.f32.mrf.mxu0
    %4039 = vdwg.mxu0
    %4040 = vrot.lane.b32.xlu0 %v3621, 112
    %v4041 = vpop.permute.xlu0 %4040
    %4042 = vrot.lane.b32.xlu0 %v3626, 112
    %v4043 = vpop.permute.xlu0 %4042
    %4044 = vrot.lane.b32.xlu0 %v132, 48
    %v4045 = vpop.permute.xlu0 %4044
    %4046 = vrot.lane.b32.xlu0 %v137, 48
    %v4047 = vpop.permute.xlu0 %4046
    %v4048 = vsel %vm268, %v4041, 0
    %v4050 = vsel %vm268, %v4043, 0
    %v4052 = vsel %vm268, %v4045, 0
    %v4054 = vsel %vm268, %v4047, 0
    %4056 = vmatprep.subr.mxu0 0.0
    %4057 = vmatpush1.xpose.msra.mxu0 0.0
    %4058 = vmatprep.subr.mxu0 0.0
    %4059 = vmatpush1.xpose.msra.mxu0 0.0
    %4060 = vmatprep.subr.mxu0 0.0
    %4061 = vmatpush1.xpose.msra.mxu0 0.0
    %4062 = vmatprep.subr.mxu0 0.0
    %4063 = vmatpush1.xpose.msra.mxu0 0.0
    %4064 = vmatprep.subr.mxu0 0.0
    %4065 = vmatpush1.xpose.msra.mxu0 0.0
    %4066 = vmatprep.subr.mxu0 0.0
    %4067 = vmatpush1.xpose.msra.mxu0 0.0
    %4068 = vmatprep.subr.mxu0 0.0
    %4069 = vmatpush1.xpose.msra.mxu0 0.0
    %4070 = vmatprep.subr.mxu0 0.0
    %4071 = vmatpush1.xpose.msra.mxu0 0.0
    %4072 = vmatprep.subr.mxu0 0.0
    %4073 = vmatpush1.xpose.msra.mxu0 0.0
    %4074 = vmatprep.subr.mxu0 0.0
    %4075 = vmatpush1.xpose.msra.mxu0 0.0
    %4076 = vmatprep.subr.mxu0 0.0
    %4077 = vmatpush1.xpose.msra.mxu0 0.0
    %4078 = vmatprep.subr.mxu0 0.0
    %4079 = vmatpush1.xpose.msra.mxu0 0.0
    %4080 = vmatprep.subr.mxu0 0.0
    %4081 = vmatpush1.xpose.msra.mxu0 0.0
    %4082 = vmatprep.subr.mxu0 0.0
    %4083 = vmatpush1.xpose.msra.mxu0 0.0
    %4084 = vmatprep.subr.mxu0 0.0
    %4085 = vmatpush1.xpose.msra.mxu0 %v4054
    %4086 = vmatprep.subr.mxu0 0.0
    %4087 = vmatpush1.xpose.msra.mxu0 %v4052
    %4088 = vmatprep.subr.mxu0 0.0
    %4089 = vmatpush2.xpose.msra.mxu0 0.0
    %4090 = vmatprep.subr.mxu0 0.0
    %4091 = vmatpush2.xpose.msra.mxu0 0.0
    %4092 = vmatprep.subr.mxu0 0.0
    %4093 = vmatpush2.xpose.msra.mxu0 0.0
    %4094 = vmatprep.subr.mxu0 0.0
    %4095 = vmatpush2.xpose.msra.mxu0 0.0
    %4096 = vmatprep.subr.mxu0 0.0
    %4097 = vmatpush2.xpose.msra.mxu0 0.0
    %4098 = vmatprep.subr.mxu0 0.0
    %4099 = vmatpush2.xpose.msra.mxu0 0.0
    %4100 = vmatprep.subr.mxu0 0.0
    %4101 = vmatpush2.xpose.msra.mxu0 0.0
    %4102 = vmatprep.subr.mxu0 0.0
    %4103 = vmatpush2.xpose.msra.mxu0 0.0
    %4104 = vmatprep.subr.mxu0 0.0
    %4105 = vmatpush2.xpose.msra.mxu0 0.0
    %4106 = vmatprep.subr.mxu0 0.0
    %4107 = vmatpush2.xpose.msra.mxu0 0.0
    %4108 = vmatprep.subr.mxu0 0.0
    %4109 = vmatpush2.xpose.msra.mxu0 0.0
    %4110 = vmatprep.subr.mxu0 0.0
    %4111 = vmatpush2.xpose.msra.mxu0 0.0
    %4112 = vmatprep.subr.mxu0 0.0
    %4113 = vmatpush2.xpose.msra.mxu0 0.0
    %4114 = vmatprep.subr.mxu0 0.0
    %4115 = vmatpush2.xpose.msra.mxu0 0.0
    %4116 = vmatprep.subr.mxu0 0.0
    %4117 = vmatpush2.xpose.msra.mxu0 0.0
    %4118 = vmatprep.subr.mxu0 0.0
    %4119 = vmatpush2.xpose.msra.mxu0 0.0
    %4120 = vmatprep.mubr.f32.mxu0 0.0
    %4121 = vmatmul.mubr.f32.gmra.mxu0 %v4048
    %v4122 = vpop.f32.mrf.mxu0
    %v4123 = vadd.f32 0.0, %v4122
    %v4124 = vpop.f32.mrf.mxu0
    %4125 = vmatprep.mubr.f32.mxu0 0.0
    %4126 = vmatmul.mubr.f32.gmra.mxu0 %v4050
    %v4127 = vpop.f32.mrf.mxu0
    %v4128 = vadd.f32 0.0, %v4127
    %v4129 = vpop.f32.mrf.mxu0
    %4130 = vdwg.mxu0
    %v4131 = vmul.f32 %v4123, 0.35355338
    %v4132 = vmul.f32 %v4128, 0.35355338
    %v4133 = vadd.f32 %v4131, %v47
    %v4134 = vadd.f32 %v4132, %v48
    %v4135 = vsel %vm356, %v4133, -inf
    %4136 = vmax.xlane.f32.xlu0 %v4135
    %v4137 = vpop.xlane.xlu0 %4136
    %v4138 = vsel %vm356, %v4134, -inf
    %4139 = vmax.xlane.f32.xlu0 %v4138
    %v4140 = vpop.xlane.xlu0 %4139
    %v4141 = vsub.f32 %v4133, %v4137
    %v4142 = vsub.f32 %v4134, %v4140
    %v4143 = vmul.f32 %v4141, 1.442695
    %v4144 = vpow.pop %v4143
    %v4145 = vmul.f32 %v4142, 1.442695
    %v4146 = vpow.pop %v4145
    %v4147 = vsel %vm356, %v4144, 0.0
    %4148 = vadd.xlane.f32.xlu0 %v4147
    %v4149 = vpop.xlane.xlu0 %4148
    %v4150 = vsel %vm356, %v4146, 0.0
    %4151 = vadd.xlane.f32.xlu0 %v4150
    %v4152 = vpop.xlane.xlu0 %4151
    %v4153 = vrcp.pop %v4149
    %v4154 = vrcp.pop %v4152
    %v4155 = vmul.f32 %v4144, %v4153
    %v4156 = vmul.f32 %v4146, %v4154
    %4157 = vrot.lane.b32.xlu0 %v132, 16
    %v4158 = vpop.permute.xlu0 %4157
    %4159 = vrot.lane.b32.xlu0 %v137, 16
    %v4160 = vpop.permute.xlu0 %4159
    %v4164 = vsel %vm356, %v4155, 0
    %v4167 = vsel %vm356, %v4156, 0
    %4169 = vmatprep.subr.mxu0 0.0
    %4170 = vmatpush1.msra.mxu0 0.0
    %4171 = vmatprep.subr.mxu0 0.0
    %4172 = vmatpush1.msra.mxu0 0.0
    %4173 = vmatprep.subr.mxu0 0.0
    %4174 = vmatpush1.msra.mxu0 0.0
    %4175 = vmatprep.subr.mxu0 0.0
    %4176 = vmatpush1.msra.mxu0 0.0
    %4177 = vmatprep.subr.mxu0 0.0
    %4178 = vmatpush1.msra.mxu0 0.0
    %4179 = vmatprep.subr.mxu0 0.0
    %4180 = vmatpush1.msra.mxu0 0.0
    %4181 = vmatprep.subr.mxu0 0.0
    %4182 = vmatpush1.msra.mxu0 0.0
    %4183 = vmatprep.subr.mxu0 0.0
    %4184 = vmatpush1.msra.mxu0 0.0
    %4185 = vmatprep.subr.mxu0 0.0
    %4186 = vmatpush1.msra.mxu0 0.0
    %4187 = vmatprep.subr.mxu0 0.0
    %4188 = vmatpush1.msra.mxu0 0.0
    %4189 = vmatprep.subr.mxu0 0.0
    %4190 = vmatpush1.msra.mxu0 0.0
    %4191 = vmatprep.subr.mxu0 0.0
    %4192 = vmatpush1.msra.mxu0 0.0
    %4193 = vmatprep.subr.mxu0 0.0
    %4194 = vmatpush1.msra.mxu0 0.0
    %4195 = vmatprep.subr.mxu0 0.0
    %4196 = vmatpush1.msra.mxu0 0.0
    %4197 = vmatprep.subr.mxu0 0.0
    %4198 = vmatpush1.msra.mxu0 %v4160
    %4199 = vmatprep.subr.mxu0 0.0
    %4200 = vmatpush1.msra.mxu0 %v4158
    %4201 = vmatprep.subr.mxu0 0.0
    %4202 = vmatpush2.msra.mxu0 0.0
    %4203 = vmatprep.subr.mxu0 0.0
    %4204 = vmatpush2.msra.mxu0 0.0
    %4205 = vmatprep.subr.mxu0 0.0
    %4206 = vmatpush2.msra.mxu0 0.0
    %4207 = vmatprep.subr.mxu0 0.0
    %4208 = vmatpush2.msra.mxu0 0.0
    %4209 = vmatprep.subr.mxu0 0.0
    %4210 = vmatpush2.msra.mxu0 0.0
    %4211 = vmatprep.subr.mxu0 0.0
    %4212 = vmatpush2.msra.mxu0 0.0
    %4213 = vmatprep.subr.mxu0 0.0
    %4214 = vmatpush2.msra.mxu0 0.0
    %4215 = vmatprep.subr.mxu0 0.0
    %4216 = vmatpush2.msra.mxu0 0.0
    %4217 = vmatprep.subr.mxu0 0.0
    %4218 = vmatpush2.msra.mxu0 0.0
    %4219 = vmatprep.subr.mxu0 0.0
    %4220 = vmatpush2.msra.mxu0 0.0
    %4221 = vmatprep.subr.mxu0 0.0
    %4222 = vmatpush2.msra.mxu0 0.0
    %4223 = vmatprep.subr.mxu0 0.0
    %4224 = vmatpush2.msra.mxu0 0.0
    %4225 = vmatprep.subr.mxu0 0.0
    %4226 = vmatpush2.msra.mxu0 0.0
    %4227 = vmatprep.subr.mxu0 0.0
    %4228 = vmatpush2.msra.mxu0 0.0
    %4229 = vmatprep.subr.mxu0 0.0
    %4230 = vmatpush2.msra.mxu0 0.0
    %4231 = vmatprep.subr.mxu0 0.0
    %4232 = vmatpush2.msra.mxu0 0.0
    %4233 = vmatprep.mubr.f32.mxu0 0.0
    %4234 = vmatmul.mubr.f32.gmra.mxu0 %v4164
    %v4235 = vpop.f32.mrf.mxu0
    %v4236 = vadd.f32 0.0, %v4235
    %v4237 = vpop.f32.mrf.mxu0
    %4238 = vmatprep.mubr.f32.mxu0 0.0
    %4239 = vmatmul.mubr.f32.gmra.mxu0 %v4167
    %v4240 = vpop.f32.mrf.mxu0
    %v4241 = vadd.f32 0.0, %v4240
    %v4242 = vpop.f32.mrf.mxu0
    %4243 = vdwg.mxu0
    %4244 = vrot.lane.b32.xlu0 %v3621, 104
    %v4245 = vpop.permute.xlu0 %4244
    %4246 = vrot.lane.b32.xlu0 %v3626, 104
    %v4247 = vpop.permute.xlu0 %4246
    %4248 = vrot.lane.b32.xlu0 %v132, 40
    %v4249 = vpop.permute.xlu0 %4248
    %4250 = vrot.lane.b32.xlu0 %v137, 40
    %v4251 = vpop.permute.xlu0 %4250
    %v4252 = vsel %vm268, %v4245, 0
    %v4254 = vsel %vm268, %v4247, 0
    %v4256 = vsel %vm268, %v4249, 0
    %v4258 = vsel %vm268, %v4251, 0
    %4260 = vmatprep.subr.mxu0 0.0
    %4261 = vmatpush1.xpose.msra.mxu0 0.0
    %4262 = vmatprep.subr.mxu0 0.0
    %4263 = vmatpush1.xpose.msra.mxu0 0.0
    %4264 = vmatprep.subr.mxu0 0.0
    %4265 = vmatpush1.xpose.msra.mxu0 0.0
    %4266 = vmatprep.subr.mxu0 0.0
    %4267 = vmatpush1.xpose.msra.mxu0 0.0
    %4268 = vmatprep.subr.mxu0 0.0
    %4269 = vmatpush1.xpose.msra.mxu0 0.0
    %4270 = vmatprep.subr.mxu0 0.0
    %4271 = vmatpush1.xpose.msra.mxu0 0.0
    %4272 = vmatprep.subr.mxu0 0.0
    %4273 = vmatpush1.xpose.msra.mxu0 0.0
    %4274 = vmatprep.subr.mxu0 0.0
    %4275 = vmatpush1.xpose.msra.mxu0 0.0
    %4276 = vmatprep.subr.mxu0 0.0
    %4277 = vmatpush1.xpose.msra.mxu0 0.0
    %4278 = vmatprep.subr.mxu0 0.0
    %4279 = vmatpush1.xpose.msra.mxu0 0.0
    %4280 = vmatprep.subr.mxu0 0.0
    %4281 = vmatpush1.xpose.msra.mxu0 0.0
    %4282 = vmatprep.subr.mxu0 0.0
    %4283 = vmatpush1.xpose.msra.mxu0 0.0
    %4284 = vmatprep.subr.mxu0 0.0
    %4285 = vmatpush1.xpose.msra.mxu0 0.0
    %4286 = vmatprep.subr.mxu0 0.0
    %4287 = vmatpush1.xpose.msra.mxu0 0.0
    %4288 = vmatprep.subr.mxu0 0.0
    %4289 = vmatpush1.xpose.msra.mxu0 %v4258
    %4290 = vmatprep.subr.mxu0 0.0
    %4291 = vmatpush1.xpose.msra.mxu0 %v4256
    %4292 = vmatprep.subr.mxu0 0.0
    %4293 = vmatpush2.xpose.msra.mxu0 0.0
    %4294 = vmatprep.subr.mxu0 0.0
    %4295 = vmatpush2.xpose.msra.mxu0 0.0
    %4296 = vmatprep.subr.mxu0 0.0
    %4297 = vmatpush2.xpose.msra.mxu0 0.0
    %4298 = vmatprep.subr.mxu0 0.0
    %4299 = vmatpush2.xpose.msra.mxu0 0.0
    %4300 = vmatprep.subr.mxu0 0.0
    %4301 = vmatpush2.xpose.msra.mxu0 0.0
    %4302 = vmatprep.subr.mxu0 0.0
    %4303 = vmatpush2.xpose.msra.mxu0 0.0
    %4304 = vmatprep.subr.mxu0 0.0
    %4305 = vmatpush2.xpose.msra.mxu0 0.0
    %4306 = vmatprep.subr.mxu0 0.0
    %4307 = vmatpush2.xpose.msra.mxu0 0.0
    %4308 = vmatprep.subr.mxu0 0.0
    %4309 = vmatpush2.xpose.msra.mxu0 0.0
    %4310 = vmatprep.subr.mxu0 0.0
    %4311 = vmatpush2.xpose.msra.mxu0 0.0
    %4312 = vmatprep.subr.mxu0 0.0
    %4313 = vmatpush2.xpose.msra.mxu0 0.0
    %4314 = vmatprep.subr.mxu0 0.0
    %4315 = vmatpush2.xpose.msra.mxu0 0.0
    %4316 = vmatprep.subr.mxu0 0.0
    %4317 = vmatpush2.xpose.msra.mxu0 0.0
    %4318 = vmatprep.subr.mxu0 0.0
    %4319 = vmatpush2.xpose.msra.mxu0 0.0
    %4320 = vmatprep.subr.mxu0 0.0
    %4321 = vmatpush2.xpose.msra.mxu0 0.0
    %4322 = vmatprep.subr.mxu0 0.0
    %4323 = vmatpush2.xpose.msra.mxu0 0.0
    %4324 = vmatprep.mubr.f32.mxu0 0.0
    %4325 = vmatmul.mubr.f32.gmra.mxu0 %v4252
    %v4326 = vpop.f32.mrf.mxu0
    %v4327 = vadd.f32 0.0, %v4326
    %v4328 = vpop.f32.mrf.mxu0
    %4329 = vmatprep.mubr.f32.mxu0 0.0
    %4330 = vmatmul.mubr.f32.gmra.mxu0 %v4254
    %v4331 = vpop.f32.mrf.mxu0
    %v4332 = vadd.f32 0.0, %v4331
    %v4333 = vpop.f32.mrf.mxu0
    %4334 = vdwg.mxu0
    %v4335 = vmul.f32 %v4327, 0.35355338
    %v4336 = vmul.f32 %v4332, 0.35355338
    %v4337 = vadd.f32 %v4335, %v47
    %v4338 = vadd.f32 %v4336, %v48
    %v4339 = vsel %vm356, %v4337, -inf
    %4340 = vmax.xlane.f32.xlu0 %v4339
    %v4341 = vpop.xlane.xlu0 %4340
    %v4342 = vsel %vm356, %v4338, -inf
    %4343 = vmax.xlane.f32.xlu0 %v4342
    %v4344 = vpop.xlane.xlu0 %4343
    %v4345 = vsub.f32 %v4337, %v4341
    %v4346 = vsub.f32 %v4338, %v4344
    %v4347 = vmul.f32 %v4345, 1.442695
    %v4348 = vpow.pop %v4347
    %v4349 = vmul.f32 %v4346, 1.442695
    %v4350 = vpow.pop %v4349
    %v4351 = vsel %vm356, %v4348, 0.0
    %4352 = vadd.xlane.f32.xlu0 %v4351
    %v4353 = vpop.xlane.xlu0 %4352
    %v4354 = vsel %vm356, %v4350, 0.0
    %4355 = vadd.xlane.f32.xlu0 %v4354
    %v4356 = vpop.xlane.xlu0 %4355
    %v4357 = vrcp.pop %v4353
    %v4358 = vrcp.pop %v4356
    %v4359 = vmul.f32 %v4348, %v4357
    %v4360 = vmul.f32 %v4350, %v4358
    %4361 = vrot.lane.b32.xlu0 %v132, 8
    %v4362 = vpop.permute.xlu0 %4361
    %4363 = vrot.lane.b32.xlu0 %v137, 8
    %v4364 = vpop.permute.xlu0 %4363
    %v4368 = vsel %vm356, %v4359, 0
    %v4371 = vsel %vm356, %v4360, 0
    %4373 = vmatprep.subr.mxu0 0.0
    %4374 = vmatpush1.msra.mxu0 0.0
    %4375 = vmatprep.subr.mxu0 0.0
    %4376 = vmatpush1.msra.mxu0 0.0
    %4377 = vmatprep.subr.mxu0 0.0
    %4378 = vmatpush1.msra.mxu0 0.0
    %4379 = vmatprep.subr.mxu0 0.0
    %4380 = vmatpush1.msra.mxu0 0.0
    %4381 = vmatprep.subr.mxu0 0.0
    %4382 = vmatpush1.msra.mxu0 0.0
    %4383 = vmatprep.subr.mxu0 0.0
    %4384 = vmatpush1.msra.mxu0 0.0
    %4385 = vmatprep.subr.mxu0 0.0
    %4386 = vmatpush1.msra.mxu0 0.0
    %4387 = vmatprep.subr.mxu0 0.0
    %4388 = vmatpush1.msra.mxu0 0.0
    %4389 = vmatprep.subr.mxu0 0.0
    %4390 = vmatpush1.msra.mxu0 0.0
    %4391 = vmatprep.subr.mxu0 0.0
    %4392 = vmatpush1.msra.mxu0 0.0
    %4393 = vmatprep.subr.mxu0 0.0
    %4394 = vmatpush1.msra.mxu0 0.0
    %4395 = vmatprep.subr.mxu0 0.0
    %4396 = vmatpush1.msra.mxu0 0.0
    %4397 = vmatprep.subr.mxu0 0.0
    %4398 = vmatpush1.msra.mxu0 0.0
    %4399 = vmatprep.subr.mxu0 0.0
    %4400 = vmatpush1.msra.mxu0 0.0
    %4401 = vmatprep.subr.mxu0 0.0
    %4402 = vmatpush1.msra.mxu0 %v4364
    %4403 = vmatprep.subr.mxu0 0.0
    %4404 = vmatpush1.msra.mxu0 %v4362
    %4405 = vmatprep.subr.mxu0 0.0
    %4406 = vmatpush2.msra.mxu0 0.0
    %4407 = vmatprep.subr.mxu0 0.0
    %4408 = vmatpush2.msra.mxu0 0.0
    %4409 = vmatprep.subr.mxu0 0.0
    %4410 = vmatpush2.msra.mxu0 0.0
    %4411 = vmatprep.subr.mxu0 0.0
    %4412 = vmatpush2.msra.mxu0 0.0
    %4413 = vmatprep.subr.mxu0 0.0
    %4414 = vmatpush2.msra.mxu0 0.0
    %4415 = vmatprep.subr.mxu0 0.0
    %4416 = vmatpush2.msra.mxu0 0.0
    %4417 = vmatprep.subr.mxu0 0.0
    %4418 = vmatpush2.msra.mxu0 0.0
    %4419 = vmatprep.subr.mxu0 0.0
    %4420 = vmatpush2.msra.mxu0 0.0
    %4421 = vmatprep.subr.mxu0 0.0
    %4422 = vmatpush2.msra.mxu0 0.0
    %4423 = vmatprep.subr.mxu0 0.0
    %4424 = vmatpush2.msra.mxu0 0.0
    %4425 = vmatprep.subr.mxu0 0.0
    %4426 = vmatpush2.msra.mxu0 0.0
    %4427 = vmatprep.subr.mxu0 0.0
    %4428 = vmatpush2.msra.mxu0 0.0
    %4429 = vmatprep.subr.mxu0 0.0
    %4430 = vmatpush2.msra.mxu0 0.0
    %4431 = vmatprep.subr.mxu0 0.0
    %4432 = vmatpush2.msra.mxu0 0.0
    %4433 = vmatprep.subr.mxu0 0.0
    %4434 = vmatpush2.msra.mxu0 0.0
    %4435 = vmatprep.subr.mxu0 0.0
    %4436 = vmatpush2.msra.mxu0 0.0
    %4437 = vmatprep.mubr.f32.mxu0 0.0
    %4438 = vmatmul.mubr.f32.gmra.mxu0 %v4368
    %v4439 = vpop.f32.mrf.mxu0
    %v4440 = vadd.f32 0.0, %v4439
    %v4441 = vpop.f32.mrf.mxu0
    %4442 = vmatprep.mubr.f32.mxu0 0.0
    %4443 = vmatmul.mubr.f32.gmra.mxu0 %v4371
    %v4444 = vpop.f32.mrf.mxu0
    %v4445 = vadd.f32 0.0, %v4444
    %v4446 = vpop.f32.mrf.mxu0
    %4447 = vdwg.mxu0
    %4450 = vrot.lane.b32.xlu0 %v4032, 8
    %v4451 = vpop.permute.xlu0 %4450
    %4452 = vrot.lane.b32.xlu0 %v4037, 8
    %v4453 = vpop.permute.xlu0 %4452
    %4458 = vrot.lane.b32.xlu0 %v4236, 16
    %v4459 = vpop.permute.xlu0 %4458
    %4460 = vrot.lane.b32.xlu0 %v4241, 16
    %v4461 = vpop.permute.xlu0 %4460
    %4466 = vrot.lane.b32.xlu0 %v4440, 24
    %v4467 = vpop.permute.xlu0 %4466
    %4468 = vrot.lane.b32.xlu0 %v4445, 24
    %v4469 = vpop.permute.xlu0 %4468
    %v4472 = vsel %vm268, %v3828, %v4451
    %v4473 = vsel %vm268, %v3833, %v4453
    %v4474 = vsel %vm356, %v4472, %v4459
    %v4475 = vsel %vm356, %v4473, %v4461
    %v4476 = vsel %vm1106, %v4474, %v4467
    %v4477 = vsel %vm1106, %v4475, %v4469
    %v4478 = vlaneseq
    %v4479 = vshrl.u32 %v4478, 7
    %v4480 = vsub.s32 0, %v4479
    %v4481 = vrot.slane %v3633, %v4480
    %v4483 = vsel %vm58, %v4476, 0
    %v4486 = vsel %vm58, %v4477, 0
    %4488 = vmatprep.subr.mxu0 0.0
    %4489 = vmatpush1.msra.mxu0 0.0
    %4490 = vmatprep.subr.mxu0 0.0
    %4491 = vmatpush1.msra.mxu0 0.0
    %4492 = vmatprep.subr.mxu0 0.0
    %4493 = vmatpush1.msra.mxu0 0.0
    %4494 = vmatprep.subr.mxu0 0.0
    %4495 = vmatpush1.msra.mxu0 0.0
    %4496 = vmatprep.subr.mxu0 0.0
    %4497 = vmatpush1.msra.mxu0 0.0
    %4498 = vmatprep.subr.mxu0 0.0
    %4499 = vmatpush1.msra.mxu0 0.0
    %4500 = vmatprep.subr.mxu0 0.0
    %4501 = vmatpush1.msra.mxu0 0.0
    %4502 = vmatprep.subr.mxu0 0.0
    %4503 = vmatpush1.msra.mxu0 0.0
    %4504 = vmatprep.subr.mxu0 0.0
    %4505 = vmatpush1.msra.mxu0 0.0
    %4506 = vmatprep.subr.mxu0 0.0
    %4507 = vmatpush1.msra.mxu0 0.0
    %4508 = vmatprep.subr.mxu0 0.0
    %4509 = vmatpush1.msra.mxu0 0.0
    %4510 = vmatprep.subr.mxu0 0.0
    %4511 = vmatpush1.msra.mxu0 0.0
    %4512 = vmatprep.subr.mxu0 0.0
    %4513 = vmatpush1.msra.mxu0 %v3632
    %4514 = vmatprep.subr.mxu0 0.0
    %4515 = vmatpush1.msra.mxu0 %v3631
    %4516 = vmatprep.subr.mxu0 0.0
    %4517 = vmatpush1.msra.mxu0 %v3630
    %4518 = vmatprep.subr.mxu0 0.0
    %4519 = vmatpush1.msra.mxu0 %v3629
    %4520 = vmatprep.subr.mxu0 0.0
    %4521 = vmatpush2.msra.mxu0 0.0
    %4522 = vmatprep.subr.mxu0 0.0
    %4523 = vmatpush2.msra.mxu0 0.0
    %4524 = vmatprep.subr.mxu0 0.0
    %4525 = vmatpush2.msra.mxu0 0.0
    %4526 = vmatprep.subr.mxu0 0.0
    %4527 = vmatpush2.msra.mxu0 0.0
    %4528 = vmatprep.subr.mxu0 0.0
    %4529 = vmatpush2.msra.mxu0 0.0
    %4530 = vmatprep.subr.mxu0 0.0
    %4531 = vmatpush2.msra.mxu0 0.0
    %4532 = vmatprep.subr.mxu0 0.0
    %4533 = vmatpush2.msra.mxu0 0.0
    %4534 = vmatprep.subr.mxu0 0.0
    %4535 = vmatpush2.msra.mxu0 0.0
    %4536 = vmatprep.subr.mxu0 0.0
    %4537 = vmatpush2.msra.mxu0 0.0
    %4538 = vmatprep.subr.mxu0 0.0
    %4539 = vmatpush2.msra.mxu0 0.0
    %4540 = vmatprep.subr.mxu0 0.0
    %4541 = vmatpush2.msra.mxu0 0.0
    %4542 = vmatprep.subr.mxu0 0.0
    %4543 = vmatpush2.msra.mxu0 0.0
    %4544 = vmatprep.subr.mxu0 0.0
    %4545 = vmatpush2.msra.mxu0 0.0
    %4546 = vmatprep.subr.mxu0 0.0
    %4547 = vmatpush2.msra.mxu0 0.0
    %4548 = vmatprep.subr.mxu0 0.0
    %4549 = vmatpush2.msra.mxu0 0.0
    %4550 = vmatprep.subr.mxu0 0.0
    %4551 = vmatpush2.msra.mxu0 0.0
    %4552 = vmatprep.mubr.f32.mxu0 0.0
    %4553 = vmatmul.mubr.f32.gmra.mxu0 %v4483
    %v4554 = vpop.f32.mrf.mxu0
    %v4555 = vadd.f32 %v4481, %v4554
    %v4556 = vpop.f32.mrf.mxu0
    %4557 = vmatprep.mubr.f32.mxu0 0.0
    %4558 = vmatmul.mubr.f32.gmra.mxu0 %v4486
    %v4559 = vpop.f32.mrf.mxu0
    %v4560 = vadd.f32 %v4481, %v4559
    %v4561 = vpop.f32.mrf.mxu0
    %4562 = vdwg.mxu0
    %v4563 = vadd.f32 %v3511, %v4555
    %v4564 = vadd.f32 %v3512, %v4560
    %v4565 = vsel %vm58, %v4563, 0.0
    %4566 = vadd.xlane.f32.xlu0 %v4565
    %v4567 = vpop.xlane.xlu0 %4566
    %v4568 = vsel %vm58, %v4564, 0.0
    %4569 = vadd.xlane.f32.xlu0 %v4568
    %v4570 = vpop.xlane.xlu0 %4569
    %v4571 = vmul.f32 %v4567, %v146
    %v4572 = vmul.f32 %v4570, %v146
    %v4573 = vsub.f32 %v4563, %v4571
    %v4574 = vsub.f32 %v4564, %v4572
    %v4575 = vmul.f32 %v4573, %v4573
    %v4576 = vmul.f32 %v4574, %v4574
    %v4577 = vsel %vm58, %v4575, 0.0
    %4578 = vadd.xlane.f32.xlu0 %v4577
    %v4579 = vpop.xlane.xlu0 %4578
    %v4580 = vsel %vm58, %v4576, 0.0
    %4581 = vadd.xlane.f32.xlu0 %v4580
    %v4582 = vpop.xlane.xlu0 %4581
    %v4583 = vmul.f32 %v4579, %v146
    %v4584 = vmul.f32 %v4582, %v146
    %v4585 = vadd.f32 %v4583, 1e-05
    %v4586 = vadd.f32 %v4584, 1e-05
    %v4587 = vrsqrt.pop %v4585
    %v4588 = vrsqrt.pop %v4586
    %v4589 = vmul.f32 %v4573, %v4587
    %v4590 = vmul.f32 %v4574, %v4588
    %v4591 = vld [vmem:[#allocation2 + $0x120] sm:$0xff]
    %v4592 = vld [vmem:[#allocation2 + $0x128] sm:$0xff]
    %v4593 = vld [vmem:[#allocation2 + $0x130] sm:$0xff]
    %v4594 = vld [vmem:[#allocation2 + $0x138] sm:$0xff]
    %v4595 = vld [vmem:[%s6 + $0xa] sm:$0x1]
    %v4596 = vlaneseq
    %v4597 = vshrl.u32 %v4596, 7
    %v4598 = vsub.s32 0, %v4597
    %v4599 = vrot.slane %v4595, %v4598
    %v4601 = vsel %vm58, %v4589, 0
    %v4604 = vsel %vm58, %v4590, 0
    %4606 = vmatprep.subr.mxu0 0.0
    %4607 = vmatpush1.msra.mxu0 0.0
    %4608 = vmatprep.subr.mxu0 0.0
    %4609 = vmatpush1.msra.mxu0 0.0
    %4610 = vmatprep.subr.mxu0 0.0
    %4611 = vmatpush1.msra.mxu0 0.0
    %4612 = vmatprep.subr.mxu0 0.0
    %4613 = vmatpush1.msra.mxu0 0.0
    %4614 = vmatprep.subr.mxu0 0.0
    %4615 = vmatpush1.msra.mxu0 0.0
    %4616 = vmatprep.subr.mxu0 0.0
    %4617 = vmatpush1.msra.mxu0 0.0
    %4618 = vmatprep.subr.mxu0 0.0
    %4619 = vmatpush1.msra.mxu0 0.0
    %4620 = vmatprep.subr.mxu0 0.0
    %4621 = vmatpush1.msra.mxu0 0.0
    %4622 = vmatprep.subr.mxu0 0.0
    %4623 = vmatpush1.msra.mxu0 0.0
    %4624 = vmatprep.subr.mxu0 0.0
    %4625 = vmatpush1.msra.mxu0 0.0
    %4626 = vmatprep.subr.mxu0 0.0
    %4627 = vmatpush1.msra.mxu0 0.0
    %4628 = vmatprep.subr.mxu0 0.0
    %4629 = vmatpush1.msra.mxu0 0.0
    %4630 = vmatprep.subr.mxu0 0.0
    %4631 = vmatpush1.msra.mxu0 %v4594
    %4632 = vmatprep.subr.mxu0 0.0
    %4633 = vmatpush1.msra.mxu0 %v4593
    %4634 = vmatprep.subr.mxu0 0.0
    %4635 = vmatpush1.msra.mxu0 %v4592
    %4636 = vmatprep.subr.mxu0 0.0
    %4637 = vmatpush1.msra.mxu0 %v4591
    %4638 = vmatprep.subr.mxu0 0.0
    %4639 = vmatpush2.msra.mxu0 0.0
    %4640 = vmatprep.subr.mxu0 0.0
    %4641 = vmatpush2.msra.mxu0 0.0
    %4642 = vmatprep.subr.mxu0 0.0
    %4643 = vmatpush2.msra.mxu0 0.0
    %4644 = vmatprep.subr.mxu0 0.0
    %4645 = vmatpush2.msra.mxu0 0.0
    %4646 = vmatprep.subr.mxu0 0.0
    %4647 = vmatpush2.msra.mxu0 0.0
    %4648 = vmatprep.subr.mxu0 0.0
    %4649 = vmatpush2.msra.mxu0 0.0
    %4650 = vmatprep.subr.mxu0 0.0
    %4651 = vmatpush2.msra.mxu0 0.0
    %4652 = vmatprep.subr.mxu0 0.0
    %4653 = vmatpush2.msra.mxu0 0.0
    %4654 = vmatprep.subr.mxu0 0.0
    %4655 = vmatpush2.msra.mxu0 0.0
    %4656 = vmatprep.subr.mxu0 0.0
    %4657 = vmatpush2.msra.mxu0 0.0
    %4658 = vmatprep.subr.mxu0 0.0
    %4659 = vmatpush2.msra.mxu0 0.0
    %4660 = vmatprep.subr.mxu0 0.0
    %4661 = vmatpush2.msra.mxu0 0.0
    %4662 = vmatprep.subr.mxu0 0.0
    %4663 = vmatpush2.msra.mxu0 0.0
    %4664 = vmatprep.subr.mxu0 0.0
    %4665 = vmatpush2.msra.mxu0 0.0
    %4666 = vmatprep.subr.mxu0 0.0
    %4667 = vmatpush2.msra.mxu0 0.0
    %4668 = vmatprep.subr.mxu0 0.0
    %4669 = vmatpush2.msra.mxu0 0.0
    %4670 = vmatprep.mubr.f32.mxu0 0.0
    %4671 = vmatmul.mubr.f32.gmra.mxu0 %v4601
    %v4672 = vpop.f32.mrf.mxu0
    %v4673 = vadd.f32 %v4599, %v4672
    %v4674 = vpop.f32.mrf.mxu0
    %4675 = vmatprep.mubr.f32.mxu0 0.0
    %4676 = vmatmul.mubr.f32.gmra.mxu0 %v4604
    %v4677 = vpop.f32.mrf.mxu0
    %v4678 = vadd.f32 %v4599, %v4677
    %v4679 = vpop.f32.mrf.mxu0
    %4680 = vdwg.mxu0
    %v4681 = vmax.f32 %v4673, 0.0
    %v4682 = vmax.f32 %v4678, 0.0
    %v4683 = vld [vmem:[%s5 + $0x40] sm:$0xff]
    %v4684 = vld [vmem:[%s5 + $0x48] sm:$0xff]
    %v4685 = vld [vmem:[%s5 + $0x50] sm:$0xff]
    %v4686 = vld [vmem:[%s5 + $0x58] sm:$0xff]
    %v4687 = vld [vmem:[%s5 + $0x60] sm:$0xff]
    %v4688 = vld [vmem:[%s5 + $0x68] sm:$0xff]
    %v4689 = vld [vmem:[%s5 + $0x70] sm:$0xff]
    %v4690 = vld [vmem:[%s5 + $0x78] sm:$0xff]
    %v4691 = vld [vmem:[%s6 + $0xb] sm:$0x1]
    %v4692 = vlaneseq
    %v4693 = vshrl.u32 %v4692, 7
    %v4694 = vsub.s32 0, %v4693
    %v4695 = vrot.slane %v4691, %v4694
    %v4697 = vsel %vm2377, %v4681, 0
    %v4700 = vsel %vm2377, %v4682, 0
    %4702 = vmatprep.subr.mxu0 0.0
    %4703 = vmatpush1.msra.mxu0 0.0
    %4704 = vmatprep.subr.mxu0 0.0
    %4705 = vmatpush1.msra.mxu0 0.0
    %4706 = vmatprep.subr.mxu0 0.0
    %4707 = vmatpush1.msra.mxu0 0.0
    %4708 = vmatprep.subr.mxu0 0.0
    %4709 = vmatpush1.msra.mxu0 0.0
    %4710 = vmatprep.subr.mxu0 0.0
    %4711 = vmatpush1.msra.mxu0 0.0
    %4712 = vmatprep.subr.mxu0 0.0
    %4713 = vmatpush1.msra.mxu0 0.0
    %4714 = vmatprep.subr.mxu0 0.0
    %4715 = vmatpush1.msra.mxu0 0.0
    %4716 = vmatprep.subr.mxu0 0.0
    %4717 = vmatpush1.msra.mxu0 0.0
    %4718 = vmatprep.subr.mxu0 0.0
    %4719 = vmatpush1.msra.mxu0 %v4690
    %4720 = vmatprep.subr.mxu0 0.0
    %4721 = vmatpush1.msra.mxu0 %v4689
    %4722 = vmatprep.subr.mxu0 0.0
    %4723 = vmatpush1.msra.mxu0 %v4688
    %4724 = vmatprep.subr.mxu0 0.0
    %4725 = vmatpush1.msra.mxu0 %v4687
    %4726 = vmatprep.subr.mxu0 0.0
    %4727 = vmatpush1.msra.mxu0 %v4686
    %4728 = vmatprep.subr.mxu0 0.0
    %4729 = vmatpush1.msra.mxu0 %v4685
    %4730 = vmatprep.subr.mxu0 0.0
    %4731 = vmatpush1.msra.mxu0 %v4684
    %4732 = vmatprep.subr.mxu0 0.0
    %4733 = vmatpush1.msra.mxu0 %v4683
    %4734 = vmatprep.subr.mxu0 0.0
    %4735 = vmatpush2.msra.mxu0 0.0
    %4736 = vmatprep.subr.mxu0 0.0
    %4737 = vmatpush2.msra.mxu0 0.0
    %4738 = vmatprep.subr.mxu0 0.0
    %4739 = vmatpush2.msra.mxu0 0.0
    %4740 = vmatprep.subr.mxu0 0.0
    %4741 = vmatpush2.msra.mxu0 0.0
    %4742 = vmatprep.subr.mxu0 0.0
    %4743 = vmatpush2.msra.mxu0 0.0
    %4744 = vmatprep.subr.mxu0 0.0
    %4745 = vmatpush2.msra.mxu0 0.0
    %4746 = vmatprep.subr.mxu0 0.0
    %4747 = vmatpush2.msra.mxu0 0.0
    %4748 = vmatprep.subr.mxu0 0.0
    %4749 = vmatpush2.msra.mxu0 0.0
    %4750 = vmatprep.subr.mxu0 0.0
    %4751 = vmatpush2.msra.mxu0 0.0
    %4752 = vmatprep.subr.mxu0 0.0
    %4753 = vmatpush2.msra.mxu0 0.0
    %4754 = vmatprep.subr.mxu0 0.0
    %4755 = vmatpush2.msra.mxu0 0.0
    %4756 = vmatprep.subr.mxu0 0.0
    %4757 = vmatpush2.msra.mxu0 0.0
    %4758 = vmatprep.subr.mxu0 0.0
    %4759 = vmatpush2.msra.mxu0 0.0
    %4760 = vmatprep.subr.mxu0 0.0
    %4761 = vmatpush2.msra.mxu0 0.0
    %4762 = vmatprep.subr.mxu0 0.0
    %4763 = vmatpush2.msra.mxu0 0.0
    %4764 = vmatprep.subr.mxu0 0.0
    %4765 = vmatpush2.msra.mxu0 0.0
    %4766 = vmatprep.mubr.f32.mxu0 0.0
    %4767 = vmatmul.mubr.f32.gmra.mxu0 %v4697
    %v4768 = vpop.f32.mrf.mxu0
    %v4769 = vadd.f32 %v4695, %v4768
    %v4770 = vpop.f32.mrf.mxu0
    %4771 = vmatprep.mubr.f32.mxu0 0.0
    %4772 = vmatmul.mubr.f32.gmra.mxu0 %v4700
    %v4773 = vpop.f32.mrf.mxu0
    %v4774 = vadd.f32 %v4695, %v4773
    %v4775 = vpop.f32.mrf.mxu0
    %4776 = vdwg.mxu0
    %v4777 = vadd.f32 %v4563, %v4769
    %v4778 = vadd.f32 %v4564, %v4774
    %v4779 = vsel %vm58, %v4777, 0.0
    %4780 = vadd.xlane.f32.xlu0 %v4779
    %v4781 = vpop.xlane.xlu0 %4780
    %v4782 = vsel %vm58, %v4778, 0.0
    %4783 = vadd.xlane.f32.xlu0 %v4782
    %v4784 = vpop.xlane.xlu0 %4783
    %v4785 = vmul.f32 %v4781, %v146
    %v4786 = vmul.f32 %v4784, %v146
    %v4787 = vsub.f32 %v4777, %v4785
    %v4788 = vsub.f32 %v4778, %v4786
    %v4789 = vmul.f32 %v4787, %v4787
    %v4790 = vmul.f32 %v4788, %v4788
    %v4791 = vsel %vm58, %v4789, 0.0
    %4792 = vadd.xlane.f32.xlu0 %v4791
    %v4793 = vpop.xlane.xlu0 %4792
    %v4794 = vsel %vm58, %v4790, 0.0
    %4795 = vadd.xlane.f32.xlu0 %v4794
    %v4796 = vpop.xlane.xlu0 %4795
    %v4797 = vmul.f32 %v4793, %v146
    %v4798 = vmul.f32 %v4796, %v146
    %v4799 = vadd.f32 %v4797, 1e-05
    %v4800 = vadd.f32 %v4798, 1e-05
    %v4801 = vrsqrt.pop %v4799
    %v4802 = vrsqrt.pop %v4800
    %v4803 = vmul.f32 %v4787, %v4801
    %v4804 = vmul.f32 %v4788, %v4802
    %4805 = vst.msk [vmem:[#allocation5] sm:$0xff] %vm58, %v4803
    %4806 = vst.msk [vmem:[#allocation5 + $0x8] sm:$0xff] %vm58, %v4804
    // Predicated region
    $region34: #{decoder_forward.1} parent=1 // pred_check
      _
    $region35: #{decoder_forward.1} parent=1 // pred_check_branch
      %4808 = sbr.rel (0) target = $region37
    $region36: #{decoder_forward.1} parent=1 // pred_region
      %s4810 = ssub.s32 256, 256
      %4811 = vsyncadd [#allocation4], %s4810
      %s4812 = sshll.u32 [#allocation5], 4
      %s4813 = int_to_ptr.vmem [resolvable:$true] %s4812
      %4818 = dma.vmem_to_hbm [thread:$0]  %s4813, 256, %s7, [#allocation4], 128, 128, 8
    $region37: #{decoder_forward.1} parent=1 // pred_fallthru
      _
    // Predicated region
    $region38: #{decoder_forward.1} parent=1 // pred_check
      _
    $region39: #{decoder_forward.1} parent=1 // pred_check_branch
      %4820 = sbr.rel (0) target = $region41
    $region40: #{decoder_forward.1} parent=1 // pred_region
      %4821 = dma.done [#allocation4], 256
    $region41: #{decoder_forward.1} parent=1 // pred_fallthru
      _
    %4822 = vsyncpa [#allocation3], 1
    %4823 = vsyncpa [#allocation4], 1

</llo_original>
